<compile_context>
chip_gen: v7x
topology: tpu7x:2x2x1
jax: 0.10.0
libtpu: 0.0.40
codegen_flags: <defaults>
</compile_context>

<pallas_src>
import functools
import math

import jax
import jax.numpy as jnp
from jax.experimental import pallas as pl
from jax.experimental.pallas import tpu as pltpu


# ----------------------------------------------------------------------------
# InnerAttention: multi-head self-attention Pallas kernel
# ----------------------------------------------------------------------------
def _inner_attention_kernel(x_ref, wqkv_ref, bqkv_ref, wo_ref, bo_ref, out_ref,
                            *, num_heads, scale, matmul_dtype):
    """One grid step = one batch element (one crmsa_k slot); x_ref is a (1, N, C) tile."""
    x = x_ref[0].astype(matmul_dtype)                                   # (N, C)
    N, C = x.shape
    H = num_heads
    D = C // H

    # Fused qkv projection: single (N, C) @ (C, 3C) MXU matmul, f32 accumulation.
    qkv = jnp.dot(x, wqkv_ref[...].astype(matmul_dtype),
                  preferred_element_type=jnp.float32) + bqkv_ref[...]   # (N, 3C) f32

    # Split q/k/v and lay heads out as a leading batch dim (H, N, D):
    # one reshape + transpose per tensor instead of H per-head lane slices.
    q = (qkv[:, 0 * C:1 * C] * scale).reshape(N, H, D).transpose(1, 0, 2)  # scale folded once
    k = qkv[:, 1 * C:2 * C].reshape(N, H, D).transpose(1, 0, 2)
    v = qkv[:, 2 * C:3 * C].reshape(N, H, D).transpose(1, 0, 2)

    # Head-batched scores: one dot_general over all heads.
    s = jnp.einsum('hnd,hmd->hnm', q.astype(matmul_dtype), k.astype(matmul_dtype),
                   preferred_element_type=jnp.float32)                  # (H, N, N) f32

    # Softmax over keys, f32 math; reciprocal routed to the EUP slot.
    s = s - jnp.max(s, axis=-1, keepdims=True)
    p = jnp.exp(s)
    inv = pl.reciprocal(jnp.sum(p, axis=-1, keepdims=True), approx=True)
    p = p * inv

    # Head-batched attention @ V, then re-concat heads with a single transpose + reshape.
    ctx = jnp.einsum('hnm,hmd->hnd', p.astype(matmul_dtype), v.astype(matmul_dtype),
                     preferred_element_type=jnp.float32)                # (H, N, D)
    ctx = ctx.transpose(1, 0, 2).reshape(N, C)                          # (N, C)

    out = jnp.dot(ctx.astype(matmul_dtype), wo_ref[...].astype(matmul_dtype),
                  preferred_element_type=jnp.float32) + bo_ref[...]
    out_ref[0] = out.astype(out_ref.dtype)


def inner_attention(x, wqkv, bqkv, wproj, bproj, *, num_heads,
                    matmul_dtype=jnp.float32):
    """Multi-head self-attention; x: (B_, N, C) -> (B_, N, C)."""
    B_, N, C = x.shape
    D = C // num_heads
    kernel = functools.partial(_inner_attention_kernel, num_heads=num_heads,
                               scale=D ** -0.5, matmul_dtype=matmul_dtype)
    # NOTE: weight/bias blocks are grid-constant. At production C (e.g. 1024) mark them
    # single-buffered (pipeline_mode=pl.Buffered(1)) and set vmem_limit_bytes explicitly;
    # irrelevant at C=32, so defaults are kept here.
    return pl.pallas_call(
        kernel,
        out_shape=jax.ShapeDtypeStruct((B_, N, C), jnp.float32),
        grid=(B_,),
        in_specs=[
            pl.BlockSpec((1, N, C), lambda b: (b, 0, 0)),
            pl.BlockSpec((C, 3 * C), lambda b: (0, 0)),
            pl.BlockSpec((1, 3 * C), lambda b: (0, 0)),
            pl.BlockSpec((C, C), lambda b: (0, 0)),
            pl.BlockSpec((1, C), lambda b: (0, 0)),
        ],
        out_specs=pl.BlockSpec((1, N, C), lambda b: (b, 0, 0)),
        compiler_params=pltpu.CompilerParams(dimension_semantics=("parallel",)),
    )(x, wqkv, bqkv, wproj, bproj)


# ----------------------------------------------------------------------------
# Region geometry / partition helpers (static python + pure layout, mirrors torch)
# ----------------------------------------------------------------------------
def _region_geometry(L, *, region_num, region_size=0, min_region_num=0,
                     min_region_ratio=0.0):
    """Static port of CrossRegionAttntion.padding() geometry (no data movement)."""
    H = W = int(math.ceil(math.sqrt(L)))
    if region_size > 0:
        _n = (-H) % region_size
        H, W = H + _n, W + _n
        rs = region_size
    else:
        _n = (-H) % region_num
        H, W = H + _n, W + _n
        rs = H // region_num
    add_length = H * W - L
    if add_length > L / (min_region_ratio + 1e-8) or L < min_region_num:
        H = W = int(math.ceil(math.sqrt(L)))
        _n = (-H) % 2
        H, W = H + _n, W + _n
        add_length = H * W - L
        rs = H
    return H, W, add_length, rs


def _region_partition(x, rs):
    B, H, W, C = x.shape
    x = x.reshape(B, H // rs, rs, W // rs, rs, C).transpose(0, 1, 3, 2, 4, 5)
    return x.reshape(-1, rs, rs, C)


def _region_reverse(regions, rs, H, W):
    B = regions.shape[0] // ((H // rs) * (W // rs))
    x = regions.reshape(B, H // rs, W // rs, rs, rs, -1).transpose(0, 1, 3, 2, 4, 5)
    return x.reshape(B, H, W, -1)


# ----------------------------------------------------------------------------
# CrossRegionAttntion forward (Pallas-backed)
# ----------------------------------------------------------------------------
def cross_region_attention(x, params, *, num_heads=8, region_num=8, region_size=0,
                           crmsa_k=3, min_region_num=0, min_region_ratio=0.0,
                           matmul_dtype=jnp.float32):
    B, L, C = x.shape
    assert params['phi'].shape[1] == crmsa_k
    H, W, add_length, rs = _region_geometry(
        L, region_num=region_num, region_size=region_size,
        min_region_num=min_region_num, min_region_ratio=min_region_ratio)
    if add_length > 0:
        x = jnp.concatenate([x, jnp.zeros((B, add_length, C), x.dtype)], axis=1)

    x_regions = _region_partition(x.reshape(B, H, W, C), rs).reshape(-1, rs * rs, C)

    # CR-MSA gating (tiny (Wn, crmsa_k, P) tensors; kept in XLA).
    logits = jnp.einsum('wpc,cn->wnp', x_regions, params['phi'])        # (Wn, K, P)
    combine_w = jax.nn.softmax(logits, axis=-1)                         # over tokens p
    dispatch_w = jax.nn.softmax(logits, axis=1)                         # over slots n
    lmin = logits.min(axis=-1, keepdims=True)
    lmax = logits.max(axis=-1, keepdims=True)
    dispatch_mm = (logits - lmin) / (lmax - lmin + 1e-8)

    # Combine region tokens per slot -> InnerAttention input (crmsa_k, Wn, C).
    attn_in = jnp.einsum('wpc,wnp->nwc', x_regions, combine_w)

    attn_out = inner_attention(attn_in, params['wqkv'], params['bqkv'],
                               params['wproj'], params['bproj'],
                               num_heads=num_heads, matmul_dtype=matmul_dtype)

    # Dispatch attended slot tokens back to region tokens, undo the partition.
    y = jnp.einsum('nwc,wnp,wnp->wpc', attn_out, dispatch_mm, dispatch_w)
    y = _region_reverse(y.reshape(-1, rs, rs, C), rs, H, W).reshape(B, H * W, C)
    if add_length > 0:
        y = y[:, :L]
    return y


# ----------------------------------------------------------------------------
# Pure-JAX reference (literal port of the torch forward, dropout p=0, epeg=False)
# ----------------------------------------------------------------------------
def cross_region_attention_ref(x, params, *, num_heads=8, region_num=8,
                               region_size=0, crmsa_k=3, min_region_num=0,
                               min_region_ratio=0.0):
    B, L, C = x.shape
    H, W, add_length, rs = _region_geometry(
        L, region_num=region_num, region_size=region_size,
        min_region_num=min_region_num, min_region_ratio=min_region_ratio)
    if add_length > 0:
        x = jnp.concatenate([x, jnp.zeros((B, add_length, C), x.dtype)], axis=1)
    x_regions = _region_partition(x.reshape(B, H, W, C), rs).reshape(-1, rs * rs, C)

    logits = jnp.einsum('wpc,cn->wpn', x_regions, params['phi']).transpose(0, 2, 1)
    combine_weights = jax.nn.softmax(logits, axis=-1)
    dispatch_weights = jax.nn.softmax(logits, axis=1)
    lmin = logits.min(axis=-1)[..., None]
    lmax = logits.max(axis=-1)[..., None]
    dispatch_weights_mm = (logits - lmin) / (lmax - lmin + 1e-8)

    attn_regions = jnp.einsum('wpc,wnp->wnpc', x_regions, combine_weights).sum(axis=-2)
    attn_regions = attn_regions.transpose(1, 0, 2)                      # (n, w, c)

    # InnerAttention, literal port of the torch math.
    B_, N, _ = attn_regions.shape
    D = C // num_heads
    qkv = attn_regions @ params['wqkv'] + params['bqkv']
    qkv = qkv.reshape(B_, N, 3, num_heads, D).transpose(2, 0, 3, 1, 4)
    q, k, v = qkv[0] * (D ** -0.5), qkv[1], qkv[2]
    attn = jax.nn.softmax(jnp.einsum('bhid,bhjd->bhij', q, k), axis=-1)
    ctx = jnp.einsum('bhij,bhjd->bhid', attn, v).transpose(0, 2, 1, 3).reshape(B_, N, C)
    attn_regions = (ctx @ params['wproj'] + params['bproj']).transpose(1, 0, 2)  # (w,n,c)

    y = jnp.einsum('wnc,wnp->wnpc', attn_regions, dispatch_weights_mm)
    y = jnp.einsum('wnpc,wnp->wnpc', y, dispatch_weights).sum(axis=1)   # (w, p, c)
    y = _region_reverse(y.reshape(-1, rs, rs, C), rs, H, W).reshape(B, H * W, C)
    if add_length > 0:
        y = y[:, :-add_length]
    return y


def init_params(key, dim, crmsa_k):
    ks = jax.random.split(key, 5)
    s = 1.0 / math.sqrt(dim)
    return dict(
        phi=jax.random.normal(ks[0], (dim, crmsa_k), jnp.float32) * s,
        wqkv=jax.random.normal(ks[1], (dim, 3 * dim), jnp.float32) * s,   # (in, out) layout
        bqkv=jax.random.normal(ks[2], (1, 3 * dim), jnp.float32) * 0.02,
        wproj=jax.random.normal(ks[3], (dim, dim), jnp.float32) * s,
        bproj=jax.random.normal(ks[4], (1, dim), jnp.float32) * 0.02,
    )


if __name__ == "__main__":
    # dim=32, num_heads=8 (head_dim=4); region_num=4 -> 8x8 token grid of 2x2 regions;
    # L=60 exercises the zero-padding path; crmsa_k=3 attention "slots".
    B, L, DIM = 2, 60, 32
    NUM_HEADS, REGION_NUM, CRMSA_K = 8, 4, 3

    root = jax.random.PRNGKey(0)
    kx, kp = jax.random.split(root)
    x = jax.random.normal(kx, (B, L, DIM), jnp.float32)
    params = init_params(kp, DIM, CRMSA_K)

    y = cross_region_attention(x, params, num_heads=NUM_HEADS,
                               region_num=REGION_NUM, crmsa_k=CRMSA_K)
    jax.block_until_ready(y)

    y_ref = cross_region_attention_ref(x, params, num_heads=NUM_HEADS,
                                       region_num=REGION_NUM, crmsa_k=CRMSA_K)
    assert y.shape == (B, L, DIM)
    err = float(jnp.max(jnp.abs(y - y_ref)))
    assert jnp.allclose(y, y_ref, atol=1e-2, rtol=1e-2), f"max abs err {err}"
    print("KERNEL_OK")
</pallas_src>

<mosaic_0001>
module attributes {stable_mosaic.version = 11 : i64} {
  func.func @_inner_attention_kernel(%arg0: i32, %arg1: memref<1x32x32xf32, #tpu.memory_space<vmem>>, %arg2: memref<32x96xf32, #tpu.memory_space<vmem>>, %arg3: memref<1x96xf32, #tpu.memory_space<vmem>>, %arg4: memref<32x32xf32, #tpu.memory_space<vmem>>, %arg5: memref<1x32xf32, #tpu.memory_space<vmem>>, %arg6: memref<1x32x32xf32, #tpu.memory_space<vmem>>) attributes {dimension_semantics = [#tpu.dimension_semantics<parallel>], iteration_bounds = array<i64: 3>, scalar_prefetch = 0 : i64, scratch_operands = 0 : i64, tpu.core_type = #tpu.core_type<tc>, window_params = [{transform_indices = @transform_0, window_bounds = array<i64: 1, 32, 32>}, {pipeline_mode = #tpu.pipeline_mode<synchronous>, transform_indices = @transform_1, window_bounds = array<i64: 32, 96>}, {pipeline_mode = #tpu.pipeline_mode<synchronous>, transform_indices = @transform_2, window_bounds = array<i64: 1, 96>}, {pipeline_mode = #tpu.pipeline_mode<synchronous>, transform_indices = @transform_3, window_bounds = array<i64: 32, 32>}, {pipeline_mode = #tpu.pipeline_mode<synchronous>, transform_indices = @transform_4, window_bounds = array<i64: 1, 32>}, {transform_indices = @transform_5, window_bounds = array<i64: 1, 32, 32>}]} {
    %c0 = arith.constant 0 : index
    %c0_0 = arith.constant 0 : index
    %c0_1 = arith.constant 0 : index
    %0 = vector.load %arg1[%c0, %c0_0, %c0_1] : memref<1x32x32xf32, #tpu.memory_space<vmem>>, vector<1x32x32xf32>
    %1 = vector.shape_cast %0 : vector<1x32x32xf32> to vector<32x32xf32>
    %c0_2 = arith.constant 0 : index
    %c0_3 = arith.constant 0 : index
    %2 = vector.load %arg2[%c0_2, %c0_3] : memref<32x96xf32, #tpu.memory_space<vmem>>, vector<32x96xf32>
    %cst = arith.constant dense<0.000000e+00> : vector<32x96xf32>
    %3 = tpu.matmul %1, %2, %cst {dimension_numbers = #tpu.dot_dimension_numbers<[1], [0], [0], [1], [0, 0, 1, 1], [], []>} : vector<32x32xf32>, vector<32x96xf32>, vector<32x96xf32> -> vector<32x96xf32>
    %c0_4 = arith.constant 0 : index
    %c0_5 = arith.constant 0 : index
    %4 = vector.load %arg3[%c0_4, %c0_5] : memref<1x96xf32, #tpu.memory_space<vmem>>, vector<1x96xf32>
    %5 = vector.broadcast %4 : vector<1x96xf32> to vector<32x96xf32>
    %6 = arith.addf %3, %5 : vector<32x96xf32>
    %7 = vector.extract_strided_slice %6 {offsets = [0, 0], sizes = [32, 32], strides = [1, 1]} : vector<32x96xf32> to vector<32x32xf32>
    %cst_6 = arith.constant 5.000000e-01 : f32
    %8 = vector.broadcast %cst_6 : f32 to vector<32x32xf32>
    %9 = arith.mulf %7, %8 : vector<32x32xf32>
    %10 = vector.shape_cast %9 : vector<32x32xf32> to vector<32x8x4xf32>
    %11 = tpu.transpose %10, [1, 0, 2] : vector<32x8x4xf32> -> vector<8x32x4xf32>
    %12 = vector.extract_strided_slice %6 {offsets = [0, 32], sizes = [32, 32], strides = [1, 1]} : vector<32x96xf32> to vector<32x32xf32>
    %13 = vector.shape_cast %12 : vector<32x32xf32> to vector<32x8x4xf32>
    %14 = tpu.transpose %13, [1, 0, 2] : vector<32x8x4xf32> -> vector<8x32x4xf32>
    %15 = vector.extract_strided_slice %6 {offsets = [0, 64], sizes = [32, 32], strides = [1, 1]} : vector<32x96xf32> to vector<32x32xf32>
    %16 = vector.shape_cast %15 : vector<32x32xf32> to vector<32x8x4xf32>
    %17 = tpu.transpose %16, [1, 0, 2] : vector<32x8x4xf32> -> vector<8x32x4xf32>
    "tpu.trace_start"() <{level = 10 : i32, message = "hnd,hmd->hnm"}> : () -> ()
    %cst_7 = arith.constant dense<0.000000e+00> : vector<8x32x32xf32>
    %18 = tpu.matmul %11, %14, %cst_7 {dimension_numbers = #tpu.dot_dimension_numbers<[2], [2], [1], [1], [0, 0, 0, 1, 1, 1], [0], [0]>} : vector<8x32x4xf32>, vector<8x32x4xf32>, vector<8x32x32xf32> -> vector<8x32x32xf32>
    "tpu.trace_stop"() : () -> ()
    %cst_8 = arith.constant dense<0xFF800000> : vector<8x32xf32>
    %19 = vector.multi_reduction <maximumf>, %18, %cst_8 [2] : vector<8x32x32xf32> to vector<8x32xf32>
    %20 = vector.shape_cast %19 : vector<8x32xf32> to vector<8x32x1xf32>
    %21 = vector.broadcast %20 : vector<8x32x1xf32> to vector<8x32x32xf32>
    %22 = arith.subf %18, %21 : vector<8x32x32xf32>
    %23 = math.exp %22 : vector<8x32x32xf32>
    %cst_9 = arith.constant dense<0.000000e+00> : vector<8x32xf32>
    %24 = vector.multi_reduction <add>, %23, %cst_9 [2] : vector<8x32x32xf32> to vector<8x32xf32>
    %25 = vector.shape_cast %24 : vector<8x32xf32> to vector<8x32x1xf32>
    %26 = tpu.reciprocal %25 {approx = true} : vector<8x32x1xf32> -> vector<8x32x1xf32>
    %27 = vector.broadcast %26 : vector<8x32x1xf32> to vector<8x32x32xf32>
    %28 = arith.mulf %23, %27 : vector<8x32x32xf32>
    "tpu.trace_start"() <{level = 10 : i32, message = "hnm,hmd->hnd"}> : () -> ()
    %cst_10 = arith.constant dense<0.000000e+00> : vector<8x32x4xf32>
    %29 = tpu.matmul %28, %17, %cst_10 {dimension_numbers = #tpu.dot_dimension_numbers<[2], [1], [1], [2], [0, 0, 0, 1, 1, 2], [0], [0]>} : vector<8x32x32xf32>, vector<8x32x4xf32>, vector<8x32x4xf32> -> vector<8x32x4xf32>
    "tpu.trace_stop"() : () -> ()
    %30 = tpu.transpose %29, [1, 0, 2] : vector<8x32x4xf32> -> vector<32x8x4xf32>
    %31 = vector.shape_cast %30 : vector<32x8x4xf32> to vector<32x32xf32>
    %c0_11 = arith.constant 0 : index
    %c0_12 = arith.constant 0 : index
    %32 = vector.load %arg4[%c0_11, %c0_12] : memref<32x32xf32, #tpu.memory_space<vmem>>, vector<32x32xf32>
    %cst_13 = arith.constant dense<0.000000e+00> : vector<32x32xf32>
    %33 = tpu.matmul %31, %32, %cst_13 {dimension_numbers = #tpu.dot_dimension_numbers<[1], [0], [0], [1], [0, 0, 1, 1], [], []>} : vector<32x32xf32>, vector<32x32xf32>, vector<32x32xf32> -> vector<32x32xf32>
    %c0_14 = arith.constant 0 : index
    %c0_15 = arith.constant 0 : index
    %34 = vector.load %arg5[%c0_14, %c0_15] : memref<1x32xf32, #tpu.memory_space<vmem>>, vector<1x32xf32>
    %35 = vector.broadcast %34 : vector<1x32xf32> to vector<32x32xf32>
    %36 = arith.addf %33, %35 : vector<32x32xf32>
    %c0_16 = arith.constant 0 : index
    %c0_17 = arith.constant 0 : index
    %c0_18 = arith.constant 0 : index
    %37 = vector.load %arg6[%c0_16, %c0_17, %c0_18] : memref<1x32x32xf32, #tpu.memory_space<vmem>>, vector<1x32x32xf32>
    %38 = vector.shape_cast %37 : vector<1x32x32xf32> to vector<32x32xf32>
    %39 = vector.shape_cast %36 : vector<32x32xf32> to vector<1x32x32xf32>
    tpu.vector_store %arg6[%c0_16, %c0_17, %c0_18], %39 {strides = array<i32>} : memref<1x32x32xf32, #tpu.memory_space<vmem>>, vector<1x32x32xf32>,
    return
  }
  func.func @transform_0(%arg0: i32) -> (i32, i32, i32) {
    %c0_i32 = arith.constant 0 : i32
    %c0_i32_0 = arith.constant 0 : i32
    %c0_i32_1 = arith.constant 0 : i32
    return %arg0, %c0_i32, %c0_i32_0 : i32, i32, i32
  }
  func.func @transform_1(%arg0: i32) -> (i32, i32) {
    %c0_i32 = arith.constant 0 : i32
    %c0_i32_0 = arith.constant 0 : i32
    %c0_i32_1 = arith.constant 0 : i32
    return %c0_i32, %c0_i32_0 : i32, i32
  }
  func.func @transform_2(%arg0: i32) -> (i32, i32) {
    %c0_i32 = arith.constant 0 : i32
    %c0_i32_0 = arith.constant 0 : i32
    %c0_i32_1 = arith.constant 0 : i32
    return %c0_i32, %c0_i32_0 : i32, i32
  }
  func.func @transform_3(%arg0: i32) -> (i32, i32) {
    %c0_i32 = arith.constant 0 : i32
    %c0_i32_0 = arith.constant 0 : i32
    %c0_i32_1 = arith.constant 0 : i32
    return %c0_i32, %c0_i32_0 : i32, i32
  }
  func.func @transform_4(%arg0: i32) -> (i32, i32) {
    %c0_i32 = arith.constant 0 : i32
    %c0_i32_0 = arith.constant 0 : i32
    %c0_i32_1 = arith.constant 0 : i32
    return %c0_i32, %c0_i32_0 : i32, i32
  }
  func.func @transform_5(%arg0: i32) -> (i32, i32, i32) {
    %c0_i32 = arith.constant 0 : i32
    %c0_i32_0 = arith.constant 0 : i32
    %c0_i32_1 = arith.constant 0 : i32
    return %arg0, %c0_i32, %c0_i32_0 : i32, i32, i32
  }
}

</mosaic_0001>

<llo_original>
// kernel: tpu_custom_call.1
$region0: #{tpu_custom_call.1}
  #allocation0 [shape = 'u32[]', space=smem, size = 0x4, offset = 0x4, fixed_abs, tag = 'smem constant byte address 0x4 - core index']
  #allocation1 [shape = 'u32[144,128]{1,0:T(1,128)}', space=vmem, size = 0x12000, scoped, tag = 'internal scratch']
  %s0 = inlined_call_operand.hbm [shape: f32[3,32,32], index: 0, kind: input, shape index: {}]
  %s1 = inlined_call_operand.hbm [shape: f32[32,96], index: 1, kind: input, shape index: {}]
  %s2 = inlined_call_operand.vmem [shape: f32[1,96], index: 2, kind: input, shape index: {}]
  %s3 = inlined_call_operand.hbm [shape: f32[32,32], index: 3, kind: input, shape index: {}]
  %s4 = inlined_call_operand.vmem [shape: f32[1,32], index: 4, kind: input, shape index: {}]
  %s5 = inlined_call_operand.hbm [shape: f32[3,32,32], index: 5, kind: output, shape index: {}]
  %s6 = sld [smem:[#allocation0]]
  $region65: #{tpu_custom_call.1} parent=0
    _
  %s8 = ssub.s32 1, %s6
  %s9 = scalar_select 0, %s8, %s6
  $region1: #{tpu_custom_call.1} parent=0
    #allocation2 [shape = 'u8[32768]{0}', space=vmem, size = 0x8000, scoped, tag = 'input window, operand 0']
    #allocation3 [shape = 's32[2]{0}', space=sflag, size = 0x8, scoped, tag = 'scoped memory for tpu_custom_call.1']
    #allocation4 [shape = 's32[2]{0}', space=sflag, size = 0x8, scoped, tag = 'scoped memory for tpu_custom_call.1']
    #allocation5 [shape = 'u8[16384]{0}', space=vmem, size = 0x4000, scoped, tag = 'input window, operand 1, single buffered']
    #allocation6 [shape = 's32[1]{0}', space=sflag, size = 0x4, scoped, tag = 'scoped memory for tpu_custom_call.1']
    #allocation7 [shape = 'u8[16384]{0}', space=vmem, size = 0x4000, scoped, tag = 'input window, operand 3, single buffered']
    #allocation8 [shape = 'u8[32768]{0}', space=vmem, size = 0x8000, scoped, tag = 'output window, operand 0']
    %10 = vsyncpa [#allocation3], 0
    %s11 = scalar_lea.sflag [#allocation3], 1
    %12 = vsyncpa %s11, 0
    %13 = vsyncpa [#allocation6], 0
    %14 = vsyncpa [#allocation4], 0
    %s15 = scalar_lea.sflag [#allocation4], 1
    %16 = vsyncpa %s15, 0
    loop: start=0, step=1, limit=5
    $region2: #{tpu_custom_call.1} parent=1 // loop_pre_header
      _
    $region3: #{tpu_custom_call.1} parent=1 // loop_header
      %s18 = sphi 0, %s22
      %p19 = scmp.ge.s32.totalorder %s18, 5
      %s28 = sphi 0, %s30
      %s31 = sphi 0, %s28
      %s32 = sphi 0, %s31
      %s48 = sphi 0, %s32
      %s52 = sphi 0, %s52
      %s54 = sphi 0, %s52
      %s55 = sphi 0, %s54
      %s69 = sphi 0, %s55
      %s73 = sphi 0, %s73
      %s75 = sphi 0, %s73
      %s76 = sphi 0, %s75
      %s90 = sphi 0, %s76
      %s94 = sphi 0, %s94
      %s96 = sphi 0, %s94
      %s97 = sphi 0, %s96
      %s111 = sphi 0, %s97
      %s115 = sphi 0, %s115
      %s117 = sphi 0, %s115
      %s118 = sphi 0, %s117
      %s132 = sphi 0, %s118
      %s138 = sphi 0, %s140
      %s141 = sphi 0, %s138
      %s142 = sphi 0, %s141
      %s158 = sphi 0, %s142
    $region4: #{tpu_custom_call.1} parent=1 // loop_header_branch
      %21 = sbr.rel (%p19) target = $region8
    $region5: #{tpu_custom_call.1} parent=1 // loop_body
      %s23 = ssub.s32 %s18, 1
      %s24 = ssub.s32 %s18, 2
      %s25 = sadd.s32 %s18, 1
      %s26 = ssub.s32 %s18, %s25
      %p27 = scmp.eq.s32.totalorder %s26, 0
      %s29 = sadd.s32 %s28, 1
      %s30 = scalar_select %p27, %s28, %s29
      %p33 = pneg %p27
      %p34 = scmp.eq.s32.totalorder %s18, 2
      %p35 = por %p33, %p34
      %p36 = scmp.ne.s32.totalorder %s28, %s31
      %p37 = scmp.eq.s32.totalorder %s18, 0
      %p38 = por %p36, %p37
      %p39 = scmp.ne.s32.totalorder %s28, %s31
      %p40 = scmp.eq.s32.totalorder %s23, 2
      %p41 = por %p39, %p40
      %p42 = scmp.ne.s32.totalorder %s31, %s32
      %p43 = scmp.eq.s32.totalorder %s23, 0
      %p44 = por %p42, %p43
      %p45 = scmp.ne.s32.totalorder %s31, %s32
      %p46 = scmp.eq.s32.totalorder %s24, 2
      %p47 = por %p45, %p46
      %p49 = scmp.ne.s32.totalorder %s32, %s48
      %p50 = scmp.eq.s32.totalorder %s24, 0
      %p51 = por %p49, %p50
      %s53 = sadd.s32 %s52, 1
      %p56 = scmp.eq.s32.totalorder %s18, 2
      %p57 = scmp.ne.s32.totalorder %s52, %s54
      %p58 = scmp.eq.s32.totalorder %s18, 0
      %p59 = por %p57, %p58
      %p60 = scmp.ne.s32.totalorder %s52, %s54
      %p61 = scmp.eq.s32.totalorder %s23, 2
      %p62 = por %p60, %p61
      %p63 = scmp.ne.s32.totalorder %s54, %s55
      %p64 = scmp.eq.s32.totalorder %s23, 0
      %p65 = por %p63, %p64
      %p66 = scmp.ne.s32.totalorder %s54, %s55
      %p67 = scmp.eq.s32.totalorder %s24, 2
      %p68 = por %p66, %p67
      %p70 = scmp.ne.s32.totalorder %s55, %s69
      %p71 = scmp.eq.s32.totalorder %s24, 0
      %p72 = por %p70, %p71
      %s74 = sadd.s32 %s73, 1
      %p77 = scmp.eq.s32.totalorder %s18, 2
      %p78 = scmp.ne.s32.totalorder %s73, %s75
      %p79 = scmp.eq.s32.totalorder %s18, 0
      %p80 = por %p78, %p79
      %p81 = scmp.ne.s32.totalorder %s73, %s75
      %p82 = scmp.eq.s32.totalorder %s23, 2
      %p83 = por %p81, %p82
      %p84 = scmp.ne.s32.totalorder %s75, %s76
      %p85 = scmp.eq.s32.totalorder %s23, 0
      %p86 = por %p84, %p85
      %p87 = scmp.ne.s32.totalorder %s75, %s76
      %p88 = scmp.eq.s32.totalorder %s24, 2
      %p89 = por %p87, %p88
      %p91 = scmp.ne.s32.totalorder %s76, %s90
      %p92 = scmp.eq.s32.totalorder %s24, 0
      %p93 = por %p91, %p92
      %s95 = sadd.s32 %s94, 1
      %p98 = scmp.eq.s32.totalorder %s18, 2
      %p99 = scmp.ne.s32.totalorder %s94, %s96
      %p100 = scmp.eq.s32.totalorder %s18, 0
      %p101 = por %p99, %p100
      %p102 = scmp.ne.s32.totalorder %s94, %s96
      %p103 = scmp.eq.s32.totalorder %s23, 2
      %p104 = por %p102, %p103
      %p105 = scmp.ne.s32.totalorder %s96, %s97
      %p106 = scmp.eq.s32.totalorder %s23, 0
      %p107 = por %p105, %p106
      %p108 = scmp.ne.s32.totalorder %s96, %s97
      %p109 = scmp.eq.s32.totalorder %s24, 2
      %p110 = por %p108, %p109
      %p112 = scmp.ne.s32.totalorder %s97, %s111
      %p113 = scmp.eq.s32.totalorder %s24, 0
      %p114 = por %p112, %p113
      %s116 = sadd.s32 %s115, 1
      %p119 = scmp.eq.s32.totalorder %s18, 2
      %p120 = scmp.ne.s32.totalorder %s115, %s117
      %p121 = scmp.eq.s32.totalorder %s18, 0
      %p122 = por %p120, %p121
      %p123 = scmp.ne.s32.totalorder %s115, %s117
      %p124 = scmp.eq.s32.totalorder %s23, 2
      %p125 = por %p123, %p124
      %p126 = scmp.ne.s32.totalorder %s117, %s118
      %p127 = scmp.eq.s32.totalorder %s23, 0
      %p128 = por %p126, %p127
      %p129 = scmp.ne.s32.totalorder %s117, %s118
      %p130 = scmp.eq.s32.totalorder %s24, 2
      %p131 = por %p129, %p130
      %p133 = scmp.ne.s32.totalorder %s118, %s132
      %p134 = scmp.eq.s32.totalorder %s24, 0
      %p135 = por %p133, %p134
      %s136 = ssub.s32 %s18, %s25
      %p137 = scmp.eq.s32.totalorder %s136, 0
      %s139 = sadd.s32 %s138, 1
      %s140 = scalar_select %p137, %s138, %s139
      %p143 = pneg %p137
      %p144 = scmp.eq.s32.totalorder %s18, 2
      %p145 = por %p143, %p144
      %p146 = scmp.ne.s32.totalorder %s138, %s141
      %p147 = scmp.eq.s32.totalorder %s18, 0
      %p148 = por %p146, %p147
      %p149 = scmp.ne.s32.totalorder %s138, %s141
      %p150 = scmp.eq.s32.totalorder %s23, 2
      %p151 = por %p149, %p150
      %p152 = scmp.ne.s32.totalorder %s141, %s142
      %p153 = scmp.eq.s32.totalorder %s23, 0
      %p154 = por %p152, %p153
      %p155 = scmp.ne.s32.totalorder %s141, %s142
      %p156 = scmp.eq.s32.totalorder %s24, 2
      %p157 = por %p155, %p156
      %p159 = scmp.ne.s32.totalorder %s142, %s158
      %p160 = scmp.eq.s32.totalorder %s24, 0
      %p161 = por %p159, %p160
      %p162 = scmp.le.s32.totalorder 1, %s18
      %p163 = scmp.lt.s32.totalorder %s18, 4
      %p164 = pnand %p162, %p163
      %p165 = pneg %p164
      // Predicated region
      $region9: #{tpu_custom_call.1} parent=5 // pred_check
        _
      $region10: #{tpu_custom_call.1} parent=5 // pred_check_branch
        %167 = sbr.rel (%p164) target = $region12
      $region11: #{tpu_custom_call.1} parent=5 // pred_region
        %s168 = ssub.s32 %s18, 1
        // Predicated region
        $region13: #{tpu_custom_call.1} parent=11 // pred_check
          %p169 = pneg %p65
        $region14: #{tpu_custom_call.1} parent=11 // pred_check_branch
          %171 = sbr.rel (%p169) target = $region16
        $region15: #{tpu_custom_call.1} parent=11 // pred_region
          %s173 = ssub.s32 512, 512
          %174 = vsyncadd [#allocation6], %s173
          %s175 = sshll.u32 [#allocation5], 4
          %s176 = int_to_ptr.vmem [resolvable:$true] %s175
          %181 = dma.hbm_to_vmem [thread:$0]  %s1, 512, %s176, [#allocation6], 128, 128, 8
        $region16: #{tpu_custom_call.1} parent=11 // pred_fallthru
          _
        // Predicated region
        $region17: #{tpu_custom_call.1} parent=11 // pred_check
          %p182 = pneg %p86
        $region18: #{tpu_custom_call.1} parent=11 // pred_check_branch
          %184 = sbr.rel (%p182) target = $region20
        $region19: #{tpu_custom_call.1} parent=11 // pred_region
          _
        $region20: #{tpu_custom_call.1} parent=11 // pred_fallthru
          _
        // Predicated region
        $region21: #{tpu_custom_call.1} parent=11 // pred_check
          %p185 = pneg %p107
        $region22: #{tpu_custom_call.1} parent=11 // pred_check_branch
          %187 = sbr.rel (%p185) target = $region24
        $region23: #{tpu_custom_call.1} parent=11 // pred_region
          %s189 = ssub.s32 512, 512
          %190 = vsyncadd [#allocation6], %s189
          %s191 = sshll.u32 [#allocation7], 4
          %s192 = int_to_ptr.vmem [resolvable:$true] %s191
          %197 = dma.hbm_to_vmem [thread:$0]  %s3, 512, %s192, [#allocation6], 128, 128, 8
        $region24: #{tpu_custom_call.1} parent=11 // pred_fallthru
          _
        // Predicated region
        $region25: #{tpu_custom_call.1} parent=11 // pred_check
          %p198 = pneg %p128
        $region26: #{tpu_custom_call.1} parent=11 // pred_check_branch
          %200 = sbr.rel (%p198) target = $region28
        $region27: #{tpu_custom_call.1} parent=11 // pred_region
          _
        $region28: #{tpu_custom_call.1} parent=11 // pred_fallthru
          _
      $region12: #{tpu_custom_call.1} parent=5 // pred_fallthru
        _
      %p201 = scmp.lt.s32.totalorder %s18, 3
      // Predicated region
      $region29: #{tpu_custom_call.1} parent=5 // pred_check
        %p202 = pneg %p201
      $region30: #{tpu_custom_call.1} parent=5 // pred_check_branch
        %204 = sbr.rel (%p202) target = $region32
      $region31: #{tpu_custom_call.1} parent=5 // pred_region
        // Predicated region
        $region33: #{tpu_custom_call.1} parent=31 // pred_check
          %p205 = pneg %p38
        $region34: #{tpu_custom_call.1} parent=31 // pred_check_branch
          %207 = sbr.rel (%p205) target = $region36
        $region35: #{tpu_custom_call.1} parent=31 // pred_region
          %s208 = sand.u32 %s28, 1
          %s209 = scalar_lea.sflag [#allocation3], %s208
          %s210 = sand.u32 %s28, 1
          %s211 = smul.addr %s210, 32
          %s212 = scalar_lea.vmem [#allocation2], %s211
          %s214 = ssub.s32 512, 512
          %215 = vsyncadd %s209, %s214
          %s216 = smul.addr %s18, 4
          %s217 = smul.addr %s216, 128
          %s218 = scalar_lea.hbm %s0, %s217
          %s219 = sshll.u32 %s212, 4
          %s220 = int_to_ptr.vmem [resolvable:$true] %s219
          %225 = dma.hbm_to_vmem [thread:$0]  %s218, 512, %s220, %s209, 128, 128, 8
        $region36: #{tpu_custom_call.1} parent=31 // pred_fallthru
          _
      $region32: #{tpu_custom_call.1} parent=5 // pred_fallthru
        _
      %p226 = scmp.le.s32.totalorder 1, %s18
      %p227 = scmp.lt.s32.totalorder %s18, 4
      %p228 = pnand %p226, %p227
      %p229 = pneg %p228
      // Predicated region
      $region37: #{tpu_custom_call.1} parent=5 // pred_check
        _
      $region38: #{tpu_custom_call.1} parent=5 // pred_check_branch
        %231 = sbr.rel (%p228) target = $region40
      $region39: #{tpu_custom_call.1} parent=5 // pred_region
        %s232 = ssub.s32 %s18, 1
        %s233 = sand.u32 %s31, 1
        %s234 = scalar_lea.sflag [#allocation3], %s233
        %s235 = sand.u32 %s31, 1
        %s236 = smul.addr %s235, 32
        %s237 = scalar_lea.vmem [#allocation2], %s236
        // Predicated region
        $region41: #{tpu_custom_call.1} parent=39 // pred_check
          %p238 = pneg %p44
        $region42: #{tpu_custom_call.1} parent=39 // pred_check_branch
          %240 = sbr.rel (%p238) target = $region44
        $region43: #{tpu_custom_call.1} parent=39 // pred_region
          %241 = dma.done %s234, 512
        $region44: #{tpu_custom_call.1} parent=39 // pred_fallthru
          _
        // Predicated region
        $region45: #{tpu_custom_call.1} parent=39 // pred_check
          %p242 = pneg %p65
        $region46: #{tpu_custom_call.1} parent=39 // pred_check_branch
          %244 = sbr.rel (%p242) target = $region48
        $region47: #{tpu_custom_call.1} parent=39 // pred_region
          %245 = dma.done [#allocation6], 512
        $region48: #{tpu_custom_call.1} parent=39 // pred_fallthru
          _
        // Predicated region
        $region49: #{tpu_custom_call.1} parent=39 // pred_check
          %p246 = pneg %p107
        $region50: #{tpu_custom_call.1} parent=39 // pred_check_branch
          %248 = sbr.rel (%p246) target = $region52
        $region51: #{tpu_custom_call.1} parent=39 // pred_region
          %249 = dma.done [#allocation6], 512
        $region52: #{tpu_custom_call.1} parent=39 // pred_fallthru
          _
        %s250 = sand.u32 %s31, 1
        %s251 = scalar_lea.sflag [#allocation3], %s250
        %s252 = sand.u32 %s31, 1
        %s253 = smul.addr %s252, 32
        %s254 = scalar_lea.vmem [#allocation2], %s253
        %p255 = pneg %p44
        %p256 = pneg %p41
        %p257 = pneg %p65
        %p258 = pneg %p62
        %p259 = pneg %p86
        %p260 = pneg %p83
        %p261 = pneg %p107
        %p262 = pneg %p104
        %p263 = pneg %p128
        %p264 = pneg %p125
        %p265 = pneg %p154
        %p266 = pneg %p151
        %s267 = sand.u32 %s141, 1
        %s268 = scalar_lea.sflag [#allocation4], %s267
        %s269 = sand.u32 %s141, 1
        %s270 = smul.addr %s269, 32
        %s271 = scalar_lea.vmem [#allocation8], %s270
        %v272 = vld [vmem:[%s237] sm:$0xff]
        %v273 = vld [vmem:[%s237 + $0x8] sm:$0xff]
        %v274 = vld [vmem:[%s237 + $0x10] sm:$0xff]
        %v275 = vld [vmem:[%s237 + $0x18] sm:$0xff]
        %v276 = vld [vmem:[#allocation5] sm:$0xff]
        %v277 = vld [vmem:[#allocation5 + $0x8] sm:$0xff]
        %v278 = vld [vmem:[#allocation5 + $0x10] sm:$0xff]
        %v279 = vld [vmem:[#allocation5 + $0x18] sm:$0xff]
        %v280 = vld [vmem:[%s2] sm:$0x1]
        %v282 = vlaneseq
        %v283 = vshrl.u32 %v282, 7
        %v284 = vsub.s32 0, %v283
        %v285 = vrot.slane %v280, %v284
        %vm287 = vcmask 261120
        %v289 = vsel %vm287, %v272, 0
        %v292 = vsel %vm287, %v273, 0
        %v295 = vsel %vm287, %v274, 0
        %v298 = vsel %vm287, %v275, 0
        %300 = vmatprep.subr.mxu0 0.0
        %301 = vmatpush1.msra.mxu0 %v276
        %302 = vmatprep.subr.mxu0 0.0
        %303 = vmatpush1.msra.mxu0 %v277
        %304 = vmatprep.subr.mxu0 0.0
        %305 = vmatpush1.msra.mxu0 %v278
        %306 = vmatprep.subr.mxu0 0.0
        %307 = vmatpush1.msra.mxu0 %v279
        %308 = vmatprep.subr.mxu0 0.0
        %309 = vmatpush1.msra.mxu0 0.0
        %310 = vmatprep.subr.mxu0 0.0
        %311 = vmatpush1.msra.mxu0 0.0
        %312 = vmatprep.subr.mxu0 0.0
        %313 = vmatpush1.msra.mxu0 0.0
        %314 = vmatprep.subr.mxu0 0.0
        %315 = vmatpush1.msra.mxu0 0.0
        %316 = vmatprep.subr.mxu0 0.0
        %317 = vmatpush1.msra.mxu0 0.0
        %318 = vmatprep.subr.mxu0 0.0
        %319 = vmatpush1.msra.mxu0 0.0
        %320 = vmatprep.subr.mxu0 0.0
        %321 = vmatpush1.msra.mxu0 0.0
        %322 = vmatprep.subr.mxu0 0.0
        %323 = vmatpush1.msra.mxu0 0.0
        %324 = vmatprep.subr.mxu0 0.0
        %325 = vmatpush1.msra.mxu0 0.0
        %326 = vmatprep.subr.mxu0 0.0
        %327 = vmatpush1.msra.mxu0 0.0
        %328 = vmatprep.subr.mxu0 0.0
        %329 = vmatpush1.msra.mxu0 0.0
        %330 = vmatprep.subr.mxu0 0.0
        %331 = vmatpush1.msra.mxu0 0.0
        %332 = vmatprep.subr.mxu0 0.0
        %333 = vmatpush1.msra.mxu0 0.0
        %334 = vmatprep.subr.mxu0 0.0
        %335 = vmatpush1.msra.mxu0 0.0
        %336 = vmatprep.subr.mxu0 0.0
        %337 = vmatpush1.msra.mxu0 0.0
        %338 = vmatprep.subr.mxu0 0.0
        %339 = vmatpush1.msra.mxu0 0.0
        %340 = vmatprep.subr.mxu0 0.0
        %341 = vmatpush1.msra.mxu0 0.0
        %342 = vmatprep.subr.mxu0 0.0
        %343 = vmatpush1.msra.mxu0 0.0
        %344 = vmatprep.subr.mxu0 0.0
        %345 = vmatpush1.msra.mxu0 0.0
        %346 = vmatprep.subr.mxu0 0.0
        %347 = vmatpush1.msra.mxu0 0.0
        %348 = vmatprep.subr.mxu0 0.0
        %349 = vmatpush1.msra.mxu0 0.0
        %350 = vmatprep.subr.mxu0 0.0
        %351 = vmatpush1.msra.mxu0 0.0
        %352 = vmatprep.subr.mxu0 0.0
        %353 = vmatpush1.msra.mxu0 0.0
        %354 = vmatprep.subr.mxu0 0.0
        %355 = vmatpush1.msra.mxu0 0.0
        %356 = vmatprep.subr.mxu0 0.0
        %357 = vmatpush1.msra.mxu0 0.0
        %358 = vmatprep.subr.mxu0 0.0
        %359 = vmatpush1.msra.mxu0 0.0
        %360 = vmatprep.subr.mxu0 0.0
        %361 = vmatpush1.msra.mxu0 0.0
        %362 = vmatprep.subr.mxu0 0.0
        %363 = vmatpush1.msra.mxu0 0.0
        %364 = vmatprep.mubr.f32.mxu0 0.0
        %365 = vmatmul.mubr.f32.gmra.mrb[0].mxu0 %v289
        %v366 = vpop.f32.mrb[0].mxu0
        %v367 = vadd.f32 %v285, %v366
        %v368 = vpop.f32.mrb[0].mxu0
        %369 = vmatprep.mubr.f32.mxu0 0.0
        %370 = vmatmul.mubr.f32.gmra.mrb[0].mxu0 %v292
        %v371 = vpop.f32.mrb[0].mxu0
        %v372 = vadd.f32 %v285, %v371
        %v373 = vpop.f32.mrb[0].mxu0
        %374 = vmatprep.mubr.f32.mxu0 0.0
        %375 = vmatmul.mubr.f32.gmra.mrb[0].mxu0 %v295
        %v376 = vpop.f32.mrb[0].mxu0
        %v377 = vadd.f32 %v285, %v376
        %v378 = vpop.f32.mrb[0].mxu0
        %379 = vmatprep.mubr.f32.mxu0 0.0
        %380 = vmatmul.mubr.f32.gmra.mrb[0].mxu0 %v298
        %v381 = vpop.f32.mrb[0].mxu0
        %v382 = vadd.f32 %v285, %v381
        %v383 = vpop.f32.mrb[0].mxu0
        %384 = vdwg.mxu0
        %v385 = vmul.f32 %v367, 0.5
        %v386 = vmul.f32 %v372, 0.5
        %v387 = vmul.f32 %v377, 0.5
        %v388 = vmul.f32 %v382, 0.5
        %393 = vrot.lane.b32.xlu0 %v385, 124
        %v394 = vpop.permute.xlu0 %393
        %395 = vrot.lane.b32.xlu0 %v386, 124
        %v396 = vpop.permute.xlu0 %395
        %397 = vrot.lane.b32.xlu0 %v387, 124
        %v398 = vpop.permute.xlu0 %397
        %399 = vrot.lane.b32.xlu0 %v388, 124
        %v400 = vpop.permute.xlu0 %399
        %405 = vrot.lane.b32.xlu0 %v385, 120
        %v406 = vpop.permute.xlu0 %405
        %407 = vrot.lane.b32.xlu0 %v386, 120
        %v408 = vpop.permute.xlu0 %407
        %409 = vrot.lane.b32.xlu0 %v387, 120
        %v410 = vpop.permute.xlu0 %409
        %411 = vrot.lane.b32.xlu0 %v388, 120
        %v412 = vpop.permute.xlu0 %411
        %417 = vrot.lane.b32.xlu0 %v385, 116
        %v418 = vpop.permute.xlu0 %417
        %419 = vrot.lane.b32.xlu0 %v386, 116
        %v420 = vpop.permute.xlu0 %419
        %421 = vrot.lane.b32.xlu0 %v387, 116
        %v422 = vpop.permute.xlu0 %421
        %423 = vrot.lane.b32.xlu0 %v388, 116
        %v424 = vpop.permute.xlu0 %423
        %429 = vrot.lane.b32.xlu0 %v385, 112
        %v430 = vpop.permute.xlu0 %429
        %431 = vrot.lane.b32.xlu0 %v386, 112
        %v432 = vpop.permute.xlu0 %431
        %433 = vrot.lane.b32.xlu0 %v387, 112
        %v434 = vpop.permute.xlu0 %433
        %435 = vrot.lane.b32.xlu0 %v388, 112
        %v436 = vpop.permute.xlu0 %435
        %441 = vrot.lane.b32.xlu0 %v385, 108
        %v442 = vpop.permute.xlu0 %441
        %443 = vrot.lane.b32.xlu0 %v386, 108
        %v444 = vpop.permute.xlu0 %443
        %445 = vrot.lane.b32.xlu0 %v387, 108
        %v446 = vpop.permute.xlu0 %445
        %447 = vrot.lane.b32.xlu0 %v388, 108
        %v448 = vpop.permute.xlu0 %447
        %453 = vrot.lane.b32.xlu0 %v385, 104
        %v454 = vpop.permute.xlu0 %453
        %455 = vrot.lane.b32.xlu0 %v386, 104
        %v456 = vpop.permute.xlu0 %455
        %457 = vrot.lane.b32.xlu0 %v387, 104
        %v458 = vpop.permute.xlu0 %457
        %459 = vrot.lane.b32.xlu0 %v388, 104
        %v460 = vpop.permute.xlu0 %459
        %465 = vrot.lane.b32.xlu0 %v385, 100
        %v466 = vpop.permute.xlu0 %465
        %467 = vrot.lane.b32.xlu0 %v386, 100
        %v468 = vpop.permute.xlu0 %467
        %469 = vrot.lane.b32.xlu0 %v387, 100
        %v470 = vpop.permute.xlu0 %469
        %471 = vrot.lane.b32.xlu0 %v388, 100
        %v472 = vpop.permute.xlu0 %471
        %v477 = vcombine.low %v385, %v406
        %v478 = vcombine.high %v385, %v406
        %v480 = vunpack.c.l.s4 1983009808
        %v481 = vunpack.c.0.s8 %v480
        %v482 = vlaneseq
        %v483 = vshrl.u32 %v482, 7
        %v484 = vsub.s32 %v481, %v483
        %v485 = vrot.slane %v477, %v484
        %v487 = vunpack.c.l.s4 1983009808
        %v488 = vunpack.c.0.s8 %v487
        %v489 = vlaneseq
        %v490 = vshrl.u32 %v489, 7
        %v491 = vsub.s32 %v488, %v490
        %v492 = vrot.slane %v478, %v491
        %v493 = vcombine.low %v394, %v418
        %v494 = vcombine.high %v394, %v418
        %v496 = vunpack.c.l.s4 1983009808
        %v497 = vunpack.c.0.s8 %v496
        %v498 = vlaneseq
        %v499 = vshrl.u32 %v498, 7
        %v500 = vsub.s32 %v497, %v499
        %v501 = vrot.slane %v493, %v500
        %v503 = vunpack.c.l.s4 1983009808
        %v504 = vunpack.c.0.s8 %v503
        %v505 = vlaneseq
        %v506 = vshrl.u32 %v505, 7
        %v507 = vsub.s32 %v504, %v506
        %v508 = vrot.slane %v494, %v507
        %v509 = vcombine.low %v430, %v454
        %v510 = vcombine.high %v430, %v454
        %v512 = vunpack.c.l.s4 1983009808
        %v513 = vunpack.c.0.s8 %v512
        %v514 = vlaneseq
        %v515 = vshrl.u32 %v514, 7
        %v516 = vsub.s32 %v513, %v515
        %v517 = vrot.slane %v509, %v516
        %v519 = vunpack.c.l.s4 1983009808
        %v520 = vunpack.c.0.s8 %v519
        %v521 = vlaneseq
        %v522 = vshrl.u32 %v521, 7
        %v523 = vsub.s32 %v520, %v522
        %v524 = vrot.slane %v510, %v523
        %v525 = vcombine.low %v442, %v466
        %v526 = vcombine.high %v442, %v466
        %v528 = vunpack.c.l.s4 1983009808
        %v529 = vunpack.c.0.s8 %v528
        %v530 = vlaneseq
        %v531 = vshrl.u32 %v530, 7
        %v532 = vsub.s32 %v529, %v531
        %v533 = vrot.slane %v525, %v532
        %v535 = vunpack.c.l.s4 1983009808
        %v536 = vunpack.c.0.s8 %v535
        %v537 = vlaneseq
        %v538 = vshrl.u32 %v537, 7
        %v539 = vsub.s32 %v536, %v538
        %v540 = vrot.slane %v526, %v539
        %v541 = vcombine.low %v485, %v501
        %v542 = vcombine.high %v485, %v501
        %v544 = vunpack.c.l.s4 1934713408
        %v545 = vunpack.c.0.s8 %v544
        %v546 = vlaneseq
        %v547 = vshrl.u32 %v546, 7
        %v548 = vsub.s32 %v545, %v547
        %v549 = vrot.slane %v541, %v548
        %v551 = vunpack.c.l.s4 1934713408
        %v552 = vunpack.c.0.s8 %v551
        %v553 = vlaneseq
        %v554 = vshrl.u32 %v553, 7
        %v555 = vsub.s32 %v552, %v554
        %v556 = vrot.slane %v542, %v555
        %v557 = vcombine.low %v492, %v508
        %v558 = vcombine.high %v492, %v508
        %v560 = vunpack.c.l.s4 1934713408
        %v561 = vunpack.c.0.s8 %v560
        %v562 = vlaneseq
        %v563 = vshrl.u32 %v562, 7
        %v564 = vsub.s32 %v561, %v563
        %v565 = vrot.slane %v557, %v564
        %v567 = vunpack.c.l.s4 1934713408
        %v568 = vunpack.c.0.s8 %v567
        %v569 = vlaneseq
        %v570 = vshrl.u32 %v569, 7
        %v571 = vsub.s32 %v568, %v570
        %v572 = vrot.slane %v558, %v571
        %v573 = vcombine.low %v517, %v533
        %v574 = vcombine.high %v517, %v533
        %v576 = vunpack.c.l.s4 1934713408
        %v577 = vunpack.c.0.s8 %v576
        %v578 = vlaneseq
        %v579 = vshrl.u32 %v578, 7
        %v580 = vsub.s32 %v577, %v579
        %v581 = vrot.slane %v573, %v580
        %v583 = vunpack.c.l.s4 1934713408
        %v584 = vunpack.c.0.s8 %v583
        %v585 = vlaneseq
        %v586 = vshrl.u32 %v585, 7
        %v587 = vsub.s32 %v584, %v586
        %v588 = vrot.slane %v574, %v587
        %v589 = vcombine.low %v524, %v540
        %v590 = vcombine.high %v524, %v540
        %v592 = vunpack.c.l.s4 1934713408
        %v593 = vunpack.c.0.s8 %v592
        %v594 = vlaneseq
        %v595 = vshrl.u32 %v594, 7
        %v596 = vsub.s32 %v593, %v595
        %v597 = vrot.slane %v589, %v596
        %v599 = vunpack.c.l.s4 1934713408
        %v600 = vunpack.c.0.s8 %v599
        %v601 = vlaneseq
        %v602 = vshrl.u32 %v601, 7
        %v603 = vsub.s32 %v600, %v602
        %v604 = vrot.slane %v590, %v603
        %v605 = vcombine.low %v549, %v581
        %v606 = vcombine.high %v549, %v581
        %v607 = vcombine.low %v556, %v588
        %v608 = vcombine.high %v556, %v588
        %v609 = vcombine.low %v565, %v597
        %v610 = vcombine.high %v565, %v597
        %v611 = vcombine.low %v572, %v604
        %v612 = vcombine.high %v572, %v604
        %v613 = vcombine.low %v386, %v408
        %v614 = vcombine.high %v386, %v408
        %v616 = vunpack.c.l.s4 1983009808
        %v617 = vunpack.c.0.s8 %v616
        %v618 = vlaneseq
        %v619 = vshrl.u32 %v618, 7
        %v620 = vsub.s32 %v617, %v619
        %v621 = vrot.slane %v613, %v620
        %v623 = vunpack.c.l.s4 1983009808
        %v624 = vunpack.c.0.s8 %v623
        %v625 = vlaneseq
        %v626 = vshrl.u32 %v625, 7
        %v627 = vsub.s32 %v624, %v626
        %v628 = vrot.slane %v614, %v627
        %v629 = vcombine.low %v396, %v420
        %v630 = vcombine.high %v396, %v420
        %v632 = vunpack.c.l.s4 1983009808
        %v633 = vunpack.c.0.s8 %v632
        %v634 = vlaneseq
        %v635 = vshrl.u32 %v634, 7
        %v636 = vsub.s32 %v633, %v635
        %v637 = vrot.slane %v629, %v636
        %v639 = vunpack.c.l.s4 1983009808
        %v640 = vunpack.c.0.s8 %v639
        %v641 = vlaneseq
        %v642 = vshrl.u32 %v641, 7
        %v643 = vsub.s32 %v640, %v642
        %v644 = vrot.slane %v630, %v643
        %v645 = vcombine.low %v432, %v456
        %v646 = vcombine.high %v432, %v456
        %v648 = vunpack.c.l.s4 1983009808
        %v649 = vunpack.c.0.s8 %v648
        %v650 = vlaneseq
        %v651 = vshrl.u32 %v650, 7
        %v652 = vsub.s32 %v649, %v651
        %v653 = vrot.slane %v645, %v652
        %v655 = vunpack.c.l.s4 1983009808
        %v656 = vunpack.c.0.s8 %v655
        %v657 = vlaneseq
        %v658 = vshrl.u32 %v657, 7
        %v659 = vsub.s32 %v656, %v658
        %v660 = vrot.slane %v646, %v659
        %v661 = vcombine.low %v444, %v468
        %v662 = vcombine.high %v444, %v468
        %v664 = vunpack.c.l.s4 1983009808
        %v665 = vunpack.c.0.s8 %v664
        %v666 = vlaneseq
        %v667 = vshrl.u32 %v666, 7
        %v668 = vsub.s32 %v665, %v667
        %v669 = vrot.slane %v661, %v668
        %v671 = vunpack.c.l.s4 1983009808
        %v672 = vunpack.c.0.s8 %v671
        %v673 = vlaneseq
        %v674 = vshrl.u32 %v673, 7
        %v675 = vsub.s32 %v672, %v674
        %v676 = vrot.slane %v662, %v675
        %v677 = vcombine.low %v621, %v637
        %v678 = vcombine.high %v621, %v637
        %v680 = vunpack.c.l.s4 1934713408
        %v681 = vunpack.c.0.s8 %v680
        %v682 = vlaneseq
        %v683 = vshrl.u32 %v682, 7
        %v684 = vsub.s32 %v681, %v683
        %v685 = vrot.slane %v677, %v684
        %v687 = vunpack.c.l.s4 1934713408
        %v688 = vunpack.c.0.s8 %v687
        %v689 = vlaneseq
        %v690 = vshrl.u32 %v689, 7
        %v691 = vsub.s32 %v688, %v690
        %v692 = vrot.slane %v678, %v691
        %v693 = vcombine.low %v628, %v644
        %v694 = vcombine.high %v628, %v644
        %v696 = vunpack.c.l.s4 1934713408
        %v697 = vunpack.c.0.s8 %v696
        %v698 = vlaneseq
        %v699 = vshrl.u32 %v698, 7
        %v700 = vsub.s32 %v697, %v699
        %v701 = vrot.slane %v693, %v700
        %v703 = vunpack.c.l.s4 1934713408
        %v704 = vunpack.c.0.s8 %v703
        %v705 = vlaneseq
        %v706 = vshrl.u32 %v705, 7
        %v707 = vsub.s32 %v704, %v706
        %v708 = vrot.slane %v694, %v707
        %v709 = vcombine.low %v653, %v669
        %v710 = vcombine.high %v653, %v669
        %v712 = vunpack.c.l.s4 1934713408
        %v713 = vunpack.c.0.s8 %v712
        %v714 = vlaneseq
        %v715 = vshrl.u32 %v714, 7
        %v716 = vsub.s32 %v713, %v715
        %v717 = vrot.slane %v709, %v716
        %v719 = vunpack.c.l.s4 1934713408
        %v720 = vunpack.c.0.s8 %v719
        %v721 = vlaneseq
        %v722 = vshrl.u32 %v721, 7
        %v723 = vsub.s32 %v720, %v722
        %v724 = vrot.slane %v710, %v723
        %v725 = vcombine.low %v660, %v676
        %v726 = vcombine.high %v660, %v676
        %v728 = vunpack.c.l.s4 1934713408
        %v729 = vunpack.c.0.s8 %v728
        %v730 = vlaneseq
        %v731 = vshrl.u32 %v730, 7
        %v732 = vsub.s32 %v729, %v731
        %v733 = vrot.slane %v725, %v732
        %v735 = vunpack.c.l.s4 1934713408
        %v736 = vunpack.c.0.s8 %v735
        %v737 = vlaneseq
        %v738 = vshrl.u32 %v737, 7
        %v739 = vsub.s32 %v736, %v738
        %v740 = vrot.slane %v726, %v739
        %v741 = vcombine.low %v685, %v717
        %v742 = vcombine.high %v685, %v717
        %v743 = vcombine.low %v692, %v724
        %v744 = vcombine.high %v692, %v724
        %v745 = vcombine.low %v701, %v733
        %v746 = vcombine.high %v701, %v733
        %v747 = vcombine.low %v708, %v740
        %v748 = vcombine.high %v708, %v740
        %v749 = vcombine.low %v387, %v410
        %v750 = vcombine.high %v387, %v410
        %v752 = vunpack.c.l.s4 1983009808
        %v753 = vunpack.c.0.s8 %v752
        %v754 = vlaneseq
        %v755 = vshrl.u32 %v754, 7
        %v756 = vsub.s32 %v753, %v755
        %v757 = vrot.slane %v749, %v756
        %v759 = vunpack.c.l.s4 1983009808
        %v760 = vunpack.c.0.s8 %v759
        %v761 = vlaneseq
        %v762 = vshrl.u32 %v761, 7
        %v763 = vsub.s32 %v760, %v762
        %v764 = vrot.slane %v750, %v763
        %v765 = vcombine.low %v398, %v422
        %v766 = vcombine.high %v398, %v422
        %v768 = vunpack.c.l.s4 1983009808
        %v769 = vunpack.c.0.s8 %v768
        %v770 = vlaneseq
        %v771 = vshrl.u32 %v770, 7
        %v772 = vsub.s32 %v769, %v771
        %v773 = vrot.slane %v765, %v772
        %v775 = vunpack.c.l.s4 1983009808
        %v776 = vunpack.c.0.s8 %v775
        %v777 = vlaneseq
        %v778 = vshrl.u32 %v777, 7
        %v779 = vsub.s32 %v776, %v778
        %v780 = vrot.slane %v766, %v779
        %v781 = vcombine.low %v434, %v458
        %v782 = vcombine.high %v434, %v458
        %v784 = vunpack.c.l.s4 1983009808
        %v785 = vunpack.c.0.s8 %v784
        %v786 = vlaneseq
        %v787 = vshrl.u32 %v786, 7
        %v788 = vsub.s32 %v785, %v787
        %v789 = vrot.slane %v781, %v788
        %v791 = vunpack.c.l.s4 1983009808
        %v792 = vunpack.c.0.s8 %v791
        %v793 = vlaneseq
        %v794 = vshrl.u32 %v793, 7
        %v795 = vsub.s32 %v792, %v794
        %v796 = vrot.slane %v782, %v795
        %v797 = vcombine.low %v446, %v470
        %v798 = vcombine.high %v446, %v470
        %v800 = vunpack.c.l.s4 1983009808
        %v801 = vunpack.c.0.s8 %v800
        %v802 = vlaneseq
        %v803 = vshrl.u32 %v802, 7
        %v804 = vsub.s32 %v801, %v803
        %v805 = vrot.slane %v797, %v804
        %v807 = vunpack.c.l.s4 1983009808
        %v808 = vunpack.c.0.s8 %v807
        %v809 = vlaneseq
        %v810 = vshrl.u32 %v809, 7
        %v811 = vsub.s32 %v808, %v810
        %v812 = vrot.slane %v798, %v811
        %v813 = vcombine.low %v757, %v773
        %v814 = vcombine.high %v757, %v773
        %v816 = vunpack.c.l.s4 1934713408
        %v817 = vunpack.c.0.s8 %v816
        %v818 = vlaneseq
        %v819 = vshrl.u32 %v818, 7
        %v820 = vsub.s32 %v817, %v819
        %v821 = vrot.slane %v813, %v820
        %v823 = vunpack.c.l.s4 1934713408
        %v824 = vunpack.c.0.s8 %v823
        %v825 = vlaneseq
        %v826 = vshrl.u32 %v825, 7
        %v827 = vsub.s32 %v824, %v826
        %v828 = vrot.slane %v814, %v827
        %v829 = vcombine.low %v764, %v780
        %v830 = vcombine.high %v764, %v780
        %v832 = vunpack.c.l.s4 1934713408
        %v833 = vunpack.c.0.s8 %v832
        %v834 = vlaneseq
        %v835 = vshrl.u32 %v834, 7
        %v836 = vsub.s32 %v833, %v835
        %v837 = vrot.slane %v829, %v836
        %v839 = vunpack.c.l.s4 1934713408
        %v840 = vunpack.c.0.s8 %v839
        %v841 = vlaneseq
        %v842 = vshrl.u32 %v841, 7
        %v843 = vsub.s32 %v840, %v842
        %v844 = vrot.slane %v830, %v843
        %v845 = vcombine.low %v789, %v805
        %v846 = vcombine.high %v789, %v805
        %v848 = vunpack.c.l.s4 1934713408
        %v849 = vunpack.c.0.s8 %v848
        %v850 = vlaneseq
        %v851 = vshrl.u32 %v850, 7
        %v852 = vsub.s32 %v849, %v851
        %v853 = vrot.slane %v845, %v852
        %v855 = vunpack.c.l.s4 1934713408
        %v856 = vunpack.c.0.s8 %v855
        %v857 = vlaneseq
        %v858 = vshrl.u32 %v857, 7
        %v859 = vsub.s32 %v856, %v858
        %v860 = vrot.slane %v846, %v859
        %v861 = vcombine.low %v796, %v812
        %v862 = vcombine.high %v796, %v812
        %v864 = vunpack.c.l.s4 1934713408
        %v865 = vunpack.c.0.s8 %v864
        %v866 = vlaneseq
        %v867 = vshrl.u32 %v866, 7
        %v868 = vsub.s32 %v865, %v867
        %v869 = vrot.slane %v861, %v868
        %v871 = vunpack.c.l.s4 1934713408
        %v872 = vunpack.c.0.s8 %v871
        %v873 = vlaneseq
        %v874 = vshrl.u32 %v873, 7
        %v875 = vsub.s32 %v872, %v874
        %v876 = vrot.slane %v862, %v875
        %v877 = vcombine.low %v821, %v853
        %v878 = vcombine.high %v821, %v853
        %v879 = vcombine.low %v828, %v860
        %v880 = vcombine.high %v828, %v860
        %v881 = vcombine.low %v837, %v869
        %v882 = vcombine.high %v837, %v869
        %v883 = vcombine.low %v844, %v876
        %v884 = vcombine.high %v844, %v876
        %v885 = vcombine.low %v388, %v412
        %v886 = vcombine.high %v388, %v412
        %v888 = vunpack.c.l.s4 1983009808
        %v889 = vunpack.c.0.s8 %v888
        %v890 = vlaneseq
        %v891 = vshrl.u32 %v890, 7
        %v892 = vsub.s32 %v889, %v891
        %v893 = vrot.slane %v885, %v892
        %v895 = vunpack.c.l.s4 1983009808
        %v896 = vunpack.c.0.s8 %v895
        %v897 = vlaneseq
        %v898 = vshrl.u32 %v897, 7
        %v899 = vsub.s32 %v896, %v898
        %v900 = vrot.slane %v886, %v899
        %v901 = vcombine.low %v400, %v424
        %v902 = vcombine.high %v400, %v424
        %v904 = vunpack.c.l.s4 1983009808
        %v905 = vunpack.c.0.s8 %v904
        %v906 = vlaneseq
        %v907 = vshrl.u32 %v906, 7
        %v908 = vsub.s32 %v905, %v907
        %v909 = vrot.slane %v901, %v908
        %v911 = vunpack.c.l.s4 1983009808
        %v912 = vunpack.c.0.s8 %v911
        %v913 = vlaneseq
        %v914 = vshrl.u32 %v913, 7
        %v915 = vsub.s32 %v912, %v914
        %v916 = vrot.slane %v902, %v915
        %v917 = vcombine.low %v436, %v460
        %v918 = vcombine.high %v436, %v460
        %v920 = vunpack.c.l.s4 1983009808
        %v921 = vunpack.c.0.s8 %v920
        %v922 = vlaneseq
        %v923 = vshrl.u32 %v922, 7
        %v924 = vsub.s32 %v921, %v923
        %v925 = vrot.slane %v917, %v924
        %v927 = vunpack.c.l.s4 1983009808
        %v928 = vunpack.c.0.s8 %v927
        %v929 = vlaneseq
        %v930 = vshrl.u32 %v929, 7
        %v931 = vsub.s32 %v928, %v930
        %v932 = vrot.slane %v918, %v931
        %v933 = vcombine.low %v448, %v472
        %v934 = vcombine.high %v448, %v472
        %v936 = vunpack.c.l.s4 1983009808
        %v937 = vunpack.c.0.s8 %v936
        %v938 = vlaneseq
        %v939 = vshrl.u32 %v938, 7
        %v940 = vsub.s32 %v937, %v939
        %v941 = vrot.slane %v933, %v940
        %v943 = vunpack.c.l.s4 1983009808
        %v944 = vunpack.c.0.s8 %v943
        %v945 = vlaneseq
        %v946 = vshrl.u32 %v945, 7
        %v947 = vsub.s32 %v944, %v946
        %v948 = vrot.slane %v934, %v947
        %v949 = vcombine.low %v893, %v909
        %v950 = vcombine.high %v893, %v909
        %v952 = vunpack.c.l.s4 1934713408
        %v953 = vunpack.c.0.s8 %v952
        %v954 = vlaneseq
        %v955 = vshrl.u32 %v954, 7
        %v956 = vsub.s32 %v953, %v955
        %v957 = vrot.slane %v949, %v956
        %v959 = vunpack.c.l.s4 1934713408
        %v960 = vunpack.c.0.s8 %v959
        %v961 = vlaneseq
        %v962 = vshrl.u32 %v961, 7
        %v963 = vsub.s32 %v960, %v962
        %v964 = vrot.slane %v950, %v963
        %v965 = vcombine.low %v900, %v916
        %v966 = vcombine.high %v900, %v916
        %v968 = vunpack.c.l.s4 1934713408
        %v969 = vunpack.c.0.s8 %v968
        %v970 = vlaneseq
        %v971 = vshrl.u32 %v970, 7
        %v972 = vsub.s32 %v969, %v971
        %v973 = vrot.slane %v965, %v972
        %v975 = vunpack.c.l.s4 1934713408
        %v976 = vunpack.c.0.s8 %v975
        %v977 = vlaneseq
        %v978 = vshrl.u32 %v977, 7
        %v979 = vsub.s32 %v976, %v978
        %v980 = vrot.slane %v966, %v979
        %v981 = vcombine.low %v925, %v941
        %v982 = vcombine.high %v925, %v941
        %v984 = vunpack.c.l.s4 1934713408
        %v985 = vunpack.c.0.s8 %v984
        %v986 = vlaneseq
        %v987 = vshrl.u32 %v986, 7
        %v988 = vsub.s32 %v985, %v987
        %v989 = vrot.slane %v981, %v988
        %v991 = vunpack.c.l.s4 1934713408
        %v992 = vunpack.c.0.s8 %v991
        %v993 = vlaneseq
        %v994 = vshrl.u32 %v993, 7
        %v995 = vsub.s32 %v992, %v994
        %v996 = vrot.slane %v982, %v995
        %v997 = vcombine.low %v932, %v948
        %v998 = vcombine.high %v932, %v948
        %v1000 = vunpack.c.l.s4 1934713408
        %v1001 = vunpack.c.0.s8 %v1000
        %v1002 = vlaneseq
        %v1003 = vshrl.u32 %v1002, 7
        %v1004 = vsub.s32 %v1001, %v1003
        %v1005 = vrot.slane %v997, %v1004
        %v1007 = vunpack.c.l.s4 1934713408
        %v1008 = vunpack.c.0.s8 %v1007
        %v1009 = vlaneseq
        %v1010 = vshrl.u32 %v1009, 7
        %v1011 = vsub.s32 %v1008, %v1010
        %v1012 = vrot.slane %v998, %v1011
        %v1013 = vcombine.low %v957, %v989
        %v1014 = vcombine.high %v957, %v989
        %v1015 = vcombine.low %v964, %v996
        %v1016 = vcombine.high %v964, %v996
        %v1017 = vcombine.low %v973, %v1005
        %v1018 = vcombine.high %v973, %v1005
        %v1019 = vcombine.low %v980, %v1012
        %v1020 = vcombine.high %v980, %v1012
        %v1021 = vcombine.low %v605, %v607
        %v1022 = vcombine.high %v605, %v607
        %v1024 = vunpack.c.l.s4 1983009808
        %v1025 = vunpack.c.0.s8 %v1024
        %v1026 = vlaneseq
        %v1027 = vshrl.u32 %v1026, 7
        %v1028 = vsub.s32 %v1025, %v1027
        %v1029 = vrot.slane %v1021, %v1028
        %v1031 = vunpack.c.l.s4 1983009808
        %v1032 = vunpack.c.0.s8 %v1031
        %v1033 = vlaneseq
        %v1034 = vshrl.u32 %v1033, 7
        %v1035 = vsub.s32 %v1032, %v1034
        %v1036 = vrot.slane %v1022, %v1035
        %v1037 = vcombine.low %v606, %v608
        %v1038 = vcombine.high %v606, %v608
        %v1040 = vunpack.c.l.s4 1983009808
        %v1041 = vunpack.c.0.s8 %v1040
        %v1042 = vlaneseq
        %v1043 = vshrl.u32 %v1042, 7
        %v1044 = vsub.s32 %v1041, %v1043
        %v1045 = vrot.slane %v1037, %v1044
        %v1047 = vunpack.c.l.s4 1983009808
        %v1048 = vunpack.c.0.s8 %v1047
        %v1049 = vlaneseq
        %v1050 = vshrl.u32 %v1049, 7
        %v1051 = vsub.s32 %v1048, %v1050
        %v1052 = vrot.slane %v1038, %v1051
        %v1053 = vcombine.low %v609, %v611
        %v1054 = vcombine.high %v609, %v611
        %v1056 = vunpack.c.l.s4 1983009808
        %v1057 = vunpack.c.0.s8 %v1056
        %v1058 = vlaneseq
        %v1059 = vshrl.u32 %v1058, 7
        %v1060 = vsub.s32 %v1057, %v1059
        %v1061 = vrot.slane %v1053, %v1060
        %v1063 = vunpack.c.l.s4 1983009808
        %v1064 = vunpack.c.0.s8 %v1063
        %v1065 = vlaneseq
        %v1066 = vshrl.u32 %v1065, 7
        %v1067 = vsub.s32 %v1064, %v1066
        %v1068 = vrot.slane %v1054, %v1067
        %v1069 = vcombine.low %v610, %v612
        %v1070 = vcombine.high %v610, %v612
        %v1072 = vunpack.c.l.s4 1983009808
        %v1073 = vunpack.c.0.s8 %v1072
        %v1074 = vlaneseq
        %v1075 = vshrl.u32 %v1074, 7
        %v1076 = vsub.s32 %v1073, %v1075
        %v1077 = vrot.slane %v1069, %v1076
        %v1079 = vunpack.c.l.s4 1983009808
        %v1080 = vunpack.c.0.s8 %v1079
        %v1081 = vlaneseq
        %v1082 = vshrl.u32 %v1081, 7
        %v1083 = vsub.s32 %v1080, %v1082
        %v1084 = vrot.slane %v1070, %v1083
        %v1085 = vcombine.low %v1029, %v1045
        %v1086 = vcombine.high %v1029, %v1045
        %v1088 = vunpack.c.l.s4 1934713408
        %v1089 = vunpack.c.0.s8 %v1088
        %v1090 = vlaneseq
        %v1091 = vshrl.u32 %v1090, 7
        %v1092 = vsub.s32 %v1089, %v1091
        %v1093 = vrot.slane %v1085, %v1092
        %v1095 = vunpack.c.l.s4 1934713408
        %v1096 = vunpack.c.0.s8 %v1095
        %v1097 = vlaneseq
        %v1098 = vshrl.u32 %v1097, 7
        %v1099 = vsub.s32 %v1096, %v1098
        %v1100 = vrot.slane %v1086, %v1099
        %v1101 = vcombine.low %v1036, %v1052
        %v1102 = vcombine.high %v1036, %v1052
        %v1104 = vunpack.c.l.s4 1934713408
        %v1105 = vunpack.c.0.s8 %v1104
        %v1106 = vlaneseq
        %v1107 = vshrl.u32 %v1106, 7
        %v1108 = vsub.s32 %v1105, %v1107
        %v1109 = vrot.slane %v1101, %v1108
        %v1111 = vunpack.c.l.s4 1934713408
        %v1112 = vunpack.c.0.s8 %v1111
        %v1113 = vlaneseq
        %v1114 = vshrl.u32 %v1113, 7
        %v1115 = vsub.s32 %v1112, %v1114
        %v1116 = vrot.slane %v1102, %v1115
        %v1117 = vcombine.low %v1061, %v1077
        %v1118 = vcombine.high %v1061, %v1077
        %v1120 = vunpack.c.l.s4 1934713408
        %v1121 = vunpack.c.0.s8 %v1120
        %v1122 = vlaneseq
        %v1123 = vshrl.u32 %v1122, 7
        %v1124 = vsub.s32 %v1121, %v1123
        %v1125 = vrot.slane %v1117, %v1124
        %v1127 = vunpack.c.l.s4 1934713408
        %v1128 = vunpack.c.0.s8 %v1127
        %v1129 = vlaneseq
        %v1130 = vshrl.u32 %v1129, 7
        %v1131 = vsub.s32 %v1128, %v1130
        %v1132 = vrot.slane %v1118, %v1131
        %v1133 = vcombine.low %v1068, %v1084
        %v1134 = vcombine.high %v1068, %v1084
        %v1136 = vunpack.c.l.s4 1934713408
        %v1137 = vunpack.c.0.s8 %v1136
        %v1138 = vlaneseq
        %v1139 = vshrl.u32 %v1138, 7
        %v1140 = vsub.s32 %v1137, %v1139
        %v1141 = vrot.slane %v1133, %v1140
        %v1143 = vunpack.c.l.s4 1934713408
        %v1144 = vunpack.c.0.s8 %v1143
        %v1145 = vlaneseq
        %v1146 = vshrl.u32 %v1145, 7
        %v1147 = vsub.s32 %v1144, %v1146
        %v1148 = vrot.slane %v1134, %v1147
        %v1149 = vcombine.low %v1093, %v1125
        %v1150 = vcombine.high %v1093, %v1125
        %v1151 = vcombine.low %v1100, %v1132
        %v1152 = vcombine.high %v1100, %v1132
        %v1153 = vcombine.low %v1109, %v1141
        %v1154 = vcombine.high %v1109, %v1141
        %v1155 = vcombine.low %v1116, %v1148
        %v1156 = vcombine.high %v1116, %v1148
        %v1157 = vcombine.low %v741, %v743
        %v1158 = vcombine.high %v741, %v743
        %v1160 = vunpack.c.l.s4 1983009808
        %v1161 = vunpack.c.0.s8 %v1160
        %v1162 = vlaneseq
        %v1163 = vshrl.u32 %v1162, 7
        %v1164 = vsub.s32 %v1161, %v1163
        %v1165 = vrot.slane %v1157, %v1164
        %v1167 = vunpack.c.l.s4 1983009808
        %v1168 = vunpack.c.0.s8 %v1167
        %v1169 = vlaneseq
        %v1170 = vshrl.u32 %v1169, 7
        %v1171 = vsub.s32 %v1168, %v1170
        %v1172 = vrot.slane %v1158, %v1171
        %v1173 = vcombine.low %v742, %v744
        %v1174 = vcombine.high %v742, %v744
        %v1176 = vunpack.c.l.s4 1983009808
        %v1177 = vunpack.c.0.s8 %v1176
        %v1178 = vlaneseq
        %v1179 = vshrl.u32 %v1178, 7
        %v1180 = vsub.s32 %v1177, %v1179
        %v1181 = vrot.slane %v1173, %v1180
        %v1183 = vunpack.c.l.s4 1983009808
        %v1184 = vunpack.c.0.s8 %v1183
        %v1185 = vlaneseq
        %v1186 = vshrl.u32 %v1185, 7
        %v1187 = vsub.s32 %v1184, %v1186
        %v1188 = vrot.slane %v1174, %v1187
        %v1189 = vcombine.low %v745, %v747
        %v1190 = vcombine.high %v745, %v747
        %v1192 = vunpack.c.l.s4 1983009808
        %v1193 = vunpack.c.0.s8 %v1192
        %v1194 = vlaneseq
        %v1195 = vshrl.u32 %v1194, 7
        %v1196 = vsub.s32 %v1193, %v1195
        %v1197 = vrot.slane %v1189, %v1196
        %v1199 = vunpack.c.l.s4 1983009808
        %v1200 = vunpack.c.0.s8 %v1199
        %v1201 = vlaneseq
        %v1202 = vshrl.u32 %v1201, 7
        %v1203 = vsub.s32 %v1200, %v1202
        %v1204 = vrot.slane %v1190, %v1203
        %v1205 = vcombine.low %v746, %v748
        %v1206 = vcombine.high %v746, %v748
        %v1208 = vunpack.c.l.s4 1983009808
        %v1209 = vunpack.c.0.s8 %v1208
        %v1210 = vlaneseq
        %v1211 = vshrl.u32 %v1210, 7
        %v1212 = vsub.s32 %v1209, %v1211
        %v1213 = vrot.slane %v1205, %v1212
        %v1215 = vunpack.c.l.s4 1983009808
        %v1216 = vunpack.c.0.s8 %v1215
        %v1217 = vlaneseq
        %v1218 = vshrl.u32 %v1217, 7
        %v1219 = vsub.s32 %v1216, %v1218
        %v1220 = vrot.slane %v1206, %v1219
        %v1221 = vcombine.low %v1165, %v1181
        %v1222 = vcombine.high %v1165, %v1181
        %v1224 = vunpack.c.l.s4 1934713408
        %v1225 = vunpack.c.0.s8 %v1224
        %v1226 = vlaneseq
        %v1227 = vshrl.u32 %v1226, 7
        %v1228 = vsub.s32 %v1225, %v1227
        %v1229 = vrot.slane %v1221, %v1228
        %v1231 = vunpack.c.l.s4 1934713408
        %v1232 = vunpack.c.0.s8 %v1231
        %v1233 = vlaneseq
        %v1234 = vshrl.u32 %v1233, 7
        %v1235 = vsub.s32 %v1232, %v1234
        %v1236 = vrot.slane %v1222, %v1235
        %v1237 = vcombine.low %v1172, %v1188
        %v1238 = vcombine.high %v1172, %v1188
        %v1240 = vunpack.c.l.s4 1934713408
        %v1241 = vunpack.c.0.s8 %v1240
        %v1242 = vlaneseq
        %v1243 = vshrl.u32 %v1242, 7
        %v1244 = vsub.s32 %v1241, %v1243
        %v1245 = vrot.slane %v1237, %v1244
        %v1247 = vunpack.c.l.s4 1934713408
        %v1248 = vunpack.c.0.s8 %v1247
        %v1249 = vlaneseq
        %v1250 = vshrl.u32 %v1249, 7
        %v1251 = vsub.s32 %v1248, %v1250
        %v1252 = vrot.slane %v1238, %v1251
        %v1253 = vcombine.low %v1197, %v1213
        %v1254 = vcombine.high %v1197, %v1213
        %v1256 = vunpack.c.l.s4 1934713408
        %v1257 = vunpack.c.0.s8 %v1256
        %v1258 = vlaneseq
        %v1259 = vshrl.u32 %v1258, 7
        %v1260 = vsub.s32 %v1257, %v1259
        %v1261 = vrot.slane %v1253, %v1260
        %v1263 = vunpack.c.l.s4 1934713408
        %v1264 = vunpack.c.0.s8 %v1263
        %v1265 = vlaneseq
        %v1266 = vshrl.u32 %v1265, 7
        %v1267 = vsub.s32 %v1264, %v1266
        %v1268 = vrot.slane %v1254, %v1267
        %v1269 = vcombine.low %v1204, %v1220
        %v1270 = vcombine.high %v1204, %v1220
        %v1272 = vunpack.c.l.s4 1934713408
        %v1273 = vunpack.c.0.s8 %v1272
        %v1274 = vlaneseq
        %v1275 = vshrl.u32 %v1274, 7
        %v1276 = vsub.s32 %v1273, %v1275
        %v1277 = vrot.slane %v1269, %v1276
        %v1279 = vunpack.c.l.s4 1934713408
        %v1280 = vunpack.c.0.s8 %v1279
        %v1281 = vlaneseq
        %v1282 = vshrl.u32 %v1281, 7
        %v1283 = vsub.s32 %v1280, %v1282
        %v1284 = vrot.slane %v1270, %v1283
        %v1285 = vcombine.low %v1229, %v1261
        %v1286 = vcombine.high %v1229, %v1261
        %v1287 = vcombine.low %v1236, %v1268
        %v1288 = vcombine.high %v1236, %v1268
        %v1289 = vcombine.low %v1245, %v1277
        %v1290 = vcombine.high %v1245, %v1277
        %v1291 = vcombine.low %v1252, %v1284
        %v1292 = vcombine.high %v1252, %v1284
        %v1293 = vcombine.low %v877, %v879
        %v1294 = vcombine.high %v877, %v879
        %v1296 = vunpack.c.l.s4 1983009808
        %v1297 = vunpack.c.0.s8 %v1296
        %v1298 = vlaneseq
        %v1299 = vshrl.u32 %v1298, 7
        %v1300 = vsub.s32 %v1297, %v1299
        %v1301 = vrot.slane %v1293, %v1300
        %v1303 = vunpack.c.l.s4 1983009808
        %v1304 = vunpack.c.0.s8 %v1303
        %v1305 = vlaneseq
        %v1306 = vshrl.u32 %v1305, 7
        %v1307 = vsub.s32 %v1304, %v1306
        %v1308 = vrot.slane %v1294, %v1307
        %v1309 = vcombine.low %v878, %v880
        %v1310 = vcombine.high %v878, %v880
        %v1312 = vunpack.c.l.s4 1983009808
        %v1313 = vunpack.c.0.s8 %v1312
        %v1314 = vlaneseq
        %v1315 = vshrl.u32 %v1314, 7
        %v1316 = vsub.s32 %v1313, %v1315
        %v1317 = vrot.slane %v1309, %v1316
        %v1319 = vunpack.c.l.s4 1983009808
        %v1320 = vunpack.c.0.s8 %v1319
        %v1321 = vlaneseq
        %v1322 = vshrl.u32 %v1321, 7
        %v1323 = vsub.s32 %v1320, %v1322
        %v1324 = vrot.slane %v1310, %v1323
        %v1325 = vcombine.low %v881, %v883
        %v1326 = vcombine.high %v881, %v883
        %v1328 = vunpack.c.l.s4 1983009808
        %v1329 = vunpack.c.0.s8 %v1328
        %v1330 = vlaneseq
        %v1331 = vshrl.u32 %v1330, 7
        %v1332 = vsub.s32 %v1329, %v1331
        %v1333 = vrot.slane %v1325, %v1332
        %v1335 = vunpack.c.l.s4 1983009808
        %v1336 = vunpack.c.0.s8 %v1335
        %v1337 = vlaneseq
        %v1338 = vshrl.u32 %v1337, 7
        %v1339 = vsub.s32 %v1336, %v1338
        %v1340 = vrot.slane %v1326, %v1339
        %v1341 = vcombine.low %v882, %v884
        %v1342 = vcombine.high %v882, %v884
        %v1344 = vunpack.c.l.s4 1983009808
        %v1345 = vunpack.c.0.s8 %v1344
        %v1346 = vlaneseq
        %v1347 = vshrl.u32 %v1346, 7
        %v1348 = vsub.s32 %v1345, %v1347
        %v1349 = vrot.slane %v1341, %v1348
        %v1351 = vunpack.c.l.s4 1983009808
        %v1352 = vunpack.c.0.s8 %v1351
        %v1353 = vlaneseq
        %v1354 = vshrl.u32 %v1353, 7
        %v1355 = vsub.s32 %v1352, %v1354
        %v1356 = vrot.slane %v1342, %v1355
        %v1357 = vcombine.low %v1301, %v1317
        %v1358 = vcombine.high %v1301, %v1317
        %v1360 = vunpack.c.l.s4 1934713408
        %v1361 = vunpack.c.0.s8 %v1360
        %v1362 = vlaneseq
        %v1363 = vshrl.u32 %v1362, 7
        %v1364 = vsub.s32 %v1361, %v1363
        %v1365 = vrot.slane %v1357, %v1364
        %v1367 = vunpack.c.l.s4 1934713408
        %v1368 = vunpack.c.0.s8 %v1367
        %v1369 = vlaneseq
        %v1370 = vshrl.u32 %v1369, 7
        %v1371 = vsub.s32 %v1368, %v1370
        %v1372 = vrot.slane %v1358, %v1371
        %v1373 = vcombine.low %v1308, %v1324
        %v1374 = vcombine.high %v1308, %v1324
        %v1376 = vunpack.c.l.s4 1934713408
        %v1377 = vunpack.c.0.s8 %v1376
        %v1378 = vlaneseq
        %v1379 = vshrl.u32 %v1378, 7
        %v1380 = vsub.s32 %v1377, %v1379
        %v1381 = vrot.slane %v1373, %v1380
        %v1383 = vunpack.c.l.s4 1934713408
        %v1384 = vunpack.c.0.s8 %v1383
        %v1385 = vlaneseq
        %v1386 = vshrl.u32 %v1385, 7
        %v1387 = vsub.s32 %v1384, %v1386
        %v1388 = vrot.slane %v1374, %v1387
        %v1389 = vcombine.low %v1333, %v1349
        %v1390 = vcombine.high %v1333, %v1349
        %v1392 = vunpack.c.l.s4 1934713408
        %v1393 = vunpack.c.0.s8 %v1392
        %v1394 = vlaneseq
        %v1395 = vshrl.u32 %v1394, 7
        %v1396 = vsub.s32 %v1393, %v1395
        %v1397 = vrot.slane %v1389, %v1396
        %v1399 = vunpack.c.l.s4 1934713408
        %v1400 = vunpack.c.0.s8 %v1399
        %v1401 = vlaneseq
        %v1402 = vshrl.u32 %v1401, 7
        %v1403 = vsub.s32 %v1400, %v1402
        %v1404 = vrot.slane %v1390, %v1403
        %v1405 = vcombine.low %v1340, %v1356
        %v1406 = vcombine.high %v1340, %v1356
        %v1408 = vunpack.c.l.s4 1934713408
        %v1409 = vunpack.c.0.s8 %v1408
        %v1410 = vlaneseq
        %v1411 = vshrl.u32 %v1410, 7
        %v1412 = vsub.s32 %v1409, %v1411
        %v1413 = vrot.slane %v1405, %v1412
        %v1415 = vunpack.c.l.s4 1934713408
        %v1416 = vunpack.c.0.s8 %v1415
        %v1417 = vlaneseq
        %v1418 = vshrl.u32 %v1417, 7
        %v1419 = vsub.s32 %v1416, %v1418
        %v1420 = vrot.slane %v1406, %v1419
        %v1421 = vcombine.low %v1365, %v1397
        %v1422 = vcombine.high %v1365, %v1397
        %v1423 = vcombine.low %v1372, %v1404
        %v1424 = vcombine.high %v1372, %v1404
        %v1425 = vcombine.low %v1381, %v1413
        %v1426 = vcombine.high %v1381, %v1413
        %v1427 = vcombine.low %v1388, %v1420
        %v1428 = vcombine.high %v1388, %v1420
        %v1429 = vcombine.low %v1013, %v1015
        %v1430 = vcombine.high %v1013, %v1015
        %v1432 = vunpack.c.l.s4 1983009808
        %v1433 = vunpack.c.0.s8 %v1432
        %v1434 = vlaneseq
        %v1435 = vshrl.u32 %v1434, 7
        %v1436 = vsub.s32 %v1433, %v1435
        %v1437 = vrot.slane %v1429, %v1436
        %v1439 = vunpack.c.l.s4 1983009808
        %v1440 = vunpack.c.0.s8 %v1439
        %v1441 = vlaneseq
        %v1442 = vshrl.u32 %v1441, 7
        %v1443 = vsub.s32 %v1440, %v1442
        %v1444 = vrot.slane %v1430, %v1443
        %v1445 = vcombine.low %v1014, %v1016
        %v1446 = vcombine.high %v1014, %v1016
        %v1448 = vunpack.c.l.s4 1983009808
        %v1449 = vunpack.c.0.s8 %v1448
        %v1450 = vlaneseq
        %v1451 = vshrl.u32 %v1450, 7
        %v1452 = vsub.s32 %v1449, %v1451
        %v1453 = vrot.slane %v1445, %v1452
        %v1455 = vunpack.c.l.s4 1983009808
        %v1456 = vunpack.c.0.s8 %v1455
        %v1457 = vlaneseq
        %v1458 = vshrl.u32 %v1457, 7
        %v1459 = vsub.s32 %v1456, %v1458
        %v1460 = vrot.slane %v1446, %v1459
        %v1461 = vcombine.low %v1017, %v1019
        %v1462 = vcombine.high %v1017, %v1019
        %v1464 = vunpack.c.l.s4 1983009808
        %v1465 = vunpack.c.0.s8 %v1464
        %v1466 = vlaneseq
        %v1467 = vshrl.u32 %v1466, 7
        %v1468 = vsub.s32 %v1465, %v1467
        %v1469 = vrot.slane %v1461, %v1468
        %v1471 = vunpack.c.l.s4 1983009808
        %v1472 = vunpack.c.0.s8 %v1471
        %v1473 = vlaneseq
        %v1474 = vshrl.u32 %v1473, 7
        %v1475 = vsub.s32 %v1472, %v1474
        %v1476 = vrot.slane %v1462, %v1475
        %v1477 = vcombine.low %v1018, %v1020
        %v1478 = vcombine.high %v1018, %v1020
        %v1480 = vunpack.c.l.s4 1983009808
        %v1481 = vunpack.c.0.s8 %v1480
        %v1482 = vlaneseq
        %v1483 = vshrl.u32 %v1482, 7
        %v1484 = vsub.s32 %v1481, %v1483
        %v1485 = vrot.slane %v1477, %v1484
        %v1487 = vunpack.c.l.s4 1983009808
        %v1488 = vunpack.c.0.s8 %v1487
        %v1489 = vlaneseq
        %v1490 = vshrl.u32 %v1489, 7
        %v1491 = vsub.s32 %v1488, %v1490
        %v1492 = vrot.slane %v1478, %v1491
        %v1493 = vcombine.low %v1437, %v1453
        %v1494 = vcombine.high %v1437, %v1453
        %v1496 = vunpack.c.l.s4 1934713408
        %v1497 = vunpack.c.0.s8 %v1496
        %v1498 = vlaneseq
        %v1499 = vshrl.u32 %v1498, 7
        %v1500 = vsub.s32 %v1497, %v1499
        %v1501 = vrot.slane %v1493, %v1500
        %v1503 = vunpack.c.l.s4 1934713408
        %v1504 = vunpack.c.0.s8 %v1503
        %v1505 = vlaneseq
        %v1506 = vshrl.u32 %v1505, 7
        %v1507 = vsub.s32 %v1504, %v1506
        %v1508 = vrot.slane %v1494, %v1507
        %v1509 = vcombine.low %v1444, %v1460
        %v1510 = vcombine.high %v1444, %v1460
        %v1512 = vunpack.c.l.s4 1934713408
        %v1513 = vunpack.c.0.s8 %v1512
        %v1514 = vlaneseq
        %v1515 = vshrl.u32 %v1514, 7
        %v1516 = vsub.s32 %v1513, %v1515
        %v1517 = vrot.slane %v1509, %v1516
        %v1519 = vunpack.c.l.s4 1934713408
        %v1520 = vunpack.c.0.s8 %v1519
        %v1521 = vlaneseq
        %v1522 = vshrl.u32 %v1521, 7
        %v1523 = vsub.s32 %v1520, %v1522
        %v1524 = vrot.slane %v1510, %v1523
        %v1525 = vcombine.low %v1469, %v1485
        %v1526 = vcombine.high %v1469, %v1485
        %v1528 = vunpack.c.l.s4 1934713408
        %v1529 = vunpack.c.0.s8 %v1528
        %v1530 = vlaneseq
        %v1531 = vshrl.u32 %v1530, 7
        %v1532 = vsub.s32 %v1529, %v1531
        %v1533 = vrot.slane %v1525, %v1532
        %v1535 = vunpack.c.l.s4 1934713408
        %v1536 = vunpack.c.0.s8 %v1535
        %v1537 = vlaneseq
        %v1538 = vshrl.u32 %v1537, 7
        %v1539 = vsub.s32 %v1536, %v1538
        %v1540 = vrot.slane %v1526, %v1539
        %v1541 = vcombine.low %v1476, %v1492
        %v1542 = vcombine.high %v1476, %v1492
        %v1544 = vunpack.c.l.s4 1934713408
        %v1545 = vunpack.c.0.s8 %v1544
        %v1546 = vlaneseq
        %v1547 = vshrl.u32 %v1546, 7
        %v1548 = vsub.s32 %v1545, %v1547
        %v1549 = vrot.slane %v1541, %v1548
        %v1551 = vunpack.c.l.s4 1934713408
        %v1552 = vunpack.c.0.s8 %v1551
        %v1553 = vlaneseq
        %v1554 = vshrl.u32 %v1553, 7
        %v1555 = vsub.s32 %v1552, %v1554
        %v1556 = vrot.slane %v1542, %v1555
        %v1557 = vcombine.low %v1501, %v1533
        %v1558 = vcombine.high %v1501, %v1533
        %v1559 = vcombine.low %v1508, %v1540
        %v1560 = vcombine.high %v1508, %v1540
        %v1561 = vcombine.low %v1517, %v1549
        %v1562 = vcombine.high %v1517, %v1549
        %v1563 = vcombine.low %v1524, %v1556
        %v1564 = vcombine.high %v1524, %v1556
        %1569 = vrot.lane.b32.xlu0 %v367, 124
        %v1570 = vpop.permute.xlu0 %1569
        %1571 = vrot.lane.b32.xlu0 %v372, 124
        %v1572 = vpop.permute.xlu0 %1571
        %1573 = vrot.lane.b32.xlu0 %v377, 124
        %v1574 = vpop.permute.xlu0 %1573
        %1575 = vrot.lane.b32.xlu0 %v382, 124
        %v1576 = vpop.permute.xlu0 %1575
        %1577 = vrot.lane.b32.xlu0 %v367, 120
        %v1578 = vpop.permute.xlu0 %1577
        %1579 = vrot.lane.b32.xlu0 %v372, 120
        %v1580 = vpop.permute.xlu0 %1579
        %1581 = vrot.lane.b32.xlu0 %v377, 120
        %v1582 = vpop.permute.xlu0 %1581
        %1583 = vrot.lane.b32.xlu0 %v382, 120
        %v1584 = vpop.permute.xlu0 %1583
        %1585 = vrot.lane.b32.xlu0 %v367, 116
        %v1586 = vpop.permute.xlu0 %1585
        %1587 = vrot.lane.b32.xlu0 %v372, 116
        %v1588 = vpop.permute.xlu0 %1587
        %1589 = vrot.lane.b32.xlu0 %v377, 116
        %v1590 = vpop.permute.xlu0 %1589
        %1591 = vrot.lane.b32.xlu0 %v382, 116
        %v1592 = vpop.permute.xlu0 %1591
        %1593 = vrot.lane.b32.xlu0 %v367, 112
        %v1594 = vpop.permute.xlu0 %1593
        %1595 = vrot.lane.b32.xlu0 %v372, 112
        %v1596 = vpop.permute.xlu0 %1595
        %1597 = vrot.lane.b32.xlu0 %v377, 112
        %v1598 = vpop.permute.xlu0 %1597
        %1599 = vrot.lane.b32.xlu0 %v382, 112
        %v1600 = vpop.permute.xlu0 %1599
        %1601 = vrot.lane.b32.xlu0 %v367, 108
        %v1602 = vpop.permute.xlu0 %1601
        %1603 = vrot.lane.b32.xlu0 %v372, 108
        %v1604 = vpop.permute.xlu0 %1603
        %1605 = vrot.lane.b32.xlu0 %v377, 108
        %v1606 = vpop.permute.xlu0 %1605
        %1607 = vrot.lane.b32.xlu0 %v382, 108
        %v1608 = vpop.permute.xlu0 %1607
        %1609 = vrot.lane.b32.xlu0 %v367, 104
        %v1610 = vpop.permute.xlu0 %1609
        %1611 = vrot.lane.b32.xlu0 %v372, 104
        %v1612 = vpop.permute.xlu0 %1611
        %1613 = vrot.lane.b32.xlu0 %v377, 104
        %v1614 = vpop.permute.xlu0 %1613
        %1615 = vrot.lane.b32.xlu0 %v382, 104
        %v1616 = vpop.permute.xlu0 %1615
        %1617 = vrot.lane.b32.xlu0 %v367, 100
        %v1618 = vpop.permute.xlu0 %1617
        %1619 = vrot.lane.b32.xlu0 %v372, 100
        %v1620 = vpop.permute.xlu0 %1619
        %1621 = vrot.lane.b32.xlu0 %v377, 100
        %v1622 = vpop.permute.xlu0 %1621
        %1623 = vrot.lane.b32.xlu0 %v382, 100
        %v1624 = vpop.permute.xlu0 %1623
        %1625 = vrot.lane.b32.xlu0 %v367, 96
        %v1626 = vpop.permute.xlu0 %1625
        %1627 = vrot.lane.b32.xlu0 %v372, 96
        %v1628 = vpop.permute.xlu0 %1627
        %1629 = vrot.lane.b32.xlu0 %v377, 96
        %v1630 = vpop.permute.xlu0 %1629
        %1631 = vrot.lane.b32.xlu0 %v382, 96
        %v1632 = vpop.permute.xlu0 %1631
        %1633 = vrot.lane.b32.xlu0 %v1570, 96
        %v1634 = vpop.permute.xlu0 %1633
        %1635 = vrot.lane.b32.xlu0 %v1572, 96
        %v1636 = vpop.permute.xlu0 %1635
        %1637 = vrot.lane.b32.xlu0 %v1574, 96
        %v1638 = vpop.permute.xlu0 %1637
        %1639 = vrot.lane.b32.xlu0 %v1576, 96
        %v1640 = vpop.permute.xlu0 %1639
        %1641 = vrot.lane.b32.xlu0 %v1578, 96
        %v1642 = vpop.permute.xlu0 %1641
        %1643 = vrot.lane.b32.xlu0 %v1580, 96
        %v1644 = vpop.permute.xlu0 %1643
        %1645 = vrot.lane.b32.xlu0 %v1582, 96
        %v1646 = vpop.permute.xlu0 %1645
        %1647 = vrot.lane.b32.xlu0 %v1584, 96
        %v1648 = vpop.permute.xlu0 %1647
        %1649 = vrot.lane.b32.xlu0 %v1586, 96
        %v1650 = vpop.permute.xlu0 %1649
        %1651 = vrot.lane.b32.xlu0 %v1588, 96
        %v1652 = vpop.permute.xlu0 %1651
        %1653 = vrot.lane.b32.xlu0 %v1590, 96
        %v1654 = vpop.permute.xlu0 %1653
        %1655 = vrot.lane.b32.xlu0 %v1592, 96
        %v1656 = vpop.permute.xlu0 %1655
        %1657 = vrot.lane.b32.xlu0 %v1594, 96
        %v1658 = vpop.permute.xlu0 %1657
        %1659 = vrot.lane.b32.xlu0 %v1596, 96
        %v1660 = vpop.permute.xlu0 %1659
        %1661 = vrot.lane.b32.xlu0 %v1598, 96
        %v1662 = vpop.permute.xlu0 %1661
        %1663 = vrot.lane.b32.xlu0 %v1600, 96
        %v1664 = vpop.permute.xlu0 %1663
        %1665 = vrot.lane.b32.xlu0 %v1602, 96
        %v1666 = vpop.permute.xlu0 %1665
        %1667 = vrot.lane.b32.xlu0 %v1604, 96
        %v1668 = vpop.permute.xlu0 %1667
        %1669 = vrot.lane.b32.xlu0 %v1606, 96
        %v1670 = vpop.permute.xlu0 %1669
        %1671 = vrot.lane.b32.xlu0 %v1608, 96
        %v1672 = vpop.permute.xlu0 %1671
        %1673 = vrot.lane.b32.xlu0 %v1610, 96
        %v1674 = vpop.permute.xlu0 %1673
        %1675 = vrot.lane.b32.xlu0 %v1612, 96
        %v1676 = vpop.permute.xlu0 %1675
        %1677 = vrot.lane.b32.xlu0 %v1614, 96
        %v1678 = vpop.permute.xlu0 %1677
        %1679 = vrot.lane.b32.xlu0 %v1616, 96
        %v1680 = vpop.permute.xlu0 %1679
        %1681 = vrot.lane.b32.xlu0 %v1618, 96
        %v1682 = vpop.permute.xlu0 %1681
        %1683 = vrot.lane.b32.xlu0 %v1620, 96
        %v1684 = vpop.permute.xlu0 %1683
        %1685 = vrot.lane.b32.xlu0 %v1622, 96
        %v1686 = vpop.permute.xlu0 %1685
        %1687 = vrot.lane.b32.xlu0 %v1624, 96
        %v1688 = vpop.permute.xlu0 %1687
        %v1721 = vcombine.low %v1626, %v1642
        %v1722 = vcombine.high %v1626, %v1642
        %v1724 = vunpack.c.l.s4 1983009808
        %v1725 = vunpack.c.0.s8 %v1724
        %v1726 = vlaneseq
        %v1727 = vshrl.u32 %v1726, 7
        %v1728 = vsub.s32 %v1725, %v1727
        %v1729 = vrot.slane %v1721, %v1728
        %v1731 = vunpack.c.l.s4 1983009808
        %v1732 = vunpack.c.0.s8 %v1731
        %v1733 = vlaneseq
        %v1734 = vshrl.u32 %v1733, 7
        %v1735 = vsub.s32 %v1732, %v1734
        %v1736 = vrot.slane %v1722, %v1735
        %v1737 = vcombine.low %v1634, %v1650
        %v1738 = vcombine.high %v1634, %v1650
        %v1740 = vunpack.c.l.s4 1983009808
        %v1741 = vunpack.c.0.s8 %v1740
        %v1742 = vlaneseq
        %v1743 = vshrl.u32 %v1742, 7
        %v1744 = vsub.s32 %v1741, %v1743
        %v1745 = vrot.slane %v1737, %v1744
        %v1747 = vunpack.c.l.s4 1983009808
        %v1748 = vunpack.c.0.s8 %v1747
        %v1749 = vlaneseq
        %v1750 = vshrl.u32 %v1749, 7
        %v1751 = vsub.s32 %v1748, %v1750
        %v1752 = vrot.slane %v1738, %v1751
        %v1753 = vcombine.low %v1658, %v1674
        %v1754 = vcombine.high %v1658, %v1674
        %v1756 = vunpack.c.l.s4 1983009808
        %v1757 = vunpack.c.0.s8 %v1756
        %v1758 = vlaneseq
        %v1759 = vshrl.u32 %v1758, 7
        %v1760 = vsub.s32 %v1757, %v1759
        %v1761 = vrot.slane %v1753, %v1760
        %v1763 = vunpack.c.l.s4 1983009808
        %v1764 = vunpack.c.0.s8 %v1763
        %v1765 = vlaneseq
        %v1766 = vshrl.u32 %v1765, 7
        %v1767 = vsub.s32 %v1764, %v1766
        %v1768 = vrot.slane %v1754, %v1767
        %v1769 = vcombine.low %v1666, %v1682
        %v1770 = vcombine.high %v1666, %v1682
        %v1772 = vunpack.c.l.s4 1983009808
        %v1773 = vunpack.c.0.s8 %v1772
        %v1774 = vlaneseq
        %v1775 = vshrl.u32 %v1774, 7
        %v1776 = vsub.s32 %v1773, %v1775
        %v1777 = vrot.slane %v1769, %v1776
        %v1779 = vunpack.c.l.s4 1983009808
        %v1780 = vunpack.c.0.s8 %v1779
        %v1781 = vlaneseq
        %v1782 = vshrl.u32 %v1781, 7
        %v1783 = vsub.s32 %v1780, %v1782
        %v1784 = vrot.slane %v1770, %v1783
        %v1785 = vcombine.low %v1729, %v1745
        %v1786 = vcombine.high %v1729, %v1745
        %v1788 = vunpack.c.l.s4 1934713408
        %v1789 = vunpack.c.0.s8 %v1788
        %v1790 = vlaneseq
        %v1791 = vshrl.u32 %v1790, 7
        %v1792 = vsub.s32 %v1789, %v1791
        %v1793 = vrot.slane %v1785, %v1792
        %v1795 = vunpack.c.l.s4 1934713408
        %v1796 = vunpack.c.0.s8 %v1795
        %v1797 = vlaneseq
        %v1798 = vshrl.u32 %v1797, 7
        %v1799 = vsub.s32 %v1796, %v1798
        %v1800 = vrot.slane %v1786, %v1799
        %v1801 = vcombine.low %v1736, %v1752
        %v1802 = vcombine.high %v1736, %v1752
        %v1804 = vunpack.c.l.s4 1934713408
        %v1805 = vunpack.c.0.s8 %v1804
        %v1806 = vlaneseq
        %v1807 = vshrl.u32 %v1806, 7
        %v1808 = vsub.s32 %v1805, %v1807
        %v1809 = vrot.slane %v1801, %v1808
        %v1811 = vunpack.c.l.s4 1934713408
        %v1812 = vunpack.c.0.s8 %v1811
        %v1813 = vlaneseq
        %v1814 = vshrl.u32 %v1813, 7
        %v1815 = vsub.s32 %v1812, %v1814
        %v1816 = vrot.slane %v1802, %v1815
        %v1817 = vcombine.low %v1761, %v1777
        %v1818 = vcombine.high %v1761, %v1777
        %v1820 = vunpack.c.l.s4 1934713408
        %v1821 = vunpack.c.0.s8 %v1820
        %v1822 = vlaneseq
        %v1823 = vshrl.u32 %v1822, 7
        %v1824 = vsub.s32 %v1821, %v1823
        %v1825 = vrot.slane %v1817, %v1824
        %v1827 = vunpack.c.l.s4 1934713408
        %v1828 = vunpack.c.0.s8 %v1827
        %v1829 = vlaneseq
        %v1830 = vshrl.u32 %v1829, 7
        %v1831 = vsub.s32 %v1828, %v1830
        %v1832 = vrot.slane %v1818, %v1831
        %v1833 = vcombine.low %v1768, %v1784
        %v1834 = vcombine.high %v1768, %v1784
        %v1836 = vunpack.c.l.s4 1934713408
        %v1837 = vunpack.c.0.s8 %v1836
        %v1838 = vlaneseq
        %v1839 = vshrl.u32 %v1838, 7
        %v1840 = vsub.s32 %v1837, %v1839
        %v1841 = vrot.slane %v1833, %v1840
        %v1843 = vunpack.c.l.s4 1934713408
        %v1844 = vunpack.c.0.s8 %v1843
        %v1845 = vlaneseq
        %v1846 = vshrl.u32 %v1845, 7
        %v1847 = vsub.s32 %v1844, %v1846
        %v1848 = vrot.slane %v1834, %v1847
        %v1849 = vcombine.low %v1793, %v1825
        %v1850 = vcombine.high %v1793, %v1825
        %v1851 = vcombine.low %v1800, %v1832
        %v1852 = vcombine.high %v1800, %v1832
        %v1853 = vcombine.low %v1809, %v1841
        %v1854 = vcombine.high %v1809, %v1841
        %v1855 = vcombine.low %v1816, %v1848
        %v1856 = vcombine.high %v1816, %v1848
        %v1857 = vcombine.low %v1628, %v1644
        %v1858 = vcombine.high %v1628, %v1644
        %v1860 = vunpack.c.l.s4 1983009808
        %v1861 = vunpack.c.0.s8 %v1860
        %v1862 = vlaneseq
        %v1863 = vshrl.u32 %v1862, 7
        %v1864 = vsub.s32 %v1861, %v1863
        %v1865 = vrot.slane %v1857, %v1864
        %v1867 = vunpack.c.l.s4 1983009808
        %v1868 = vunpack.c.0.s8 %v1867
        %v1869 = vlaneseq
        %v1870 = vshrl.u32 %v1869, 7
        %v1871 = vsub.s32 %v1868, %v1870
        %v1872 = vrot.slane %v1858, %v1871
        %v1873 = vcombine.low %v1636, %v1652
        %v1874 = vcombine.high %v1636, %v1652
        %v1876 = vunpack.c.l.s4 1983009808
        %v1877 = vunpack.c.0.s8 %v1876
        %v1878 = vlaneseq
        %v1879 = vshrl.u32 %v1878, 7
        %v1880 = vsub.s32 %v1877, %v1879
        %v1881 = vrot.slane %v1873, %v1880
        %v1883 = vunpack.c.l.s4 1983009808
        %v1884 = vunpack.c.0.s8 %v1883
        %v1885 = vlaneseq
        %v1886 = vshrl.u32 %v1885, 7
        %v1887 = vsub.s32 %v1884, %v1886
        %v1888 = vrot.slane %v1874, %v1887
        %v1889 = vcombine.low %v1660, %v1676
        %v1890 = vcombine.high %v1660, %v1676
        %v1892 = vunpack.c.l.s4 1983009808
        %v1893 = vunpack.c.0.s8 %v1892
        %v1894 = vlaneseq
        %v1895 = vshrl.u32 %v1894, 7
        %v1896 = vsub.s32 %v1893, %v1895
        %v1897 = vrot.slane %v1889, %v1896
        %v1899 = vunpack.c.l.s4 1983009808
        %v1900 = vunpack.c.0.s8 %v1899
        %v1901 = vlaneseq
        %v1902 = vshrl.u32 %v1901, 7
        %v1903 = vsub.s32 %v1900, %v1902
        %v1904 = vrot.slane %v1890, %v1903
        %v1905 = vcombine.low %v1668, %v1684
        %v1906 = vcombine.high %v1668, %v1684
        %v1908 = vunpack.c.l.s4 1983009808
        %v1909 = vunpack.c.0.s8 %v1908
        %v1910 = vlaneseq
        %v1911 = vshrl.u32 %v1910, 7
        %v1912 = vsub.s32 %v1909, %v1911
        %v1913 = vrot.slane %v1905, %v1912
        %v1915 = vunpack.c.l.s4 1983009808
        %v1916 = vunpack.c.0.s8 %v1915
        %v1917 = vlaneseq
        %v1918 = vshrl.u32 %v1917, 7
        %v1919 = vsub.s32 %v1916, %v1918
        %v1920 = vrot.slane %v1906, %v1919
        %v1921 = vcombine.low %v1865, %v1881
        %v1922 = vcombine.high %v1865, %v1881
        %v1924 = vunpack.c.l.s4 1934713408
        %v1925 = vunpack.c.0.s8 %v1924
        %v1926 = vlaneseq
        %v1927 = vshrl.u32 %v1926, 7
        %v1928 = vsub.s32 %v1925, %v1927
        %v1929 = vrot.slane %v1921, %v1928
        %v1931 = vunpack.c.l.s4 1934713408
        %v1932 = vunpack.c.0.s8 %v1931
        %v1933 = vlaneseq
        %v1934 = vshrl.u32 %v1933, 7
        %v1935 = vsub.s32 %v1932, %v1934
        %v1936 = vrot.slane %v1922, %v1935
        %v1937 = vcombine.low %v1872, %v1888
        %v1938 = vcombine.high %v1872, %v1888
        %v1940 = vunpack.c.l.s4 1934713408
        %v1941 = vunpack.c.0.s8 %v1940
        %v1942 = vlaneseq
        %v1943 = vshrl.u32 %v1942, 7
        %v1944 = vsub.s32 %v1941, %v1943
        %v1945 = vrot.slane %v1937, %v1944
        %v1947 = vunpack.c.l.s4 1934713408
        %v1948 = vunpack.c.0.s8 %v1947
        %v1949 = vlaneseq
        %v1950 = vshrl.u32 %v1949, 7
        %v1951 = vsub.s32 %v1948, %v1950
        %v1952 = vrot.slane %v1938, %v1951
        %v1953 = vcombine.low %v1897, %v1913
        %v1954 = vcombine.high %v1897, %v1913
        %v1956 = vunpack.c.l.s4 1934713408
        %v1957 = vunpack.c.0.s8 %v1956
        %v1958 = vlaneseq
        %v1959 = vshrl.u32 %v1958, 7
        %v1960 = vsub.s32 %v1957, %v1959
        %v1961 = vrot.slane %v1953, %v1960
        %v1963 = vunpack.c.l.s4 1934713408
        %v1964 = vunpack.c.0.s8 %v1963
        %v1965 = vlaneseq
        %v1966 = vshrl.u32 %v1965, 7
        %v1967 = vsub.s32 %v1964, %v1966
        %v1968 = vrot.slane %v1954, %v1967
        %v1969 = vcombine.low %v1904, %v1920
        %v1970 = vcombine.high %v1904, %v1920
        %v1972 = vunpack.c.l.s4 1934713408
        %v1973 = vunpack.c.0.s8 %v1972
        %v1974 = vlaneseq
        %v1975 = vshrl.u32 %v1974, 7
        %v1976 = vsub.s32 %v1973, %v1975
        %v1977 = vrot.slane %v1969, %v1976
        %v1979 = vunpack.c.l.s4 1934713408
        %v1980 = vunpack.c.0.s8 %v1979
        %v1981 = vlaneseq
        %v1982 = vshrl.u32 %v1981, 7
        %v1983 = vsub.s32 %v1980, %v1982
        %v1984 = vrot.slane %v1970, %v1983
        %v1985 = vcombine.low %v1929, %v1961
        %v1986 = vcombine.high %v1929, %v1961
        %v1987 = vcombine.low %v1936, %v1968
        %v1988 = vcombine.high %v1936, %v1968
        %v1989 = vcombine.low %v1945, %v1977
        %v1990 = vcombine.high %v1945, %v1977
        %v1991 = vcombine.low %v1952, %v1984
        %v1992 = vcombine.high %v1952, %v1984
        %v1993 = vcombine.low %v1630, %v1646
        %v1994 = vcombine.high %v1630, %v1646
        %v1996 = vunpack.c.l.s4 1983009808
        %v1997 = vunpack.c.0.s8 %v1996
        %v1998 = vlaneseq
        %v1999 = vshrl.u32 %v1998, 7
        %v2000 = vsub.s32 %v1997, %v1999
        %v2001 = vrot.slane %v1993, %v2000
        %v2003 = vunpack.c.l.s4 1983009808
        %v2004 = vunpack.c.0.s8 %v2003
        %v2005 = vlaneseq
        %v2006 = vshrl.u32 %v2005, 7
        %v2007 = vsub.s32 %v2004, %v2006
        %v2008 = vrot.slane %v1994, %v2007
        %v2009 = vcombine.low %v1638, %v1654
        %v2010 = vcombine.high %v1638, %v1654
        %v2012 = vunpack.c.l.s4 1983009808
        %v2013 = vunpack.c.0.s8 %v2012
        %v2014 = vlaneseq
        %v2015 = vshrl.u32 %v2014, 7
        %v2016 = vsub.s32 %v2013, %v2015
        %v2017 = vrot.slane %v2009, %v2016
        %v2019 = vunpack.c.l.s4 1983009808
        %v2020 = vunpack.c.0.s8 %v2019
        %v2021 = vlaneseq
        %v2022 = vshrl.u32 %v2021, 7
        %v2023 = vsub.s32 %v2020, %v2022
        %v2024 = vrot.slane %v2010, %v2023
        %v2025 = vcombine.low %v1662, %v1678
        %v2026 = vcombine.high %v1662, %v1678
        %v2028 = vunpack.c.l.s4 1983009808
        %v2029 = vunpack.c.0.s8 %v2028
        %v2030 = vlaneseq
        %v2031 = vshrl.u32 %v2030, 7
        %v2032 = vsub.s32 %v2029, %v2031
        %v2033 = vrot.slane %v2025, %v2032
        %v2035 = vunpack.c.l.s4 1983009808
        %v2036 = vunpack.c.0.s8 %v2035
        %v2037 = vlaneseq
        %v2038 = vshrl.u32 %v2037, 7
        %v2039 = vsub.s32 %v2036, %v2038
        %v2040 = vrot.slane %v2026, %v2039
        %v2041 = vcombine.low %v1670, %v1686
        %v2042 = vcombine.high %v1670, %v1686
        %v2044 = vunpack.c.l.s4 1983009808
        %v2045 = vunpack.c.0.s8 %v2044
        %v2046 = vlaneseq
        %v2047 = vshrl.u32 %v2046, 7
        %v2048 = vsub.s32 %v2045, %v2047
        %v2049 = vrot.slane %v2041, %v2048
        %v2051 = vunpack.c.l.s4 1983009808
        %v2052 = vunpack.c.0.s8 %v2051
        %v2053 = vlaneseq
        %v2054 = vshrl.u32 %v2053, 7
        %v2055 = vsub.s32 %v2052, %v2054
        %v2056 = vrot.slane %v2042, %v2055
        %v2057 = vcombine.low %v2001, %v2017
        %v2058 = vcombine.high %v2001, %v2017
        %v2060 = vunpack.c.l.s4 1934713408
        %v2061 = vunpack.c.0.s8 %v2060
        %v2062 = vlaneseq
        %v2063 = vshrl.u32 %v2062, 7
        %v2064 = vsub.s32 %v2061, %v2063
        %v2065 = vrot.slane %v2057, %v2064
        %v2067 = vunpack.c.l.s4 1934713408
        %v2068 = vunpack.c.0.s8 %v2067
        %v2069 = vlaneseq
        %v2070 = vshrl.u32 %v2069, 7
        %v2071 = vsub.s32 %v2068, %v2070
        %v2072 = vrot.slane %v2058, %v2071
        %v2073 = vcombine.low %v2008, %v2024
        %v2074 = vcombine.high %v2008, %v2024
        %v2076 = vunpack.c.l.s4 1934713408
        %v2077 = vunpack.c.0.s8 %v2076
        %v2078 = vlaneseq
        %v2079 = vshrl.u32 %v2078, 7
        %v2080 = vsub.s32 %v2077, %v2079
        %v2081 = vrot.slane %v2073, %v2080
        %v2083 = vunpack.c.l.s4 1934713408
        %v2084 = vunpack.c.0.s8 %v2083
        %v2085 = vlaneseq
        %v2086 = vshrl.u32 %v2085, 7
        %v2087 = vsub.s32 %v2084, %v2086
        %v2088 = vrot.slane %v2074, %v2087
        %v2089 = vcombine.low %v2033, %v2049
        %v2090 = vcombine.high %v2033, %v2049
        %v2092 = vunpack.c.l.s4 1934713408
        %v2093 = vunpack.c.0.s8 %v2092
        %v2094 = vlaneseq
        %v2095 = vshrl.u32 %v2094, 7
        %v2096 = vsub.s32 %v2093, %v2095
        %v2097 = vrot.slane %v2089, %v2096
        %v2099 = vunpack.c.l.s4 1934713408
        %v2100 = vunpack.c.0.s8 %v2099
        %v2101 = vlaneseq
        %v2102 = vshrl.u32 %v2101, 7
        %v2103 = vsub.s32 %v2100, %v2102
        %v2104 = vrot.slane %v2090, %v2103
        %v2105 = vcombine.low %v2040, %v2056
        %v2106 = vcombine.high %v2040, %v2056
        %v2108 = vunpack.c.l.s4 1934713408
        %v2109 = vunpack.c.0.s8 %v2108
        %v2110 = vlaneseq
        %v2111 = vshrl.u32 %v2110, 7
        %v2112 = vsub.s32 %v2109, %v2111
        %v2113 = vrot.slane %v2105, %v2112
        %v2115 = vunpack.c.l.s4 1934713408
        %v2116 = vunpack.c.0.s8 %v2115
        %v2117 = vlaneseq
        %v2118 = vshrl.u32 %v2117, 7
        %v2119 = vsub.s32 %v2116, %v2118
        %v2120 = vrot.slane %v2106, %v2119
        %v2121 = vcombine.low %v2065, %v2097
        %v2122 = vcombine.high %v2065, %v2097
        %v2123 = vcombine.low %v2072, %v2104
        %v2124 = vcombine.high %v2072, %v2104
        %v2125 = vcombine.low %v2081, %v2113
        %v2126 = vcombine.high %v2081, %v2113
        %v2127 = vcombine.low %v2088, %v2120
        %v2128 = vcombine.high %v2088, %v2120
        %v2129 = vcombine.low %v1632, %v1648
        %v2130 = vcombine.high %v1632, %v1648
        %v2132 = vunpack.c.l.s4 1983009808
        %v2133 = vunpack.c.0.s8 %v2132
        %v2134 = vlaneseq
        %v2135 = vshrl.u32 %v2134, 7
        %v2136 = vsub.s32 %v2133, %v2135
        %v2137 = vrot.slane %v2129, %v2136
        %v2139 = vunpack.c.l.s4 1983009808
        %v2140 = vunpack.c.0.s8 %v2139
        %v2141 = vlaneseq
        %v2142 = vshrl.u32 %v2141, 7
        %v2143 = vsub.s32 %v2140, %v2142
        %v2144 = vrot.slane %v2130, %v2143
        %v2145 = vcombine.low %v1640, %v1656
        %v2146 = vcombine.high %v1640, %v1656
        %v2148 = vunpack.c.l.s4 1983009808
        %v2149 = vunpack.c.0.s8 %v2148
        %v2150 = vlaneseq
        %v2151 = vshrl.u32 %v2150, 7
        %v2152 = vsub.s32 %v2149, %v2151
        %v2153 = vrot.slane %v2145, %v2152
        %v2155 = vunpack.c.l.s4 1983009808
        %v2156 = vunpack.c.0.s8 %v2155
        %v2157 = vlaneseq
        %v2158 = vshrl.u32 %v2157, 7
        %v2159 = vsub.s32 %v2156, %v2158
        %v2160 = vrot.slane %v2146, %v2159
        %v2161 = vcombine.low %v1664, %v1680
        %v2162 = vcombine.high %v1664, %v1680
        %v2164 = vunpack.c.l.s4 1983009808
        %v2165 = vunpack.c.0.s8 %v2164
        %v2166 = vlaneseq
        %v2167 = vshrl.u32 %v2166, 7
        %v2168 = vsub.s32 %v2165, %v2167
        %v2169 = vrot.slane %v2161, %v2168
        %v2171 = vunpack.c.l.s4 1983009808
        %v2172 = vunpack.c.0.s8 %v2171
        %v2173 = vlaneseq
        %v2174 = vshrl.u32 %v2173, 7
        %v2175 = vsub.s32 %v2172, %v2174
        %v2176 = vrot.slane %v2162, %v2175
        %v2177 = vcombine.low %v1672, %v1688
        %v2178 = vcombine.high %v1672, %v1688
        %v2180 = vunpack.c.l.s4 1983009808
        %v2181 = vunpack.c.0.s8 %v2180
        %v2182 = vlaneseq
        %v2183 = vshrl.u32 %v2182, 7
        %v2184 = vsub.s32 %v2181, %v2183
        %v2185 = vrot.slane %v2177, %v2184
        %v2187 = vunpack.c.l.s4 1983009808
        %v2188 = vunpack.c.0.s8 %v2187
        %v2189 = vlaneseq
        %v2190 = vshrl.u32 %v2189, 7
        %v2191 = vsub.s32 %v2188, %v2190
        %v2192 = vrot.slane %v2178, %v2191
        %v2193 = vcombine.low %v2137, %v2153
        %v2194 = vcombine.high %v2137, %v2153
        %v2196 = vunpack.c.l.s4 1934713408
        %v2197 = vunpack.c.0.s8 %v2196
        %v2198 = vlaneseq
        %v2199 = vshrl.u32 %v2198, 7
        %v2200 = vsub.s32 %v2197, %v2199
        %v2201 = vrot.slane %v2193, %v2200
        %v2203 = vunpack.c.l.s4 1934713408
        %v2204 = vunpack.c.0.s8 %v2203
        %v2205 = vlaneseq
        %v2206 = vshrl.u32 %v2205, 7
        %v2207 = vsub.s32 %v2204, %v2206
        %v2208 = vrot.slane %v2194, %v2207
        %v2209 = vcombine.low %v2144, %v2160
        %v2210 = vcombine.high %v2144, %v2160
        %v2212 = vunpack.c.l.s4 1934713408
        %v2213 = vunpack.c.0.s8 %v2212
        %v2214 = vlaneseq
        %v2215 = vshrl.u32 %v2214, 7
        %v2216 = vsub.s32 %v2213, %v2215
        %v2217 = vrot.slane %v2209, %v2216
        %v2219 = vunpack.c.l.s4 1934713408
        %v2220 = vunpack.c.0.s8 %v2219
        %v2221 = vlaneseq
        %v2222 = vshrl.u32 %v2221, 7
        %v2223 = vsub.s32 %v2220, %v2222
        %v2224 = vrot.slane %v2210, %v2223
        %v2225 = vcombine.low %v2169, %v2185
        %v2226 = vcombine.high %v2169, %v2185
        %v2228 = vunpack.c.l.s4 1934713408
        %v2229 = vunpack.c.0.s8 %v2228
        %v2230 = vlaneseq
        %v2231 = vshrl.u32 %v2230, 7
        %v2232 = vsub.s32 %v2229, %v2231
        %v2233 = vrot.slane %v2225, %v2232
        %v2235 = vunpack.c.l.s4 1934713408
        %v2236 = vunpack.c.0.s8 %v2235
        %v2237 = vlaneseq
        %v2238 = vshrl.u32 %v2237, 7
        %v2239 = vsub.s32 %v2236, %v2238
        %v2240 = vrot.slane %v2226, %v2239
        %v2241 = vcombine.low %v2176, %v2192
        %v2242 = vcombine.high %v2176, %v2192
        %v2244 = vunpack.c.l.s4 1934713408
        %v2245 = vunpack.c.0.s8 %v2244
        %v2246 = vlaneseq
        %v2247 = vshrl.u32 %v2246, 7
        %v2248 = vsub.s32 %v2245, %v2247
        %v2249 = vrot.slane %v2241, %v2248
        %v2251 = vunpack.c.l.s4 1934713408
        %v2252 = vunpack.c.0.s8 %v2251
        %v2253 = vlaneseq
        %v2254 = vshrl.u32 %v2253, 7
        %v2255 = vsub.s32 %v2252, %v2254
        %v2256 = vrot.slane %v2242, %v2255
        %v2257 = vcombine.low %v2201, %v2233
        %v2258 = vcombine.high %v2201, %v2233
        %v2259 = vcombine.low %v2208, %v2240
        %v2260 = vcombine.high %v2208, %v2240
        %v2261 = vcombine.low %v2217, %v2249
        %v2262 = vcombine.high %v2217, %v2249
        %v2263 = vcombine.low %v2224, %v2256
        %v2264 = vcombine.high %v2224, %v2256
        %v2265 = vcombine.low %v1849, %v1851
        %v2266 = vcombine.high %v1849, %v1851
        %v2268 = vunpack.c.l.s4 1983009808
        %v2269 = vunpack.c.0.s8 %v2268
        %v2270 = vlaneseq
        %v2271 = vshrl.u32 %v2270, 7
        %v2272 = vsub.s32 %v2269, %v2271
        %v2273 = vrot.slane %v2265, %v2272
        %v2275 = vunpack.c.l.s4 1983009808
        %v2276 = vunpack.c.0.s8 %v2275
        %v2277 = vlaneseq
        %v2278 = vshrl.u32 %v2277, 7
        %v2279 = vsub.s32 %v2276, %v2278
        %v2280 = vrot.slane %v2266, %v2279
        %v2281 = vcombine.low %v1850, %v1852
        %v2282 = vcombine.high %v1850, %v1852
        %v2284 = vunpack.c.l.s4 1983009808
        %v2285 = vunpack.c.0.s8 %v2284
        %v2286 = vlaneseq
        %v2287 = vshrl.u32 %v2286, 7
        %v2288 = vsub.s32 %v2285, %v2287
        %v2289 = vrot.slane %v2281, %v2288
        %v2291 = vunpack.c.l.s4 1983009808
        %v2292 = vunpack.c.0.s8 %v2291
        %v2293 = vlaneseq
        %v2294 = vshrl.u32 %v2293, 7
        %v2295 = vsub.s32 %v2292, %v2294
        %v2296 = vrot.slane %v2282, %v2295
        %v2297 = vcombine.low %v1853, %v1855
        %v2298 = vcombine.high %v1853, %v1855
        %v2300 = vunpack.c.l.s4 1983009808
        %v2301 = vunpack.c.0.s8 %v2300
        %v2302 = vlaneseq
        %v2303 = vshrl.u32 %v2302, 7
        %v2304 = vsub.s32 %v2301, %v2303
        %v2305 = vrot.slane %v2297, %v2304
        %v2307 = vunpack.c.l.s4 1983009808
        %v2308 = vunpack.c.0.s8 %v2307
        %v2309 = vlaneseq
        %v2310 = vshrl.u32 %v2309, 7
        %v2311 = vsub.s32 %v2308, %v2310
        %v2312 = vrot.slane %v2298, %v2311
        %v2313 = vcombine.low %v1854, %v1856
        %v2314 = vcombine.high %v1854, %v1856
        %v2316 = vunpack.c.l.s4 1983009808
        %v2317 = vunpack.c.0.s8 %v2316
        %v2318 = vlaneseq
        %v2319 = vshrl.u32 %v2318, 7
        %v2320 = vsub.s32 %v2317, %v2319
        %v2321 = vrot.slane %v2313, %v2320
        %v2323 = vunpack.c.l.s4 1983009808
        %v2324 = vunpack.c.0.s8 %v2323
        %v2325 = vlaneseq
        %v2326 = vshrl.u32 %v2325, 7
        %v2327 = vsub.s32 %v2324, %v2326
        %v2328 = vrot.slane %v2314, %v2327
        %v2329 = vcombine.low %v2273, %v2289
        %v2330 = vcombine.high %v2273, %v2289
        %v2332 = vunpack.c.l.s4 1934713408
        %v2333 = vunpack.c.0.s8 %v2332
        %v2334 = vlaneseq
        %v2335 = vshrl.u32 %v2334, 7
        %v2336 = vsub.s32 %v2333, %v2335
        %v2337 = vrot.slane %v2329, %v2336
        %v2339 = vunpack.c.l.s4 1934713408
        %v2340 = vunpack.c.0.s8 %v2339
        %v2341 = vlaneseq
        %v2342 = vshrl.u32 %v2341, 7
        %v2343 = vsub.s32 %v2340, %v2342
        %v2344 = vrot.slane %v2330, %v2343
        %v2345 = vcombine.low %v2280, %v2296
        %v2346 = vcombine.high %v2280, %v2296
        %v2348 = vunpack.c.l.s4 1934713408
        %v2349 = vunpack.c.0.s8 %v2348
        %v2350 = vlaneseq
        %v2351 = vshrl.u32 %v2350, 7
        %v2352 = vsub.s32 %v2349, %v2351
        %v2353 = vrot.slane %v2345, %v2352
        %v2355 = vunpack.c.l.s4 1934713408
        %v2356 = vunpack.c.0.s8 %v2355
        %v2357 = vlaneseq
        %v2358 = vshrl.u32 %v2357, 7
        %v2359 = vsub.s32 %v2356, %v2358
        %v2360 = vrot.slane %v2346, %v2359
        %v2361 = vcombine.low %v2305, %v2321
        %v2362 = vcombine.high %v2305, %v2321
        %v2364 = vunpack.c.l.s4 1934713408
        %v2365 = vunpack.c.0.s8 %v2364
        %v2366 = vlaneseq
        %v2367 = vshrl.u32 %v2366, 7
        %v2368 = vsub.s32 %v2365, %v2367
        %v2369 = vrot.slane %v2361, %v2368
        %v2371 = vunpack.c.l.s4 1934713408
        %v2372 = vunpack.c.0.s8 %v2371
        %v2373 = vlaneseq
        %v2374 = vshrl.u32 %v2373, 7
        %v2375 = vsub.s32 %v2372, %v2374
        %v2376 = vrot.slane %v2362, %v2375
        %v2377 = vcombine.low %v2312, %v2328
        %v2378 = vcombine.high %v2312, %v2328
        %v2380 = vunpack.c.l.s4 1934713408
        %v2381 = vunpack.c.0.s8 %v2380
        %v2382 = vlaneseq
        %v2383 = vshrl.u32 %v2382, 7
        %v2384 = vsub.s32 %v2381, %v2383
        %v2385 = vrot.slane %v2377, %v2384
        %v2387 = vunpack.c.l.s4 1934713408
        %v2388 = vunpack.c.0.s8 %v2387
        %v2389 = vlaneseq
        %v2390 = vshrl.u32 %v2389, 7
        %v2391 = vsub.s32 %v2388, %v2390
        %v2392 = vrot.slane %v2378, %v2391
        %v2393 = vcombine.low %v2337, %v2369
        %v2394 = vcombine.high %v2337, %v2369
        %v2395 = vcombine.low %v2344, %v2376
        %v2396 = vcombine.high %v2344, %v2376
        %v2397 = vcombine.low %v2353, %v2385
        %v2398 = vcombine.high %v2353, %v2385
        %v2399 = vcombine.low %v2360, %v2392
        %v2400 = vcombine.high %v2360, %v2392
        %v2401 = vcombine.low %v1985, %v1987
        %v2402 = vcombine.high %v1985, %v1987
        %v2404 = vunpack.c.l.s4 1983009808
        %v2405 = vunpack.c.0.s8 %v2404
        %v2406 = vlaneseq
        %v2407 = vshrl.u32 %v2406, 7
        %v2408 = vsub.s32 %v2405, %v2407
        %v2409 = vrot.slane %v2401, %v2408
        %v2411 = vunpack.c.l.s4 1983009808
        %v2412 = vunpack.c.0.s8 %v2411
        %v2413 = vlaneseq
        %v2414 = vshrl.u32 %v2413, 7
        %v2415 = vsub.s32 %v2412, %v2414
        %v2416 = vrot.slane %v2402, %v2415
        %v2417 = vcombine.low %v1986, %v1988
        %v2418 = vcombine.high %v1986, %v1988
        %v2420 = vunpack.c.l.s4 1983009808
        %v2421 = vunpack.c.0.s8 %v2420
        %v2422 = vlaneseq
        %v2423 = vshrl.u32 %v2422, 7
        %v2424 = vsub.s32 %v2421, %v2423
        %v2425 = vrot.slane %v2417, %v2424
        %v2427 = vunpack.c.l.s4 1983009808
        %v2428 = vunpack.c.0.s8 %v2427
        %v2429 = vlaneseq
        %v2430 = vshrl.u32 %v2429, 7
        %v2431 = vsub.s32 %v2428, %v2430
        %v2432 = vrot.slane %v2418, %v2431
        %v2433 = vcombine.low %v1989, %v1991
        %v2434 = vcombine.high %v1989, %v1991
        %v2436 = vunpack.c.l.s4 1983009808
        %v2437 = vunpack.c.0.s8 %v2436
        %v2438 = vlaneseq
        %v2439 = vshrl.u32 %v2438, 7
        %v2440 = vsub.s32 %v2437, %v2439
        %v2441 = vrot.slane %v2433, %v2440
        %v2443 = vunpack.c.l.s4 1983009808
        %v2444 = vunpack.c.0.s8 %v2443
        %v2445 = vlaneseq
        %v2446 = vshrl.u32 %v2445, 7
        %v2447 = vsub.s32 %v2444, %v2446
        %v2448 = vrot.slane %v2434, %v2447
        %v2449 = vcombine.low %v1990, %v1992
        %v2450 = vcombine.high %v1990, %v1992
        %v2452 = vunpack.c.l.s4 1983009808
        %v2453 = vunpack.c.0.s8 %v2452
        %v2454 = vlaneseq
        %v2455 = vshrl.u32 %v2454, 7
        %v2456 = vsub.s32 %v2453, %v2455
        %v2457 = vrot.slane %v2449, %v2456
        %v2459 = vunpack.c.l.s4 1983009808
        %v2460 = vunpack.c.0.s8 %v2459
        %v2461 = vlaneseq
        %v2462 = vshrl.u32 %v2461, 7
        %v2463 = vsub.s32 %v2460, %v2462
        %v2464 = vrot.slane %v2450, %v2463
        %v2465 = vcombine.low %v2409, %v2425
        %v2466 = vcombine.high %v2409, %v2425
        %v2468 = vunpack.c.l.s4 1934713408
        %v2469 = vunpack.c.0.s8 %v2468
        %v2470 = vlaneseq
        %v2471 = vshrl.u32 %v2470, 7
        %v2472 = vsub.s32 %v2469, %v2471
        %v2473 = vrot.slane %v2465, %v2472
        %v2475 = vunpack.c.l.s4 1934713408
        %v2476 = vunpack.c.0.s8 %v2475
        %v2477 = vlaneseq
        %v2478 = vshrl.u32 %v2477, 7
        %v2479 = vsub.s32 %v2476, %v2478
        %v2480 = vrot.slane %v2466, %v2479
        %v2481 = vcombine.low %v2416, %v2432
        %v2482 = vcombine.high %v2416, %v2432
        %v2484 = vunpack.c.l.s4 1934713408
        %v2485 = vunpack.c.0.s8 %v2484
        %v2486 = vlaneseq
        %v2487 = vshrl.u32 %v2486, 7
        %v2488 = vsub.s32 %v2485, %v2487
        %v2489 = vrot.slane %v2481, %v2488
        %v2491 = vunpack.c.l.s4 1934713408
        %v2492 = vunpack.c.0.s8 %v2491
        %v2493 = vlaneseq
        %v2494 = vshrl.u32 %v2493, 7
        %v2495 = vsub.s32 %v2492, %v2494
        %v2496 = vrot.slane %v2482, %v2495
        %v2497 = vcombine.low %v2441, %v2457
        %v2498 = vcombine.high %v2441, %v2457
        %v2500 = vunpack.c.l.s4 1934713408
        %v2501 = vunpack.c.0.s8 %v2500
        %v2502 = vlaneseq
        %v2503 = vshrl.u32 %v2502, 7
        %v2504 = vsub.s32 %v2501, %v2503
        %v2505 = vrot.slane %v2497, %v2504
        %v2507 = vunpack.c.l.s4 1934713408
        %v2508 = vunpack.c.0.s8 %v2507
        %v2509 = vlaneseq
        %v2510 = vshrl.u32 %v2509, 7
        %v2511 = vsub.s32 %v2508, %v2510
        %v2512 = vrot.slane %v2498, %v2511
        %v2513 = vcombine.low %v2448, %v2464
        %v2514 = vcombine.high %v2448, %v2464
        %v2516 = vunpack.c.l.s4 1934713408
        %v2517 = vunpack.c.0.s8 %v2516
        %v2518 = vlaneseq
        %v2519 = vshrl.u32 %v2518, 7
        %v2520 = vsub.s32 %v2517, %v2519
        %v2521 = vrot.slane %v2513, %v2520
        %v2523 = vunpack.c.l.s4 1934713408
        %v2524 = vunpack.c.0.s8 %v2523
        %v2525 = vlaneseq
        %v2526 = vshrl.u32 %v2525, 7
        %v2527 = vsub.s32 %v2524, %v2526
        %v2528 = vrot.slane %v2514, %v2527
        %v2529 = vcombine.low %v2473, %v2505
        %v2530 = vcombine.high %v2473, %v2505
        %v2531 = vcombine.low %v2480, %v2512
        %v2532 = vcombine.high %v2480, %v2512
        %v2533 = vcombine.low %v2489, %v2521
        %v2534 = vcombine.high %v2489, %v2521
        %v2535 = vcombine.low %v2496, %v2528
        %v2536 = vcombine.high %v2496, %v2528
        %v2537 = vcombine.low %v2121, %v2123
        %v2538 = vcombine.high %v2121, %v2123
        %v2540 = vunpack.c.l.s4 1983009808
        %v2541 = vunpack.c.0.s8 %v2540
        %v2542 = vlaneseq
        %v2543 = vshrl.u32 %v2542, 7
        %v2544 = vsub.s32 %v2541, %v2543
        %v2545 = vrot.slane %v2537, %v2544
        %v2547 = vunpack.c.l.s4 1983009808
        %v2548 = vunpack.c.0.s8 %v2547
        %v2549 = vlaneseq
        %v2550 = vshrl.u32 %v2549, 7
        %v2551 = vsub.s32 %v2548, %v2550
        %v2552 = vrot.slane %v2538, %v2551
        %v2553 = vcombine.low %v2122, %v2124
        %v2554 = vcombine.high %v2122, %v2124
        %v2556 = vunpack.c.l.s4 1983009808
        %v2557 = vunpack.c.0.s8 %v2556
        %v2558 = vlaneseq
        %v2559 = vshrl.u32 %v2558, 7
        %v2560 = vsub.s32 %v2557, %v2559
        %v2561 = vrot.slane %v2553, %v2560
        %v2563 = vunpack.c.l.s4 1983009808
        %v2564 = vunpack.c.0.s8 %v2563
        %v2565 = vlaneseq
        %v2566 = vshrl.u32 %v2565, 7
        %v2567 = vsub.s32 %v2564, %v2566
        %v2568 = vrot.slane %v2554, %v2567
        %v2569 = vcombine.low %v2125, %v2127
        %v2570 = vcombine.high %v2125, %v2127
        %v2572 = vunpack.c.l.s4 1983009808
        %v2573 = vunpack.c.0.s8 %v2572
        %v2574 = vlaneseq
        %v2575 = vshrl.u32 %v2574, 7
        %v2576 = vsub.s32 %v2573, %v2575
        %v2577 = vrot.slane %v2569, %v2576
        %v2579 = vunpack.c.l.s4 1983009808
        %v2580 = vunpack.c.0.s8 %v2579
        %v2581 = vlaneseq
        %v2582 = vshrl.u32 %v2581, 7
        %v2583 = vsub.s32 %v2580, %v2582
        %v2584 = vrot.slane %v2570, %v2583
        %v2585 = vcombine.low %v2126, %v2128
        %v2586 = vcombine.high %v2126, %v2128
        %v2588 = vunpack.c.l.s4 1983009808
        %v2589 = vunpack.c.0.s8 %v2588
        %v2590 = vlaneseq
        %v2591 = vshrl.u32 %v2590, 7
        %v2592 = vsub.s32 %v2589, %v2591
        %v2593 = vrot.slane %v2585, %v2592
        %v2595 = vunpack.c.l.s4 1983009808
        %v2596 = vunpack.c.0.s8 %v2595
        %v2597 = vlaneseq
        %v2598 = vshrl.u32 %v2597, 7
        %v2599 = vsub.s32 %v2596, %v2598
        %v2600 = vrot.slane %v2586, %v2599
        %v2601 = vcombine.low %v2545, %v2561
        %v2602 = vcombine.high %v2545, %v2561
        %v2604 = vunpack.c.l.s4 1934713408
        %v2605 = vunpack.c.0.s8 %v2604
        %v2606 = vlaneseq
        %v2607 = vshrl.u32 %v2606, 7
        %v2608 = vsub.s32 %v2605, %v2607
        %v2609 = vrot.slane %v2601, %v2608
        %v2611 = vunpack.c.l.s4 1934713408
        %v2612 = vunpack.c.0.s8 %v2611
        %v2613 = vlaneseq
        %v2614 = vshrl.u32 %v2613, 7
        %v2615 = vsub.s32 %v2612, %v2614
        %v2616 = vrot.slane %v2602, %v2615
        %v2617 = vcombine.low %v2552, %v2568
        %v2618 = vcombine.high %v2552, %v2568
        %v2620 = vunpack.c.l.s4 1934713408
        %v2621 = vunpack.c.0.s8 %v2620
        %v2622 = vlaneseq
        %v2623 = vshrl.u32 %v2622, 7
        %v2624 = vsub.s32 %v2621, %v2623
        %v2625 = vrot.slane %v2617, %v2624
        %v2627 = vunpack.c.l.s4 1934713408
        %v2628 = vunpack.c.0.s8 %v2627
        %v2629 = vlaneseq
        %v2630 = vshrl.u32 %v2629, 7
        %v2631 = vsub.s32 %v2628, %v2630
        %v2632 = vrot.slane %v2618, %v2631
        %v2633 = vcombine.low %v2577, %v2593
        %v2634 = vcombine.high %v2577, %v2593
        %v2636 = vunpack.c.l.s4 1934713408
        %v2637 = vunpack.c.0.s8 %v2636
        %v2638 = vlaneseq
        %v2639 = vshrl.u32 %v2638, 7
        %v2640 = vsub.s32 %v2637, %v2639
        %v2641 = vrot.slane %v2633, %v2640
        %v2643 = vunpack.c.l.s4 1934713408
        %v2644 = vunpack.c.0.s8 %v2643
        %v2645 = vlaneseq
        %v2646 = vshrl.u32 %v2645, 7
        %v2647 = vsub.s32 %v2644, %v2646
        %v2648 = vrot.slane %v2634, %v2647
        %v2649 = vcombine.low %v2584, %v2600
        %v2650 = vcombine.high %v2584, %v2600
        %v2652 = vunpack.c.l.s4 1934713408
        %v2653 = vunpack.c.0.s8 %v2652
        %v2654 = vlaneseq
        %v2655 = vshrl.u32 %v2654, 7
        %v2656 = vsub.s32 %v2653, %v2655
        %v2657 = vrot.slane %v2649, %v2656
        %v2659 = vunpack.c.l.s4 1934713408
        %v2660 = vunpack.c.0.s8 %v2659
        %v2661 = vlaneseq
        %v2662 = vshrl.u32 %v2661, 7
        %v2663 = vsub.s32 %v2660, %v2662
        %v2664 = vrot.slane %v2650, %v2663
        %v2665 = vcombine.low %v2609, %v2641
        %v2666 = vcombine.high %v2609, %v2641
        %v2667 = vcombine.low %v2616, %v2648
        %v2668 = vcombine.high %v2616, %v2648
        %v2669 = vcombine.low %v2625, %v2657
        %v2670 = vcombine.high %v2625, %v2657
        %v2671 = vcombine.low %v2632, %v2664
        %v2672 = vcombine.high %v2632, %v2664
        %v2673 = vcombine.low %v2257, %v2259
        %v2674 = vcombine.high %v2257, %v2259
        %v2676 = vunpack.c.l.s4 1983009808
        %v2677 = vunpack.c.0.s8 %v2676
        %v2678 = vlaneseq
        %v2679 = vshrl.u32 %v2678, 7
        %v2680 = vsub.s32 %v2677, %v2679
        %v2681 = vrot.slane %v2673, %v2680
        %v2683 = vunpack.c.l.s4 1983009808
        %v2684 = vunpack.c.0.s8 %v2683
        %v2685 = vlaneseq
        %v2686 = vshrl.u32 %v2685, 7
        %v2687 = vsub.s32 %v2684, %v2686
        %v2688 = vrot.slane %v2674, %v2687
        %v2689 = vcombine.low %v2258, %v2260
        %v2690 = vcombine.high %v2258, %v2260
        %v2692 = vunpack.c.l.s4 1983009808
        %v2693 = vunpack.c.0.s8 %v2692
        %v2694 = vlaneseq
        %v2695 = vshrl.u32 %v2694, 7
        %v2696 = vsub.s32 %v2693, %v2695
        %v2697 = vrot.slane %v2689, %v2696
        %v2699 = vunpack.c.l.s4 1983009808
        %v2700 = vunpack.c.0.s8 %v2699
        %v2701 = vlaneseq
        %v2702 = vshrl.u32 %v2701, 7
        %v2703 = vsub.s32 %v2700, %v2702
        %v2704 = vrot.slane %v2690, %v2703
        %v2705 = vcombine.low %v2261, %v2263
        %v2706 = vcombine.high %v2261, %v2263
        %v2708 = vunpack.c.l.s4 1983009808
        %v2709 = vunpack.c.0.s8 %v2708
        %v2710 = vlaneseq
        %v2711 = vshrl.u32 %v2710, 7
        %v2712 = vsub.s32 %v2709, %v2711
        %v2713 = vrot.slane %v2705, %v2712
        %v2715 = vunpack.c.l.s4 1983009808
        %v2716 = vunpack.c.0.s8 %v2715
        %v2717 = vlaneseq
        %v2718 = vshrl.u32 %v2717, 7
        %v2719 = vsub.s32 %v2716, %v2718
        %v2720 = vrot.slane %v2706, %v2719
        %v2721 = vcombine.low %v2262, %v2264
        %v2722 = vcombine.high %v2262, %v2264
        %v2724 = vunpack.c.l.s4 1983009808
        %v2725 = vunpack.c.0.s8 %v2724
        %v2726 = vlaneseq
        %v2727 = vshrl.u32 %v2726, 7
        %v2728 = vsub.s32 %v2725, %v2727
        %v2729 = vrot.slane %v2721, %v2728
        %v2731 = vunpack.c.l.s4 1983009808
        %v2732 = vunpack.c.0.s8 %v2731
        %v2733 = vlaneseq
        %v2734 = vshrl.u32 %v2733, 7
        %v2735 = vsub.s32 %v2732, %v2734
        %v2736 = vrot.slane %v2722, %v2735
        %v2737 = vcombine.low %v2681, %v2697
        %v2738 = vcombine.high %v2681, %v2697
        %v2740 = vunpack.c.l.s4 1934713408
        %v2741 = vunpack.c.0.s8 %v2740
        %v2742 = vlaneseq
        %v2743 = vshrl.u32 %v2742, 7
        %v2744 = vsub.s32 %v2741, %v2743
        %v2745 = vrot.slane %v2737, %v2744
        %v2747 = vunpack.c.l.s4 1934713408
        %v2748 = vunpack.c.0.s8 %v2747
        %v2749 = vlaneseq
        %v2750 = vshrl.u32 %v2749, 7
        %v2751 = vsub.s32 %v2748, %v2750
        %v2752 = vrot.slane %v2738, %v2751
        %v2753 = vcombine.low %v2688, %v2704
        %v2754 = vcombine.high %v2688, %v2704
        %v2756 = vunpack.c.l.s4 1934713408
        %v2757 = vunpack.c.0.s8 %v2756
        %v2758 = vlaneseq
        %v2759 = vshrl.u32 %v2758, 7
        %v2760 = vsub.s32 %v2757, %v2759
        %v2761 = vrot.slane %v2753, %v2760
        %v2763 = vunpack.c.l.s4 1934713408
        %v2764 = vunpack.c.0.s8 %v2763
        %v2765 = vlaneseq
        %v2766 = vshrl.u32 %v2765, 7
        %v2767 = vsub.s32 %v2764, %v2766
        %v2768 = vrot.slane %v2754, %v2767
        %v2769 = vcombine.low %v2713, %v2729
        %v2770 = vcombine.high %v2713, %v2729
        %v2772 = vunpack.c.l.s4 1934713408
        %v2773 = vunpack.c.0.s8 %v2772
        %v2774 = vlaneseq
        %v2775 = vshrl.u32 %v2774, 7
        %v2776 = vsub.s32 %v2773, %v2775
        %v2777 = vrot.slane %v2769, %v2776
        %v2779 = vunpack.c.l.s4 1934713408
        %v2780 = vunpack.c.0.s8 %v2779
        %v2781 = vlaneseq
        %v2782 = vshrl.u32 %v2781, 7
        %v2783 = vsub.s32 %v2780, %v2782
        %v2784 = vrot.slane %v2770, %v2783
        %v2785 = vcombine.low %v2720, %v2736
        %v2786 = vcombine.high %v2720, %v2736
        %v2788 = vunpack.c.l.s4 1934713408
        %v2789 = vunpack.c.0.s8 %v2788
        %v2790 = vlaneseq
        %v2791 = vshrl.u32 %v2790, 7
        %v2792 = vsub.s32 %v2789, %v2791
        %v2793 = vrot.slane %v2785, %v2792
        %v2795 = vunpack.c.l.s4 1934713408
        %v2796 = vunpack.c.0.s8 %v2795
        %v2797 = vlaneseq
        %v2798 = vshrl.u32 %v2797, 7
        %v2799 = vsub.s32 %v2796, %v2798
        %v2800 = vrot.slane %v2786, %v2799
        %v2801 = vcombine.low %v2745, %v2777
        %v2802 = vcombine.high %v2745, %v2777
        %v2803 = vcombine.low %v2752, %v2784
        %v2804 = vcombine.high %v2752, %v2784
        %v2805 = vcombine.low %v2761, %v2793
        %v2806 = vcombine.high %v2761, %v2793
        %v2807 = vcombine.low %v2768, %v2800
        %v2808 = vcombine.high %v2768, %v2800
        %2809 = vrot.lane.b32.xlu0 %v367, 64
        %v2810 = vpop.permute.xlu0 %2809
        %2811 = vrot.lane.b32.xlu0 %v372, 64
        %v2812 = vpop.permute.xlu0 %2811
        %2813 = vrot.lane.b32.xlu0 %v377, 64
        %v2814 = vpop.permute.xlu0 %2813
        %2815 = vrot.lane.b32.xlu0 %v382, 64
        %v2816 = vpop.permute.xlu0 %2815
        %2817 = vrot.lane.b32.xlu0 %v1570, 64
        %v2818 = vpop.permute.xlu0 %2817
        %2819 = vrot.lane.b32.xlu0 %v1572, 64
        %v2820 = vpop.permute.xlu0 %2819
        %2821 = vrot.lane.b32.xlu0 %v1574, 64
        %v2822 = vpop.permute.xlu0 %2821
        %2823 = vrot.lane.b32.xlu0 %v1576, 64
        %v2824 = vpop.permute.xlu0 %2823
        %2825 = vrot.lane.b32.xlu0 %v1578, 64
        %v2826 = vpop.permute.xlu0 %2825
        %2827 = vrot.lane.b32.xlu0 %v1580, 64
        %v2828 = vpop.permute.xlu0 %2827
        %2829 = vrot.lane.b32.xlu0 %v1582, 64
        %v2830 = vpop.permute.xlu0 %2829
        %2831 = vrot.lane.b32.xlu0 %v1584, 64
        %v2832 = vpop.permute.xlu0 %2831
        %2833 = vrot.lane.b32.xlu0 %v1586, 64
        %v2834 = vpop.permute.xlu0 %2833
        %2835 = vrot.lane.b32.xlu0 %v1588, 64
        %v2836 = vpop.permute.xlu0 %2835
        %2837 = vrot.lane.b32.xlu0 %v1590, 64
        %v2838 = vpop.permute.xlu0 %2837
        %2839 = vrot.lane.b32.xlu0 %v1592, 64
        %v2840 = vpop.permute.xlu0 %2839
        %2841 = vrot.lane.b32.xlu0 %v1594, 64
        %v2842 = vpop.permute.xlu0 %2841
        %2843 = vrot.lane.b32.xlu0 %v1596, 64
        %v2844 = vpop.permute.xlu0 %2843
        %2845 = vrot.lane.b32.xlu0 %v1598, 64
        %v2846 = vpop.permute.xlu0 %2845
        %2847 = vrot.lane.b32.xlu0 %v1600, 64
        %v2848 = vpop.permute.xlu0 %2847
        %2849 = vrot.lane.b32.xlu0 %v1602, 64
        %v2850 = vpop.permute.xlu0 %2849
        %2851 = vrot.lane.b32.xlu0 %v1604, 64
        %v2852 = vpop.permute.xlu0 %2851
        %2853 = vrot.lane.b32.xlu0 %v1606, 64
        %v2854 = vpop.permute.xlu0 %2853
        %2855 = vrot.lane.b32.xlu0 %v1608, 64
        %v2856 = vpop.permute.xlu0 %2855
        %2857 = vrot.lane.b32.xlu0 %v1610, 64
        %v2858 = vpop.permute.xlu0 %2857
        %2859 = vrot.lane.b32.xlu0 %v1612, 64
        %v2860 = vpop.permute.xlu0 %2859
        %2861 = vrot.lane.b32.xlu0 %v1614, 64
        %v2862 = vpop.permute.xlu0 %2861
        %2863 = vrot.lane.b32.xlu0 %v1616, 64
        %v2864 = vpop.permute.xlu0 %2863
        %2865 = vrot.lane.b32.xlu0 %v1618, 64
        %v2866 = vpop.permute.xlu0 %2865
        %2867 = vrot.lane.b32.xlu0 %v1620, 64
        %v2868 = vpop.permute.xlu0 %2867
        %2869 = vrot.lane.b32.xlu0 %v1622, 64
        %v2870 = vpop.permute.xlu0 %2869
        %2871 = vrot.lane.b32.xlu0 %v1624, 64
        %v2872 = vpop.permute.xlu0 %2871
        %v2905 = vcombine.low %v2810, %v2826
        %v2906 = vcombine.high %v2810, %v2826
        %v2908 = vunpack.c.l.s4 1983009808
        %v2909 = vunpack.c.0.s8 %v2908
        %v2910 = vlaneseq
        %v2911 = vshrl.u32 %v2910, 7
        %v2912 = vsub.s32 %v2909, %v2911
        %v2913 = vrot.slane %v2905, %v2912
        %v2915 = vunpack.c.l.s4 1983009808
        %v2916 = vunpack.c.0.s8 %v2915
        %v2917 = vlaneseq
        %v2918 = vshrl.u32 %v2917, 7
        %v2919 = vsub.s32 %v2916, %v2918
        %v2920 = vrot.slane %v2906, %v2919
        %v2921 = vcombine.low %v2818, %v2834
        %v2922 = vcombine.high %v2818, %v2834
        %v2924 = vunpack.c.l.s4 1983009808
        %v2925 = vunpack.c.0.s8 %v2924
        %v2926 = vlaneseq
        %v2927 = vshrl.u32 %v2926, 7
        %v2928 = vsub.s32 %v2925, %v2927
        %v2929 = vrot.slane %v2921, %v2928
        %v2931 = vunpack.c.l.s4 1983009808
        %v2932 = vunpack.c.0.s8 %v2931
        %v2933 = vlaneseq
        %v2934 = vshrl.u32 %v2933, 7
        %v2935 = vsub.s32 %v2932, %v2934
        %v2936 = vrot.slane %v2922, %v2935
        %v2937 = vcombine.low %v2842, %v2858
        %v2938 = vcombine.high %v2842, %v2858
        %v2940 = vunpack.c.l.s4 1983009808
        %v2941 = vunpack.c.0.s8 %v2940
        %v2942 = vlaneseq
        %v2943 = vshrl.u32 %v2942, 7
        %v2944 = vsub.s32 %v2941, %v2943
        %v2945 = vrot.slane %v2937, %v2944
        %v2947 = vunpack.c.l.s4 1983009808
        %v2948 = vunpack.c.0.s8 %v2947
        %v2949 = vlaneseq
        %v2950 = vshrl.u32 %v2949, 7
        %v2951 = vsub.s32 %v2948, %v2950
        %v2952 = vrot.slane %v2938, %v2951
        %v2953 = vcombine.low %v2850, %v2866
        %v2954 = vcombine.high %v2850, %v2866
        %v2956 = vunpack.c.l.s4 1983009808
        %v2957 = vunpack.c.0.s8 %v2956
        %v2958 = vlaneseq
        %v2959 = vshrl.u32 %v2958, 7
        %v2960 = vsub.s32 %v2957, %v2959
        %v2961 = vrot.slane %v2953, %v2960
        %v2963 = vunpack.c.l.s4 1983009808
        %v2964 = vunpack.c.0.s8 %v2963
        %v2965 = vlaneseq
        %v2966 = vshrl.u32 %v2965, 7
        %v2967 = vsub.s32 %v2964, %v2966
        %v2968 = vrot.slane %v2954, %v2967
        %v2969 = vcombine.low %v2913, %v2929
        %v2970 = vcombine.high %v2913, %v2929
        %v2972 = vunpack.c.l.s4 1934713408
        %v2973 = vunpack.c.0.s8 %v2972
        %v2974 = vlaneseq
        %v2975 = vshrl.u32 %v2974, 7
        %v2976 = vsub.s32 %v2973, %v2975
        %v2977 = vrot.slane %v2969, %v2976
        %v2979 = vunpack.c.l.s4 1934713408
        %v2980 = vunpack.c.0.s8 %v2979
        %v2981 = vlaneseq
        %v2982 = vshrl.u32 %v2981, 7
        %v2983 = vsub.s32 %v2980, %v2982
        %v2984 = vrot.slane %v2970, %v2983
        %v2985 = vcombine.low %v2920, %v2936
        %v2986 = vcombine.high %v2920, %v2936
        %v2988 = vunpack.c.l.s4 1934713408
        %v2989 = vunpack.c.0.s8 %v2988
        %v2990 = vlaneseq
        %v2991 = vshrl.u32 %v2990, 7
        %v2992 = vsub.s32 %v2989, %v2991
        %v2993 = vrot.slane %v2985, %v2992
        %v2995 = vunpack.c.l.s4 1934713408
        %v2996 = vunpack.c.0.s8 %v2995
        %v2997 = vlaneseq
        %v2998 = vshrl.u32 %v2997, 7
        %v2999 = vsub.s32 %v2996, %v2998
        %v3000 = vrot.slane %v2986, %v2999
        %v3001 = vcombine.low %v2945, %v2961
        %v3002 = vcombine.high %v2945, %v2961
        %v3004 = vunpack.c.l.s4 1934713408
        %v3005 = vunpack.c.0.s8 %v3004
        %v3006 = vlaneseq
        %v3007 = vshrl.u32 %v3006, 7
        %v3008 = vsub.s32 %v3005, %v3007
        %v3009 = vrot.slane %v3001, %v3008
        %v3011 = vunpack.c.l.s4 1934713408
        %v3012 = vunpack.c.0.s8 %v3011
        %v3013 = vlaneseq
        %v3014 = vshrl.u32 %v3013, 7
        %v3015 = vsub.s32 %v3012, %v3014
        %v3016 = vrot.slane %v3002, %v3015
        %v3017 = vcombine.low %v2952, %v2968
        %v3018 = vcombine.high %v2952, %v2968
        %v3020 = vunpack.c.l.s4 1934713408
        %v3021 = vunpack.c.0.s8 %v3020
        %v3022 = vlaneseq
        %v3023 = vshrl.u32 %v3022, 7
        %v3024 = vsub.s32 %v3021, %v3023
        %v3025 = vrot.slane %v3017, %v3024
        %v3027 = vunpack.c.l.s4 1934713408
        %v3028 = vunpack.c.0.s8 %v3027
        %v3029 = vlaneseq
        %v3030 = vshrl.u32 %v3029, 7
        %v3031 = vsub.s32 %v3028, %v3030
        %v3032 = vrot.slane %v3018, %v3031
        %v3033 = vcombine.low %v2977, %v3009
        %v3034 = vcombine.high %v2977, %v3009
        %v3035 = vcombine.low %v2984, %v3016
        %v3036 = vcombine.high %v2984, %v3016
        %v3037 = vcombine.low %v2993, %v3025
        %v3038 = vcombine.high %v2993, %v3025
        %v3039 = vcombine.low %v3000, %v3032
        %v3040 = vcombine.high %v3000, %v3032
        %v3041 = vcombine.low %v2812, %v2828
        %v3042 = vcombine.high %v2812, %v2828
        %v3044 = vunpack.c.l.s4 1983009808
        %v3045 = vunpack.c.0.s8 %v3044
        %v3046 = vlaneseq
        %v3047 = vshrl.u32 %v3046, 7
        %v3048 = vsub.s32 %v3045, %v3047
        %v3049 = vrot.slane %v3041, %v3048
        %v3051 = vunpack.c.l.s4 1983009808
        %v3052 = vunpack.c.0.s8 %v3051
        %v3053 = vlaneseq
        %v3054 = vshrl.u32 %v3053, 7
        %v3055 = vsub.s32 %v3052, %v3054
        %v3056 = vrot.slane %v3042, %v3055
        %v3057 = vcombine.low %v2820, %v2836
        %v3058 = vcombine.high %v2820, %v2836
        %v3060 = vunpack.c.l.s4 1983009808
        %v3061 = vunpack.c.0.s8 %v3060
        %v3062 = vlaneseq
        %v3063 = vshrl.u32 %v3062, 7
        %v3064 = vsub.s32 %v3061, %v3063
        %v3065 = vrot.slane %v3057, %v3064
        %v3067 = vunpack.c.l.s4 1983009808
        %v3068 = vunpack.c.0.s8 %v3067
        %v3069 = vlaneseq
        %v3070 = vshrl.u32 %v3069, 7
        %v3071 = vsub.s32 %v3068, %v3070
        %v3072 = vrot.slane %v3058, %v3071
        %v3073 = vcombine.low %v2844, %v2860
        %v3074 = vcombine.high %v2844, %v2860
        %v3076 = vunpack.c.l.s4 1983009808
        %v3077 = vunpack.c.0.s8 %v3076
        %v3078 = vlaneseq
        %v3079 = vshrl.u32 %v3078, 7
        %v3080 = vsub.s32 %v3077, %v3079
        %v3081 = vrot.slane %v3073, %v3080
        %v3083 = vunpack.c.l.s4 1983009808
        %v3084 = vunpack.c.0.s8 %v3083
        %v3085 = vlaneseq
        %v3086 = vshrl.u32 %v3085, 7
        %v3087 = vsub.s32 %v3084, %v3086
        %v3088 = vrot.slane %v3074, %v3087
        %v3089 = vcombine.low %v2852, %v2868
        %v3090 = vcombine.high %v2852, %v2868
        %v3092 = vunpack.c.l.s4 1983009808
        %v3093 = vunpack.c.0.s8 %v3092
        %v3094 = vlaneseq
        %v3095 = vshrl.u32 %v3094, 7
        %v3096 = vsub.s32 %v3093, %v3095
        %v3097 = vrot.slane %v3089, %v3096
        %v3099 = vunpack.c.l.s4 1983009808
        %v3100 = vunpack.c.0.s8 %v3099
        %v3101 = vlaneseq
        %v3102 = vshrl.u32 %v3101, 7
        %v3103 = vsub.s32 %v3100, %v3102
        %v3104 = vrot.slane %v3090, %v3103
        %v3105 = vcombine.low %v3049, %v3065
        %v3106 = vcombine.high %v3049, %v3065
        %v3108 = vunpack.c.l.s4 1934713408
        %v3109 = vunpack.c.0.s8 %v3108
        %v3110 = vlaneseq
        %v3111 = vshrl.u32 %v3110, 7
        %v3112 = vsub.s32 %v3109, %v3111
        %v3113 = vrot.slane %v3105, %v3112
        %v3115 = vunpack.c.l.s4 1934713408
        %v3116 = vunpack.c.0.s8 %v3115
        %v3117 = vlaneseq
        %v3118 = vshrl.u32 %v3117, 7
        %v3119 = vsub.s32 %v3116, %v3118
        %v3120 = vrot.slane %v3106, %v3119
        %v3121 = vcombine.low %v3056, %v3072
        %v3122 = vcombine.high %v3056, %v3072
        %v3124 = vunpack.c.l.s4 1934713408
        %v3125 = vunpack.c.0.s8 %v3124
        %v3126 = vlaneseq
        %v3127 = vshrl.u32 %v3126, 7
        %v3128 = vsub.s32 %v3125, %v3127
        %v3129 = vrot.slane %v3121, %v3128
        %v3131 = vunpack.c.l.s4 1934713408
        %v3132 = vunpack.c.0.s8 %v3131
        %v3133 = vlaneseq
        %v3134 = vshrl.u32 %v3133, 7
        %v3135 = vsub.s32 %v3132, %v3134
        %v3136 = vrot.slane %v3122, %v3135
        %v3137 = vcombine.low %v3081, %v3097
        %v3138 = vcombine.high %v3081, %v3097
        %v3140 = vunpack.c.l.s4 1934713408
        %v3141 = vunpack.c.0.s8 %v3140
        %v3142 = vlaneseq
        %v3143 = vshrl.u32 %v3142, 7
        %v3144 = vsub.s32 %v3141, %v3143
        %v3145 = vrot.slane %v3137, %v3144
        %v3147 = vunpack.c.l.s4 1934713408
        %v3148 = vunpack.c.0.s8 %v3147
        %v3149 = vlaneseq
        %v3150 = vshrl.u32 %v3149, 7
        %v3151 = vsub.s32 %v3148, %v3150
        %v3152 = vrot.slane %v3138, %v3151
        %v3153 = vcombine.low %v3088, %v3104
        %v3154 = vcombine.high %v3088, %v3104
        %v3156 = vunpack.c.l.s4 1934713408
        %v3157 = vunpack.c.0.s8 %v3156
        %v3158 = vlaneseq
        %v3159 = vshrl.u32 %v3158, 7
        %v3160 = vsub.s32 %v3157, %v3159
        %v3161 = vrot.slane %v3153, %v3160
        %v3163 = vunpack.c.l.s4 1934713408
        %v3164 = vunpack.c.0.s8 %v3163
        %v3165 = vlaneseq
        %v3166 = vshrl.u32 %v3165, 7
        %v3167 = vsub.s32 %v3164, %v3166
        %v3168 = vrot.slane %v3154, %v3167
        %v3169 = vcombine.low %v3113, %v3145
        %v3170 = vcombine.high %v3113, %v3145
        %v3171 = vcombine.low %v3120, %v3152
        %v3172 = vcombine.high %v3120, %v3152
        %v3173 = vcombine.low %v3129, %v3161
        %v3174 = vcombine.high %v3129, %v3161
        %v3175 = vcombine.low %v3136, %v3168
        %v3176 = vcombine.high %v3136, %v3168
        %v3177 = vcombine.low %v2814, %v2830
        %v3178 = vcombine.high %v2814, %v2830
        %v3180 = vunpack.c.l.s4 1983009808
        %v3181 = vunpack.c.0.s8 %v3180
        %v3182 = vlaneseq
        %v3183 = vshrl.u32 %v3182, 7
        %v3184 = vsub.s32 %v3181, %v3183
        %v3185 = vrot.slane %v3177, %v3184
        %v3187 = vunpack.c.l.s4 1983009808
        %v3188 = vunpack.c.0.s8 %v3187
        %v3189 = vlaneseq
        %v3190 = vshrl.u32 %v3189, 7
        %v3191 = vsub.s32 %v3188, %v3190
        %v3192 = vrot.slane %v3178, %v3191
        %v3193 = vcombine.low %v2822, %v2838
        %v3194 = vcombine.high %v2822, %v2838
        %v3196 = vunpack.c.l.s4 1983009808
        %v3197 = vunpack.c.0.s8 %v3196
        %v3198 = vlaneseq
        %v3199 = vshrl.u32 %v3198, 7
        %v3200 = vsub.s32 %v3197, %v3199
        %v3201 = vrot.slane %v3193, %v3200
        %v3203 = vunpack.c.l.s4 1983009808
        %v3204 = vunpack.c.0.s8 %v3203
        %v3205 = vlaneseq
        %v3206 = vshrl.u32 %v3205, 7
        %v3207 = vsub.s32 %v3204, %v3206
        %v3208 = vrot.slane %v3194, %v3207
        %v3209 = vcombine.low %v2846, %v2862
        %v3210 = vcombine.high %v2846, %v2862
        %v3212 = vunpack.c.l.s4 1983009808
        %v3213 = vunpack.c.0.s8 %v3212
        %v3214 = vlaneseq
        %v3215 = vshrl.u32 %v3214, 7
        %v3216 = vsub.s32 %v3213, %v3215
        %v3217 = vrot.slane %v3209, %v3216
        %v3219 = vunpack.c.l.s4 1983009808
        %v3220 = vunpack.c.0.s8 %v3219
        %v3221 = vlaneseq
        %v3222 = vshrl.u32 %v3221, 7
        %v3223 = vsub.s32 %v3220, %v3222
        %v3224 = vrot.slane %v3210, %v3223
        %v3225 = vcombine.low %v2854, %v2870
        %v3226 = vcombine.high %v2854, %v2870
        %v3228 = vunpack.c.l.s4 1983009808
        %v3229 = vunpack.c.0.s8 %v3228
        %v3230 = vlaneseq
        %v3231 = vshrl.u32 %v3230, 7
        %v3232 = vsub.s32 %v3229, %v3231
        %v3233 = vrot.slane %v3225, %v3232
        %v3235 = vunpack.c.l.s4 1983009808
        %v3236 = vunpack.c.0.s8 %v3235
        %v3237 = vlaneseq
        %v3238 = vshrl.u32 %v3237, 7
        %v3239 = vsub.s32 %v3236, %v3238
        %v3240 = vrot.slane %v3226, %v3239
        %v3241 = vcombine.low %v3185, %v3201
        %v3242 = vcombine.high %v3185, %v3201
        %v3244 = vunpack.c.l.s4 1934713408
        %v3245 = vunpack.c.0.s8 %v3244
        %v3246 = vlaneseq
        %v3247 = vshrl.u32 %v3246, 7
        %v3248 = vsub.s32 %v3245, %v3247
        %v3249 = vrot.slane %v3241, %v3248
        %v3251 = vunpack.c.l.s4 1934713408
        %v3252 = vunpack.c.0.s8 %v3251
        %v3253 = vlaneseq
        %v3254 = vshrl.u32 %v3253, 7
        %v3255 = vsub.s32 %v3252, %v3254
        %v3256 = vrot.slane %v3242, %v3255
        %v3257 = vcombine.low %v3192, %v3208
        %v3258 = vcombine.high %v3192, %v3208
        %v3260 = vunpack.c.l.s4 1934713408
        %v3261 = vunpack.c.0.s8 %v3260
        %v3262 = vlaneseq
        %v3263 = vshrl.u32 %v3262, 7
        %v3264 = vsub.s32 %v3261, %v3263
        %v3265 = vrot.slane %v3257, %v3264
        %v3267 = vunpack.c.l.s4 1934713408
        %v3268 = vunpack.c.0.s8 %v3267
        %v3269 = vlaneseq
        %v3270 = vshrl.u32 %v3269, 7
        %v3271 = vsub.s32 %v3268, %v3270
        %v3272 = vrot.slane %v3258, %v3271
        %v3273 = vcombine.low %v3217, %v3233
        %v3274 = vcombine.high %v3217, %v3233
        %v3276 = vunpack.c.l.s4 1934713408
        %v3277 = vunpack.c.0.s8 %v3276
        %v3278 = vlaneseq
        %v3279 = vshrl.u32 %v3278, 7
        %v3280 = vsub.s32 %v3277, %v3279
        %v3281 = vrot.slane %v3273, %v3280
        %v3283 = vunpack.c.l.s4 1934713408
        %v3284 = vunpack.c.0.s8 %v3283
        %v3285 = vlaneseq
        %v3286 = vshrl.u32 %v3285, 7
        %v3287 = vsub.s32 %v3284, %v3286
        %v3288 = vrot.slane %v3274, %v3287
        %v3289 = vcombine.low %v3224, %v3240
        %v3290 = vcombine.high %v3224, %v3240
        %v3292 = vunpack.c.l.s4 1934713408
        %v3293 = vunpack.c.0.s8 %v3292
        %v3294 = vlaneseq
        %v3295 = vshrl.u32 %v3294, 7
        %v3296 = vsub.s32 %v3293, %v3295
        %v3297 = vrot.slane %v3289, %v3296
        %v3299 = vunpack.c.l.s4 1934713408
        %v3300 = vunpack.c.0.s8 %v3299
        %v3301 = vlaneseq
        %v3302 = vshrl.u32 %v3301, 7
        %v3303 = vsub.s32 %v3300, %v3302
        %v3304 = vrot.slane %v3290, %v3303
        %v3305 = vcombine.low %v3249, %v3281
        %v3306 = vcombine.high %v3249, %v3281
        %v3307 = vcombine.low %v3256, %v3288
        %v3308 = vcombine.high %v3256, %v3288
        %v3309 = vcombine.low %v3265, %v3297
        %v3310 = vcombine.high %v3265, %v3297
        %v3311 = vcombine.low %v3272, %v3304
        %v3312 = vcombine.high %v3272, %v3304
        %v3313 = vcombine.low %v2816, %v2832
        %v3314 = vcombine.high %v2816, %v2832
        %v3316 = vunpack.c.l.s4 1983009808
        %v3317 = vunpack.c.0.s8 %v3316
        %v3318 = vlaneseq
        %v3319 = vshrl.u32 %v3318, 7
        %v3320 = vsub.s32 %v3317, %v3319
        %v3321 = vrot.slane %v3313, %v3320
        %v3323 = vunpack.c.l.s4 1983009808
        %v3324 = vunpack.c.0.s8 %v3323
        %v3325 = vlaneseq
        %v3326 = vshrl.u32 %v3325, 7
        %v3327 = vsub.s32 %v3324, %v3326
        %v3328 = vrot.slane %v3314, %v3327
        %v3329 = vcombine.low %v2824, %v2840
        %v3330 = vcombine.high %v2824, %v2840
        %v3332 = vunpack.c.l.s4 1983009808
        %v3333 = vunpack.c.0.s8 %v3332
        %v3334 = vlaneseq
        %v3335 = vshrl.u32 %v3334, 7
        %v3336 = vsub.s32 %v3333, %v3335
        %v3337 = vrot.slane %v3329, %v3336
        %v3339 = vunpack.c.l.s4 1983009808
        %v3340 = vunpack.c.0.s8 %v3339
        %v3341 = vlaneseq
        %v3342 = vshrl.u32 %v3341, 7
        %v3343 = vsub.s32 %v3340, %v3342
        %v3344 = vrot.slane %v3330, %v3343
        %v3345 = vcombine.low %v2848, %v2864
        %v3346 = vcombine.high %v2848, %v2864
        %v3348 = vunpack.c.l.s4 1983009808
        %v3349 = vunpack.c.0.s8 %v3348
        %v3350 = vlaneseq
        %v3351 = vshrl.u32 %v3350, 7
        %v3352 = vsub.s32 %v3349, %v3351
        %v3353 = vrot.slane %v3345, %v3352
        %v3355 = vunpack.c.l.s4 1983009808
        %v3356 = vunpack.c.0.s8 %v3355
        %v3357 = vlaneseq
        %v3358 = vshrl.u32 %v3357, 7
        %v3359 = vsub.s32 %v3356, %v3358
        %v3360 = vrot.slane %v3346, %v3359
        %v3361 = vcombine.low %v2856, %v2872
        %v3362 = vcombine.high %v2856, %v2872
        %v3364 = vunpack.c.l.s4 1983009808
        %v3365 = vunpack.c.0.s8 %v3364
        %v3366 = vlaneseq
        %v3367 = vshrl.u32 %v3366, 7
        %v3368 = vsub.s32 %v3365, %v3367
        %v3369 = vrot.slane %v3361, %v3368
        %v3371 = vunpack.c.l.s4 1983009808
        %v3372 = vunpack.c.0.s8 %v3371
        %v3373 = vlaneseq
        %v3374 = vshrl.u32 %v3373, 7
        %v3375 = vsub.s32 %v3372, %v3374
        %v3376 = vrot.slane %v3362, %v3375
        %v3377 = vcombine.low %v3321, %v3337
        %v3378 = vcombine.high %v3321, %v3337
        %v3380 = vunpack.c.l.s4 1934713408
        %v3381 = vunpack.c.0.s8 %v3380
        %v3382 = vlaneseq
        %v3383 = vshrl.u32 %v3382, 7
        %v3384 = vsub.s32 %v3381, %v3383
        %v3385 = vrot.slane %v3377, %v3384
        %v3387 = vunpack.c.l.s4 1934713408
        %v3388 = vunpack.c.0.s8 %v3387
        %v3389 = vlaneseq
        %v3390 = vshrl.u32 %v3389, 7
        %v3391 = vsub.s32 %v3388, %v3390
        %v3392 = vrot.slane %v3378, %v3391
        %v3393 = vcombine.low %v3328, %v3344
        %v3394 = vcombine.high %v3328, %v3344
        %v3396 = vunpack.c.l.s4 1934713408
        %v3397 = vunpack.c.0.s8 %v3396
        %v3398 = vlaneseq
        %v3399 = vshrl.u32 %v3398, 7
        %v3400 = vsub.s32 %v3397, %v3399
        %v3401 = vrot.slane %v3393, %v3400
        %v3403 = vunpack.c.l.s4 1934713408
        %v3404 = vunpack.c.0.s8 %v3403
        %v3405 = vlaneseq
        %v3406 = vshrl.u32 %v3405, 7
        %v3407 = vsub.s32 %v3404, %v3406
        %v3408 = vrot.slane %v3394, %v3407
        %v3409 = vcombine.low %v3353, %v3369
        %v3410 = vcombine.high %v3353, %v3369
        %v3412 = vunpack.c.l.s4 1934713408
        %v3413 = vunpack.c.0.s8 %v3412
        %v3414 = vlaneseq
        %v3415 = vshrl.u32 %v3414, 7
        %v3416 = vsub.s32 %v3413, %v3415
        %v3417 = vrot.slane %v3409, %v3416
        %v3419 = vunpack.c.l.s4 1934713408
        %v3420 = vunpack.c.0.s8 %v3419
        %v3421 = vlaneseq
        %v3422 = vshrl.u32 %v3421, 7
        %v3423 = vsub.s32 %v3420, %v3422
        %v3424 = vrot.slane %v3410, %v3423
        %v3425 = vcombine.low %v3360, %v3376
        %v3426 = vcombine.high %v3360, %v3376
        %v3428 = vunpack.c.l.s4 1934713408
        %v3429 = vunpack.c.0.s8 %v3428
        %v3430 = vlaneseq
        %v3431 = vshrl.u32 %v3430, 7
        %v3432 = vsub.s32 %v3429, %v3431
        %v3433 = vrot.slane %v3425, %v3432
        %v3435 = vunpack.c.l.s4 1934713408
        %v3436 = vunpack.c.0.s8 %v3435
        %v3437 = vlaneseq
        %v3438 = vshrl.u32 %v3437, 7
        %v3439 = vsub.s32 %v3436, %v3438
        %v3440 = vrot.slane %v3426, %v3439
        %v3441 = vcombine.low %v3385, %v3417
        %v3442 = vcombine.high %v3385, %v3417
        %v3443 = vcombine.low %v3392, %v3424
        %v3444 = vcombine.high %v3392, %v3424
        %v3445 = vcombine.low %v3401, %v3433
        %v3446 = vcombine.high %v3401, %v3433
        %v3447 = vcombine.low %v3408, %v3440
        %v3448 = vcombine.high %v3408, %v3440
        %v3449 = vcombine.low %v3033, %v3035
        %v3450 = vcombine.high %v3033, %v3035
        %v3452 = vunpack.c.l.s4 1983009808
        %v3453 = vunpack.c.0.s8 %v3452
        %v3454 = vlaneseq
        %v3455 = vshrl.u32 %v3454, 7
        %v3456 = vsub.s32 %v3453, %v3455
        %v3457 = vrot.slane %v3449, %v3456
        %v3459 = vunpack.c.l.s4 1983009808
        %v3460 = vunpack.c.0.s8 %v3459
        %v3461 = vlaneseq
        %v3462 = vshrl.u32 %v3461, 7
        %v3463 = vsub.s32 %v3460, %v3462
        %v3464 = vrot.slane %v3450, %v3463
        %v3465 = vcombine.low %v3034, %v3036
        %v3466 = vcombine.high %v3034, %v3036
        %v3468 = vunpack.c.l.s4 1983009808
        %v3469 = vunpack.c.0.s8 %v3468
        %v3470 = vlaneseq
        %v3471 = vshrl.u32 %v3470, 7
        %v3472 = vsub.s32 %v3469, %v3471
        %v3473 = vrot.slane %v3465, %v3472
        %v3475 = vunpack.c.l.s4 1983009808
        %v3476 = vunpack.c.0.s8 %v3475
        %v3477 = vlaneseq
        %v3478 = vshrl.u32 %v3477, 7
        %v3479 = vsub.s32 %v3476, %v3478
        %v3480 = vrot.slane %v3466, %v3479
        %v3481 = vcombine.low %v3037, %v3039
        %v3482 = vcombine.high %v3037, %v3039
        %v3484 = vunpack.c.l.s4 1983009808
        %v3485 = vunpack.c.0.s8 %v3484
        %v3486 = vlaneseq
        %v3487 = vshrl.u32 %v3486, 7
        %v3488 = vsub.s32 %v3485, %v3487
        %v3489 = vrot.slane %v3481, %v3488
        %v3491 = vunpack.c.l.s4 1983009808
        %v3492 = vunpack.c.0.s8 %v3491
        %v3493 = vlaneseq
        %v3494 = vshrl.u32 %v3493, 7
        %v3495 = vsub.s32 %v3492, %v3494
        %v3496 = vrot.slane %v3482, %v3495
        %v3497 = vcombine.low %v3038, %v3040
        %v3498 = vcombine.high %v3038, %v3040
        %v3500 = vunpack.c.l.s4 1983009808
        %v3501 = vunpack.c.0.s8 %v3500
        %v3502 = vlaneseq
        %v3503 = vshrl.u32 %v3502, 7
        %v3504 = vsub.s32 %v3501, %v3503
        %v3505 = vrot.slane %v3497, %v3504
        %v3507 = vunpack.c.l.s4 1983009808
        %v3508 = vunpack.c.0.s8 %v3507
        %v3509 = vlaneseq
        %v3510 = vshrl.u32 %v3509, 7
        %v3511 = vsub.s32 %v3508, %v3510
        %v3512 = vrot.slane %v3498, %v3511
        %v3513 = vcombine.low %v3457, %v3473
        %v3514 = vcombine.high %v3457, %v3473
        %v3516 = vunpack.c.l.s4 1934713408
        %v3517 = vunpack.c.0.s8 %v3516
        %v3518 = vlaneseq
        %v3519 = vshrl.u32 %v3518, 7
        %v3520 = vsub.s32 %v3517, %v3519
        %v3521 = vrot.slane %v3513, %v3520
        %v3523 = vunpack.c.l.s4 1934713408
        %v3524 = vunpack.c.0.s8 %v3523
        %v3525 = vlaneseq
        %v3526 = vshrl.u32 %v3525, 7
        %v3527 = vsub.s32 %v3524, %v3526
        %v3528 = vrot.slane %v3514, %v3527
        %v3529 = vcombine.low %v3464, %v3480
        %v3530 = vcombine.high %v3464, %v3480
        %v3532 = vunpack.c.l.s4 1934713408
        %v3533 = vunpack.c.0.s8 %v3532
        %v3534 = vlaneseq
        %v3535 = vshrl.u32 %v3534, 7
        %v3536 = vsub.s32 %v3533, %v3535
        %v3537 = vrot.slane %v3529, %v3536
        %v3539 = vunpack.c.l.s4 1934713408
        %v3540 = vunpack.c.0.s8 %v3539
        %v3541 = vlaneseq
        %v3542 = vshrl.u32 %v3541, 7
        %v3543 = vsub.s32 %v3540, %v3542
        %v3544 = vrot.slane %v3530, %v3543
        %v3545 = vcombine.low %v3489, %v3505
        %v3546 = vcombine.high %v3489, %v3505
        %v3548 = vunpack.c.l.s4 1934713408
        %v3549 = vunpack.c.0.s8 %v3548
        %v3550 = vlaneseq
        %v3551 = vshrl.u32 %v3550, 7
        %v3552 = vsub.s32 %v3549, %v3551
        %v3553 = vrot.slane %v3545, %v3552
        %v3555 = vunpack.c.l.s4 1934713408
        %v3556 = vunpack.c.0.s8 %v3555
        %v3557 = vlaneseq
        %v3558 = vshrl.u32 %v3557, 7
        %v3559 = vsub.s32 %v3556, %v3558
        %v3560 = vrot.slane %v3546, %v3559
        %v3561 = vcombine.low %v3496, %v3512
        %v3562 = vcombine.high %v3496, %v3512
        %v3564 = vunpack.c.l.s4 1934713408
        %v3565 = vunpack.c.0.s8 %v3564
        %v3566 = vlaneseq
        %v3567 = vshrl.u32 %v3566, 7
        %v3568 = vsub.s32 %v3565, %v3567
        %v3569 = vrot.slane %v3561, %v3568
        %v3571 = vunpack.c.l.s4 1934713408
        %v3572 = vunpack.c.0.s8 %v3571
        %v3573 = vlaneseq
        %v3574 = vshrl.u32 %v3573, 7
        %v3575 = vsub.s32 %v3572, %v3574
        %v3576 = vrot.slane %v3562, %v3575
        %v3577 = vcombine.low %v3521, %v3553
        %v3578 = vcombine.high %v3521, %v3553
        %v3579 = vcombine.low %v3528, %v3560
        %v3580 = vcombine.high %v3528, %v3560
        %v3581 = vcombine.low %v3537, %v3569
        %v3582 = vcombine.high %v3537, %v3569
        %v3583 = vcombine.low %v3544, %v3576
        %v3584 = vcombine.high %v3544, %v3576
        %v3585 = vcombine.low %v3169, %v3171
        %v3586 = vcombine.high %v3169, %v3171
        %v3588 = vunpack.c.l.s4 1983009808
        %v3589 = vunpack.c.0.s8 %v3588
        %v3590 = vlaneseq
        %v3591 = vshrl.u32 %v3590, 7
        %v3592 = vsub.s32 %v3589, %v3591
        %v3593 = vrot.slane %v3585, %v3592
        %v3595 = vunpack.c.l.s4 1983009808
        %v3596 = vunpack.c.0.s8 %v3595
        %v3597 = vlaneseq
        %v3598 = vshrl.u32 %v3597, 7
        %v3599 = vsub.s32 %v3596, %v3598
        %v3600 = vrot.slane %v3586, %v3599
        %v3601 = vcombine.low %v3170, %v3172
        %v3602 = vcombine.high %v3170, %v3172
        %v3604 = vunpack.c.l.s4 1983009808
        %v3605 = vunpack.c.0.s8 %v3604
        %v3606 = vlaneseq
        %v3607 = vshrl.u32 %v3606, 7
        %v3608 = vsub.s32 %v3605, %v3607
        %v3609 = vrot.slane %v3601, %v3608
        %v3611 = vunpack.c.l.s4 1983009808
        %v3612 = vunpack.c.0.s8 %v3611
        %v3613 = vlaneseq
        %v3614 = vshrl.u32 %v3613, 7
        %v3615 = vsub.s32 %v3612, %v3614
        %v3616 = vrot.slane %v3602, %v3615
        %v3617 = vcombine.low %v3173, %v3175
        %v3618 = vcombine.high %v3173, %v3175
        %v3620 = vunpack.c.l.s4 1983009808
        %v3621 = vunpack.c.0.s8 %v3620
        %v3622 = vlaneseq
        %v3623 = vshrl.u32 %v3622, 7
        %v3624 = vsub.s32 %v3621, %v3623
        %v3625 = vrot.slane %v3617, %v3624
        %v3627 = vunpack.c.l.s4 1983009808
        %v3628 = vunpack.c.0.s8 %v3627
        %v3629 = vlaneseq
        %v3630 = vshrl.u32 %v3629, 7
        %v3631 = vsub.s32 %v3628, %v3630
        %v3632 = vrot.slane %v3618, %v3631
        %v3633 = vcombine.low %v3174, %v3176
        %v3634 = vcombine.high %v3174, %v3176
        %v3636 = vunpack.c.l.s4 1983009808
        %v3637 = vunpack.c.0.s8 %v3636
        %v3638 = vlaneseq
        %v3639 = vshrl.u32 %v3638, 7
        %v3640 = vsub.s32 %v3637, %v3639
        %v3641 = vrot.slane %v3633, %v3640
        %v3643 = vunpack.c.l.s4 1983009808
        %v3644 = vunpack.c.0.s8 %v3643
        %v3645 = vlaneseq
        %v3646 = vshrl.u32 %v3645, 7
        %v3647 = vsub.s32 %v3644, %v3646
        %v3648 = vrot.slane %v3634, %v3647
        %v3649 = vcombine.low %v3593, %v3609
        %v3650 = vcombine.high %v3593, %v3609
        %v3652 = vunpack.c.l.s4 1934713408
        %v3653 = vunpack.c.0.s8 %v3652
        %v3654 = vlaneseq
        %v3655 = vshrl.u32 %v3654, 7
        %v3656 = vsub.s32 %v3653, %v3655
        %v3657 = vrot.slane %v3649, %v3656
        %v3659 = vunpack.c.l.s4 1934713408
        %v3660 = vunpack.c.0.s8 %v3659
        %v3661 = vlaneseq
        %v3662 = vshrl.u32 %v3661, 7
        %v3663 = vsub.s32 %v3660, %v3662
        %v3664 = vrot.slane %v3650, %v3663
        %v3665 = vcombine.low %v3600, %v3616
        %v3666 = vcombine.high %v3600, %v3616
        %v3668 = vunpack.c.l.s4 1934713408
        %v3669 = vunpack.c.0.s8 %v3668
        %v3670 = vlaneseq
        %v3671 = vshrl.u32 %v3670, 7
        %v3672 = vsub.s32 %v3669, %v3671
        %v3673 = vrot.slane %v3665, %v3672
        %v3675 = vunpack.c.l.s4 1934713408
        %v3676 = vunpack.c.0.s8 %v3675
        %v3677 = vlaneseq
        %v3678 = vshrl.u32 %v3677, 7
        %v3679 = vsub.s32 %v3676, %v3678
        %v3680 = vrot.slane %v3666, %v3679
        %v3681 = vcombine.low %v3625, %v3641
        %v3682 = vcombine.high %v3625, %v3641
        %v3684 = vunpack.c.l.s4 1934713408
        %v3685 = vunpack.c.0.s8 %v3684
        %v3686 = vlaneseq
        %v3687 = vshrl.u32 %v3686, 7
        %v3688 = vsub.s32 %v3685, %v3687
        %v3689 = vrot.slane %v3681, %v3688
        %v3691 = vunpack.c.l.s4 1934713408
        %v3692 = vunpack.c.0.s8 %v3691
        %v3693 = vlaneseq
        %v3694 = vshrl.u32 %v3693, 7
        %v3695 = vsub.s32 %v3692, %v3694
        %v3696 = vrot.slane %v3682, %v3695
        %v3697 = vcombine.low %v3632, %v3648
        %v3698 = vcombine.high %v3632, %v3648
        %v3700 = vunpack.c.l.s4 1934713408
        %v3701 = vunpack.c.0.s8 %v3700
        %v3702 = vlaneseq
        %v3703 = vshrl.u32 %v3702, 7
        %v3704 = vsub.s32 %v3701, %v3703
        %v3705 = vrot.slane %v3697, %v3704
        %v3707 = vunpack.c.l.s4 1934713408
        %v3708 = vunpack.c.0.s8 %v3707
        %v3709 = vlaneseq
        %v3710 = vshrl.u32 %v3709, 7
        %v3711 = vsub.s32 %v3708, %v3710
        %v3712 = vrot.slane %v3698, %v3711
        %v3713 = vcombine.low %v3657, %v3689
        %v3714 = vcombine.high %v3657, %v3689
        %v3715 = vcombine.low %v3664, %v3696
        %v3716 = vcombine.high %v3664, %v3696
        %v3717 = vcombine.low %v3673, %v3705
        %v3718 = vcombine.high %v3673, %v3705
        %v3719 = vcombine.low %v3680, %v3712
        %v3720 = vcombine.high %v3680, %v3712
        %v3721 = vcombine.low %v3305, %v3307
        %v3722 = vcombine.high %v3305, %v3307
        %v3724 = vunpack.c.l.s4 1983009808
        %v3725 = vunpack.c.0.s8 %v3724
        %v3726 = vlaneseq
        %v3727 = vshrl.u32 %v3726, 7
        %v3728 = vsub.s32 %v3725, %v3727
        %v3729 = vrot.slane %v3721, %v3728
        %v3731 = vunpack.c.l.s4 1983009808
        %v3732 = vunpack.c.0.s8 %v3731
        %v3733 = vlaneseq
        %v3734 = vshrl.u32 %v3733, 7
        %v3735 = vsub.s32 %v3732, %v3734
        %v3736 = vrot.slane %v3722, %v3735
        %v3737 = vcombine.low %v3306, %v3308
        %v3738 = vcombine.high %v3306, %v3308
        %v3740 = vunpack.c.l.s4 1983009808
        %v3741 = vunpack.c.0.s8 %v3740
        %v3742 = vlaneseq
        %v3743 = vshrl.u32 %v3742, 7
        %v3744 = vsub.s32 %v3741, %v3743
        %v3745 = vrot.slane %v3737, %v3744
        %v3747 = vunpack.c.l.s4 1983009808
        %v3748 = vunpack.c.0.s8 %v3747
        %v3749 = vlaneseq
        %v3750 = vshrl.u32 %v3749, 7
        %v3751 = vsub.s32 %v3748, %v3750
        %v3752 = vrot.slane %v3738, %v3751
        %v3753 = vcombine.low %v3309, %v3311
        %v3754 = vcombine.high %v3309, %v3311
        %v3756 = vunpack.c.l.s4 1983009808
        %v3757 = vunpack.c.0.s8 %v3756
        %v3758 = vlaneseq
        %v3759 = vshrl.u32 %v3758, 7
        %v3760 = vsub.s32 %v3757, %v3759
        %v3761 = vrot.slane %v3753, %v3760
        %v3763 = vunpack.c.l.s4 1983009808
        %v3764 = vunpack.c.0.s8 %v3763
        %v3765 = vlaneseq
        %v3766 = vshrl.u32 %v3765, 7
        %v3767 = vsub.s32 %v3764, %v3766
        %v3768 = vrot.slane %v3754, %v3767
        %v3769 = vcombine.low %v3310, %v3312
        %v3770 = vcombine.high %v3310, %v3312
        %v3772 = vunpack.c.l.s4 1983009808
        %v3773 = vunpack.c.0.s8 %v3772
        %v3774 = vlaneseq
        %v3775 = vshrl.u32 %v3774, 7
        %v3776 = vsub.s32 %v3773, %v3775
        %v3777 = vrot.slane %v3769, %v3776
        %v3779 = vunpack.c.l.s4 1983009808
        %v3780 = vunpack.c.0.s8 %v3779
        %v3781 = vlaneseq
        %v3782 = vshrl.u32 %v3781, 7
        %v3783 = vsub.s32 %v3780, %v3782
        %v3784 = vrot.slane %v3770, %v3783
        %v3785 = vcombine.low %v3729, %v3745
        %v3786 = vcombine.high %v3729, %v3745
        %v3788 = vunpack.c.l.s4 1934713408
        %v3789 = vunpack.c.0.s8 %v3788
        %v3790 = vlaneseq
        %v3791 = vshrl.u32 %v3790, 7
        %v3792 = vsub.s32 %v3789, %v3791
        %v3793 = vrot.slane %v3785, %v3792
        %v3795 = vunpack.c.l.s4 1934713408
        %v3796 = vunpack.c.0.s8 %v3795
        %v3797 = vlaneseq
        %v3798 = vshrl.u32 %v3797, 7
        %v3799 = vsub.s32 %v3796, %v3798
        %v3800 = vrot.slane %v3786, %v3799
        %v3801 = vcombine.low %v3736, %v3752
        %v3802 = vcombine.high %v3736, %v3752
        %v3804 = vunpack.c.l.s4 1934713408
        %v3805 = vunpack.c.0.s8 %v3804
        %v3806 = vlaneseq
        %v3807 = vshrl.u32 %v3806, 7
        %v3808 = vsub.s32 %v3805, %v3807
        %v3809 = vrot.slane %v3801, %v3808
        %v3811 = vunpack.c.l.s4 1934713408
        %v3812 = vunpack.c.0.s8 %v3811
        %v3813 = vlaneseq
        %v3814 = vshrl.u32 %v3813, 7
        %v3815 = vsub.s32 %v3812, %v3814
        %v3816 = vrot.slane %v3802, %v3815
        %v3817 = vcombine.low %v3761, %v3777
        %v3818 = vcombine.high %v3761, %v3777
        %v3820 = vunpack.c.l.s4 1934713408
        %v3821 = vunpack.c.0.s8 %v3820
        %v3822 = vlaneseq
        %v3823 = vshrl.u32 %v3822, 7
        %v3824 = vsub.s32 %v3821, %v3823
        %v3825 = vrot.slane %v3817, %v3824
        %v3827 = vunpack.c.l.s4 1934713408
        %v3828 = vunpack.c.0.s8 %v3827
        %v3829 = vlaneseq
        %v3830 = vshrl.u32 %v3829, 7
        %v3831 = vsub.s32 %v3828, %v3830
        %v3832 = vrot.slane %v3818, %v3831
        %v3833 = vcombine.low %v3768, %v3784
        %v3834 = vcombine.high %v3768, %v3784
        %v3836 = vunpack.c.l.s4 1934713408
        %v3837 = vunpack.c.0.s8 %v3836
        %v3838 = vlaneseq
        %v3839 = vshrl.u32 %v3838, 7
        %v3840 = vsub.s32 %v3837, %v3839
        %v3841 = vrot.slane %v3833, %v3840
        %v3843 = vunpack.c.l.s4 1934713408
        %v3844 = vunpack.c.0.s8 %v3843
        %v3845 = vlaneseq
        %v3846 = vshrl.u32 %v3845, 7
        %v3847 = vsub.s32 %v3844, %v3846
        %v3848 = vrot.slane %v3834, %v3847
        %v3849 = vcombine.low %v3793, %v3825
        %v3850 = vcombine.high %v3793, %v3825
        %v3851 = vcombine.low %v3800, %v3832
        %v3852 = vcombine.high %v3800, %v3832
        %v3853 = vcombine.low %v3809, %v3841
        %v3854 = vcombine.high %v3809, %v3841
        %v3855 = vcombine.low %v3816, %v3848
        %v3856 = vcombine.high %v3816, %v3848
        %v3857 = vcombine.low %v3441, %v3443
        %v3858 = vcombine.high %v3441, %v3443
        %v3860 = vunpack.c.l.s4 1983009808
        %v3861 = vunpack.c.0.s8 %v3860
        %v3862 = vlaneseq
        %v3863 = vshrl.u32 %v3862, 7
        %v3864 = vsub.s32 %v3861, %v3863
        %v3865 = vrot.slane %v3857, %v3864
        %v3867 = vunpack.c.l.s4 1983009808
        %v3868 = vunpack.c.0.s8 %v3867
        %v3869 = vlaneseq
        %v3870 = vshrl.u32 %v3869, 7
        %v3871 = vsub.s32 %v3868, %v3870
        %v3872 = vrot.slane %v3858, %v3871
        %v3873 = vcombine.low %v3442, %v3444
        %v3874 = vcombine.high %v3442, %v3444
        %v3876 = vunpack.c.l.s4 1983009808
        %v3877 = vunpack.c.0.s8 %v3876
        %v3878 = vlaneseq
        %v3879 = vshrl.u32 %v3878, 7
        %v3880 = vsub.s32 %v3877, %v3879
        %v3881 = vrot.slane %v3873, %v3880
        %v3883 = vunpack.c.l.s4 1983009808
        %v3884 = vunpack.c.0.s8 %v3883
        %v3885 = vlaneseq
        %v3886 = vshrl.u32 %v3885, 7
        %v3887 = vsub.s32 %v3884, %v3886
        %v3888 = vrot.slane %v3874, %v3887
        %v3889 = vcombine.low %v3445, %v3447
        %v3890 = vcombine.high %v3445, %v3447
        %v3892 = vunpack.c.l.s4 1983009808
        %v3893 = vunpack.c.0.s8 %v3892
        %v3894 = vlaneseq
        %v3895 = vshrl.u32 %v3894, 7
        %v3896 = vsub.s32 %v3893, %v3895
        %v3897 = vrot.slane %v3889, %v3896
        %v3899 = vunpack.c.l.s4 1983009808
        %v3900 = vunpack.c.0.s8 %v3899
        %v3901 = vlaneseq
        %v3902 = vshrl.u32 %v3901, 7
        %v3903 = vsub.s32 %v3900, %v3902
        %v3904 = vrot.slane %v3890, %v3903
        %v3905 = vcombine.low %v3446, %v3448
        %v3906 = vcombine.high %v3446, %v3448
        %v3908 = vunpack.c.l.s4 1983009808
        %v3909 = vunpack.c.0.s8 %v3908
        %v3910 = vlaneseq
        %v3911 = vshrl.u32 %v3910, 7
        %v3912 = vsub.s32 %v3909, %v3911
        %v3913 = vrot.slane %v3905, %v3912
        %v3915 = vunpack.c.l.s4 1983009808
        %v3916 = vunpack.c.0.s8 %v3915
        %v3917 = vlaneseq
        %v3918 = vshrl.u32 %v3917, 7
        %v3919 = vsub.s32 %v3916, %v3918
        %v3920 = vrot.slane %v3906, %v3919
        %v3921 = vcombine.low %v3865, %v3881
        %v3922 = vcombine.high %v3865, %v3881
        %v3924 = vunpack.c.l.s4 1934713408
        %v3925 = vunpack.c.0.s8 %v3924
        %v3926 = vlaneseq
        %v3927 = vshrl.u32 %v3926, 7
        %v3928 = vsub.s32 %v3925, %v3927
        %v3929 = vrot.slane %v3921, %v3928
        %v3931 = vunpack.c.l.s4 1934713408
        %v3932 = vunpack.c.0.s8 %v3931
        %v3933 = vlaneseq
        %v3934 = vshrl.u32 %v3933, 7
        %v3935 = vsub.s32 %v3932, %v3934
        %v3936 = vrot.slane %v3922, %v3935
        %v3937 = vcombine.low %v3872, %v3888
        %v3938 = vcombine.high %v3872, %v3888
        %v3940 = vunpack.c.l.s4 1934713408
        %v3941 = vunpack.c.0.s8 %v3940
        %v3942 = vlaneseq
        %v3943 = vshrl.u32 %v3942, 7
        %v3944 = vsub.s32 %v3941, %v3943
        %v3945 = vrot.slane %v3937, %v3944
        %v3947 = vunpack.c.l.s4 1934713408
        %v3948 = vunpack.c.0.s8 %v3947
        %v3949 = vlaneseq
        %v3950 = vshrl.u32 %v3949, 7
        %v3951 = vsub.s32 %v3948, %v3950
        %v3952 = vrot.slane %v3938, %v3951
        %v3953 = vcombine.low %v3897, %v3913
        %v3954 = vcombine.high %v3897, %v3913
        %v3956 = vunpack.c.l.s4 1934713408
        %v3957 = vunpack.c.0.s8 %v3956
        %v3958 = vlaneseq
        %v3959 = vshrl.u32 %v3958, 7
        %v3960 = vsub.s32 %v3957, %v3959
        %v3961 = vrot.slane %v3953, %v3960
        %v3963 = vunpack.c.l.s4 1934713408
        %v3964 = vunpack.c.0.s8 %v3963
        %v3965 = vlaneseq
        %v3966 = vshrl.u32 %v3965, 7
        %v3967 = vsub.s32 %v3964, %v3966
        %v3968 = vrot.slane %v3954, %v3967
        %v3969 = vcombine.low %v3904, %v3920
        %v3970 = vcombine.high %v3904, %v3920
        %v3972 = vunpack.c.l.s4 1934713408
        %v3973 = vunpack.c.0.s8 %v3972
        %v3974 = vlaneseq
        %v3975 = vshrl.u32 %v3974, 7
        %v3976 = vsub.s32 %v3973, %v3975
        %v3977 = vrot.slane %v3969, %v3976
        %v3979 = vunpack.c.l.s4 1934713408
        %v3980 = vunpack.c.0.s8 %v3979
        %v3981 = vlaneseq
        %v3982 = vshrl.u32 %v3981, 7
        %v3983 = vsub.s32 %v3980, %v3982
        %v3984 = vrot.slane %v3970, %v3983
        %v3985 = vcombine.low %v3929, %v3961
        %v3986 = vcombine.high %v3929, %v3961
        %v3987 = vcombine.low %v3936, %v3968
        %v3988 = vcombine.high %v3936, %v3968
        %v3989 = vcombine.low %v3945, %v3977
        %v3990 = vcombine.high %v3945, %v3977
        %v3991 = vcombine.low %v3952, %v3984
        %v3992 = vcombine.high %v3952, %v3984
        %vm3993 = vcmask 31744
        %v3995 = vsel %vm3993, %v1149, 0
        %v3998 = vsel %vm3993, %v1285, 0
        %v4001 = vsel %vm3993, %v1421, 0
        %v4004 = vsel %vm3993, %v1557, 0
        %v4007 = vsel %vm3993, %v2393, 0
        %v4010 = vsel %vm3993, %v2529, 0
        %v4013 = vsel %vm3993, %v2665, 0
        %v4016 = vsel %vm3993, %v2801, 0
        %4018 = vmatprep.subr.mxu0 0.0
        %4019 = vmatpush1.xpose.msra.mxu0 %v4007
        %4020 = vmatprep.subr.mxu0 0.0
        %4021 = vmatpush1.xpose.msra.mxu0 %v4010
        %4022 = vmatprep.subr.mxu0 0.0
        %4023 = vmatpush1.xpose.msra.mxu0 %v4013
        %4024 = vmatprep.subr.mxu0 0.0
        %4025 = vmatpush1.xpose.msra.mxu0 %v4016
        %4026 = vmatprep.subr.mxu0 0.0
        %4027 = vmatpush1.xpose.msra.mxu0 0.0
        %4028 = vmatprep.subr.mxu0 0.0
        %4029 = vmatpush1.xpose.msra.mxu0 0.0
        %4030 = vmatprep.subr.mxu0 0.0
        %4031 = vmatpush1.xpose.msra.mxu0 0.0
        %4032 = vmatprep.subr.mxu0 0.0
        %4033 = vmatpush1.xpose.msra.mxu0 0.0
        %4034 = vmatprep.subr.mxu0 0.0
        %4035 = vmatpush1.xpose.msra.mxu0 0.0
        %4036 = vmatprep.subr.mxu0 0.0
        %4037 = vmatpush1.xpose.msra.mxu0 0.0
        %4038 = vmatprep.subr.mxu0 0.0
        %4039 = vmatpush1.xpose.msra.mxu0 0.0
        %4040 = vmatprep.subr.mxu0 0.0
        %4041 = vmatpush1.xpose.msra.mxu0 0.0
        %4042 = vmatprep.subr.mxu0 0.0
        %4043 = vmatpush1.xpose.msra.mxu0 0.0
        %4044 = vmatprep.subr.mxu0 0.0
        %4045 = vmatpush1.xpose.msra.mxu0 0.0
        %4046 = vmatprep.subr.mxu0 0.0
        %4047 = vmatpush1.xpose.msra.mxu0 0.0
        %4048 = vmatprep.subr.mxu0 0.0
        %4049 = vmatpush1.xpose.msra.mxu0 0.0
        %4050 = vmatprep.subr.mxu0 0.0
        %4051 = vmatpush1.xpose.msra.mxu0 0.0
        %4052 = vmatprep.subr.mxu0 0.0
        %4053 = vmatpush1.xpose.msra.mxu0 0.0
        %4054 = vmatprep.subr.mxu0 0.0
        %4055 = vmatpush1.xpose.msra.mxu0 0.0
        %4056 = vmatprep.subr.mxu0 0.0
        %4057 = vmatpush1.xpose.msra.mxu0 0.0
        %4058 = vmatprep.subr.mxu0 0.0
        %4059 = vmatpush1.xpose.msra.mxu0 0.0
        %4060 = vmatprep.subr.mxu0 0.0
        %4061 = vmatpush1.xpose.msra.mxu0 0.0
        %4062 = vmatprep.subr.mxu0 0.0
        %4063 = vmatpush1.xpose.msra.mxu0 0.0
        %4064 = vmatprep.subr.mxu0 0.0
        %4065 = vmatpush1.xpose.msra.mxu0 0.0
        %4066 = vmatprep.subr.mxu0 0.0
        %4067 = vmatpush1.xpose.msra.mxu0 0.0
        %4068 = vmatprep.subr.mxu0 0.0
        %4069 = vmatpush1.xpose.msra.mxu0 0.0
        %4070 = vmatprep.subr.mxu0 0.0
        %4071 = vmatpush1.xpose.msra.mxu0 0.0
        %4072 = vmatprep.subr.mxu0 0.0
        %4073 = vmatpush1.xpose.msra.mxu0 0.0
        %4074 = vmatprep.subr.mxu0 0.0
        %4075 = vmatpush1.xpose.msra.mxu0 0.0
        %4076 = vmatprep.subr.mxu0 0.0
        %4077 = vmatpush1.xpose.msra.mxu0 0.0
        %4078 = vmatprep.subr.mxu0 0.0
        %4079 = vmatpush1.xpose.msra.mxu0 0.0
        %4080 = vmatprep.subr.mxu0 0.0
        %4081 = vmatpush1.xpose.msra.mxu0 0.0
        %4082 = vmatprep.mubr.f32.mxu0 0.0
        %4083 = vmatmul.mubr.f32.gmra.mrb[0].mxu0 %v3995
        %v4084 = vpop.f32.mrb[0].mxu0
        %v4085 = vadd.f32 0.0, %v4084
        %v4086 = vpop.f32.mrb[0].mxu0
        %4087 = vmatprep.mubr.f32.mxu0 0.0
        %4088 = vmatmul.mubr.f32.gmra.mrb[0].mxu0 %v3998
        %v4089 = vpop.f32.mrb[0].mxu0
        %v4090 = vadd.f32 0.0, %v4089
        %v4091 = vpop.f32.mrb[0].mxu0
        %4092 = vmatprep.mubr.f32.mxu0 0.0
        %4093 = vmatmul.mubr.f32.gmra.mrb[0].mxu0 %v4001
        %v4094 = vpop.f32.mrb[0].mxu0
        %v4095 = vadd.f32 0.0, %v4094
        %v4096 = vpop.f32.mrb[0].mxu0
        %4097 = vmatprep.mubr.f32.mxu0 0.0
        %4098 = vmatmul.mubr.f32.gmra.mrb[0].mxu0 %v4004
        %v4099 = vpop.f32.mrb[0].mxu0
        %v4100 = vadd.f32 0.0, %v4099
        %v4101 = vpop.f32.mrb[0].mxu0
        %4102 = vdwg.mxu0
        %v4104 = vsel %vm3993, %v1150, 0
        %v4107 = vsel %vm3993, %v1286, 0
        %v4110 = vsel %vm3993, %v1422, 0
        %v4113 = vsel %vm3993, %v1558, 0
        %v4116 = vsel %vm3993, %v2394, 0
        %v4119 = vsel %vm3993, %v2530, 0
        %v4122 = vsel %vm3993, %v2666, 0
        %v4125 = vsel %vm3993, %v2802, 0
        %4127 = vmatprep.subr.mxu0 0.0
        %4128 = vmatpush1.xpose.msra.mxu0 %v4116
        %4129 = vmatprep.subr.mxu0 0.0
        %4130 = vmatpush1.xpose.msra.mxu0 %v4119
        %4131 = vmatprep.subr.mxu0 0.0
        %4132 = vmatpush1.xpose.msra.mxu0 %v4122
        %4133 = vmatprep.subr.mxu0 0.0
        %4134 = vmatpush1.xpose.msra.mxu0 %v4125
        %4135 = vmatprep.subr.mxu0 0.0
        %4136 = vmatpush1.xpose.msra.mxu0 0.0
        %4137 = vmatprep.subr.mxu0 0.0
        %4138 = vmatpush1.xpose.msra.mxu0 0.0
        %4139 = vmatprep.subr.mxu0 0.0
        %4140 = vmatpush1.xpose.msra.mxu0 0.0
        %4141 = vmatprep.subr.mxu0 0.0
        %4142 = vmatpush1.xpose.msra.mxu0 0.0
        %4143 = vmatprep.subr.mxu0 0.0
        %4144 = vmatpush1.xpose.msra.mxu0 0.0
        %4145 = vmatprep.subr.mxu0 0.0
        %4146 = vmatpush1.xpose.msra.mxu0 0.0
        %4147 = vmatprep.subr.mxu0 0.0
        %4148 = vmatpush1.xpose.msra.mxu0 0.0
        %4149 = vmatprep.subr.mxu0 0.0
        %4150 = vmatpush1.xpose.msra.mxu0 0.0
        %4151 = vmatprep.subr.mxu0 0.0
        %4152 = vmatpush1.xpose.msra.mxu0 0.0
        %4153 = vmatprep.subr.mxu0 0.0
        %4154 = vmatpush1.xpose.msra.mxu0 0.0
        %4155 = vmatprep.subr.mxu0 0.0
        %4156 = vmatpush1.xpose.msra.mxu0 0.0
        %4157 = vmatprep.subr.mxu0 0.0
        %4158 = vmatpush1.xpose.msra.mxu0 0.0
        %4159 = vmatprep.subr.mxu0 0.0
        %4160 = vmatpush1.xpose.msra.mxu0 0.0
        %4161 = vmatprep.subr.mxu0 0.0
        %4162 = vmatpush1.xpose.msra.mxu0 0.0
        %4163 = vmatprep.subr.mxu0 0.0
        %4164 = vmatpush1.xpose.msra.mxu0 0.0
        %4165 = vmatprep.subr.mxu0 0.0
        %4166 = vmatpush1.xpose.msra.mxu0 0.0
        %4167 = vmatprep.subr.mxu0 0.0
        %4168 = vmatpush1.xpose.msra.mxu0 0.0
        %4169 = vmatprep.subr.mxu0 0.0
        %4170 = vmatpush1.xpose.msra.mxu0 0.0
        %4171 = vmatprep.subr.mxu0 0.0
        %4172 = vmatpush1.xpose.msra.mxu0 0.0
        %4173 = vmatprep.subr.mxu0 0.0
        %4174 = vmatpush1.xpose.msra.mxu0 0.0
        %4175 = vmatprep.subr.mxu0 0.0
        %4176 = vmatpush1.xpose.msra.mxu0 0.0
        %4177 = vmatprep.subr.mxu0 0.0
        %4178 = vmatpush1.xpose.msra.mxu0 0.0
        %4179 = vmatprep.subr.mxu0 0.0
        %4180 = vmatpush1.xpose.msra.mxu0 0.0
        %4181 = vmatprep.subr.mxu0 0.0
        %4182 = vmatpush1.xpose.msra.mxu0 0.0
        %4183 = vmatprep.subr.mxu0 0.0
        %4184 = vmatpush1.xpose.msra.mxu0 0.0
        %4185 = vmatprep.subr.mxu0 0.0
        %4186 = vmatpush1.xpose.msra.mxu0 0.0
        %4187 = vmatprep.subr.mxu0 0.0
        %4188 = vmatpush1.xpose.msra.mxu0 0.0
        %4189 = vmatprep.subr.mxu0 0.0
        %4190 = vmatpush1.xpose.msra.mxu0 0.0
        %4191 = vmatprep.mubr.f32.mxu0 0.0
        %4192 = vmatmul.mubr.f32.gmra.mrb[0].mxu0 %v4104
        %v4193 = vpop.f32.mrb[0].mxu0
        %v4194 = vadd.f32 0.0, %v4193
        %v4195 = vpop.f32.mrb[0].mxu0
        %4196 = vmatprep.mubr.f32.mxu0 0.0
        %4197 = vmatmul.mubr.f32.gmra.mrb[0].mxu0 %v4107
        %v4198 = vpop.f32.mrb[0].mxu0
        %v4199 = vadd.f32 0.0, %v4198
        %v4200 = vpop.f32.mrb[0].mxu0
        %4201 = vmatprep.mubr.f32.mxu0 0.0
        %4202 = vmatmul.mubr.f32.gmra.mrb[0].mxu0 %v4110
        %v4203 = vpop.f32.mrb[0].mxu0
        %v4204 = vadd.f32 0.0, %v4203
        %v4205 = vpop.f32.mrb[0].mxu0
        %4206 = vmatprep.mubr.f32.mxu0 0.0
        %4207 = vmatmul.mubr.f32.gmra.mrb[0].mxu0 %v4113
        %v4208 = vpop.f32.mrb[0].mxu0
        %v4209 = vadd.f32 0.0, %v4208
        %v4210 = vpop.f32.mrb[0].mxu0
        %4211 = vdwg.mxu0
        %v4213 = vsel %vm3993, %v1151, 0
        %v4216 = vsel %vm3993, %v1287, 0
        %v4219 = vsel %vm3993, %v1423, 0
        %v4222 = vsel %vm3993, %v1559, 0
        %v4225 = vsel %vm3993, %v2395, 0
        %v4228 = vsel %vm3993, %v2531, 0
        %v4231 = vsel %vm3993, %v2667, 0
        %v4234 = vsel %vm3993, %v2803, 0
        %4236 = vmatprep.subr.mxu0 0.0
        %4237 = vmatpush1.xpose.msra.mxu0 %v4225
        %4238 = vmatprep.subr.mxu0 0.0
        %4239 = vmatpush1.xpose.msra.mxu0 %v4228
        %4240 = vmatprep.subr.mxu0 0.0
        %4241 = vmatpush1.xpose.msra.mxu0 %v4231
        %4242 = vmatprep.subr.mxu0 0.0
        %4243 = vmatpush1.xpose.msra.mxu0 %v4234
        %4244 = vmatprep.subr.mxu0 0.0
        %4245 = vmatpush1.xpose.msra.mxu0 0.0
        %4246 = vmatprep.subr.mxu0 0.0
        %4247 = vmatpush1.xpose.msra.mxu0 0.0
        %4248 = vmatprep.subr.mxu0 0.0
        %4249 = vmatpush1.xpose.msra.mxu0 0.0
        %4250 = vmatprep.subr.mxu0 0.0
        %4251 = vmatpush1.xpose.msra.mxu0 0.0
        %4252 = vmatprep.subr.mxu0 0.0
        %4253 = vmatpush1.xpose.msra.mxu0 0.0
        %4254 = vmatprep.subr.mxu0 0.0
        %4255 = vmatpush1.xpose.msra.mxu0 0.0
        %4256 = vmatprep.subr.mxu0 0.0
        %4257 = vmatpush1.xpose.msra.mxu0 0.0
        %4258 = vmatprep.subr.mxu0 0.0
        %4259 = vmatpush1.xpose.msra.mxu0 0.0
        %4260 = vmatprep.subr.mxu0 0.0
        %4261 = vmatpush1.xpose.msra.mxu0 0.0
        %4262 = vmatprep.subr.mxu0 0.0
        %4263 = vmatpush1.xpose.msra.mxu0 0.0
        %4264 = vmatprep.subr.mxu0 0.0
        %4265 = vmatpush1.xpose.msra.mxu0 0.0
        %4266 = vmatprep.subr.mxu0 0.0
        %4267 = vmatpush1.xpose.msra.mxu0 0.0
        %4268 = vmatprep.subr.mxu0 0.0
        %4269 = vmatpush1.xpose.msra.mxu0 0.0
        %4270 = vmatprep.subr.mxu0 0.0
        %4271 = vmatpush1.xpose.msra.mxu0 0.0
        %4272 = vmatprep.subr.mxu0 0.0
        %4273 = vmatpush1.xpose.msra.mxu0 0.0
        %4274 = vmatprep.subr.mxu0 0.0
        %4275 = vmatpush1.xpose.msra.mxu0 0.0
        %4276 = vmatprep.subr.mxu0 0.0
        %4277 = vmatpush1.xpose.msra.mxu0 0.0
        %4278 = vmatprep.subr.mxu0 0.0
        %4279 = vmatpush1.xpose.msra.mxu0 0.0
        %4280 = vmatprep.subr.mxu0 0.0
        %4281 = vmatpush1.xpose.msra.mxu0 0.0
        %4282 = vmatprep.subr.mxu0 0.0
        %4283 = vmatpush1.xpose.msra.mxu0 0.0
        %4284 = vmatprep.subr.mxu0 0.0
        %4285 = vmatpush1.xpose.msra.mxu0 0.0
        %4286 = vmatprep.subr.mxu0 0.0
        %4287 = vmatpush1.xpose.msra.mxu0 0.0
        %4288 = vmatprep.subr.mxu0 0.0
        %4289 = vmatpush1.xpose.msra.mxu0 0.0
        %4290 = vmatprep.subr.mxu0 0.0
        %4291 = vmatpush1.xpose.msra.mxu0 0.0
        %4292 = vmatprep.subr.mxu0 0.0
        %4293 = vmatpush1.xpose.msra.mxu0 0.0
        %4294 = vmatprep.subr.mxu0 0.0
        %4295 = vmatpush1.xpose.msra.mxu0 0.0
        %4296 = vmatprep.subr.mxu0 0.0
        %4297 = vmatpush1.xpose.msra.mxu0 0.0
        %4298 = vmatprep.subr.mxu0 0.0
        %4299 = vmatpush1.xpose.msra.mxu0 0.0
        %4300 = vmatprep.mubr.f32.mxu0 0.0
        %4301 = vmatmul.mubr.f32.gmra.mrb[0].mxu0 %v4213
        %v4302 = vpop.f32.mrb[0].mxu0
        %v4303 = vadd.f32 0.0, %v4302
        %v4304 = vpop.f32.mrb[0].mxu0
        %4305 = vmatprep.mubr.f32.mxu0 0.0
        %4306 = vmatmul.mubr.f32.gmra.mrb[0].mxu0 %v4216
        %v4307 = vpop.f32.mrb[0].mxu0
        %v4308 = vadd.f32 0.0, %v4307
        %v4309 = vpop.f32.mrb[0].mxu0
        %4310 = vmatprep.mubr.f32.mxu0 0.0
        %4311 = vmatmul.mubr.f32.gmra.mrb[0].mxu0 %v4219
        %v4312 = vpop.f32.mrb[0].mxu0
        %v4313 = vadd.f32 0.0, %v4312
        %v4314 = vpop.f32.mrb[0].mxu0
        %4315 = vmatprep.mubr.f32.mxu0 0.0
        %4316 = vmatmul.mubr.f32.gmra.mrb[0].mxu0 %v4222
        %v4317 = vpop.f32.mrb[0].mxu0
        %v4318 = vadd.f32 0.0, %v4317
        %v4319 = vpop.f32.mrb[0].mxu0
        %4320 = vdwg.mxu0
        %v4322 = vsel %vm3993, %v1152, 0
        %v4325 = vsel %vm3993, %v1288, 0
        %v4328 = vsel %vm3993, %v1424, 0
        %v4331 = vsel %vm3993, %v1560, 0
        %v4334 = vsel %vm3993, %v2396, 0
        %v4337 = vsel %vm3993, %v2532, 0
        %v4340 = vsel %vm3993, %v2668, 0
        %v4343 = vsel %vm3993, %v2804, 0
        %4345 = vmatprep.subr.mxu0 0.0
        %4346 = vmatpush1.xpose.msra.mxu0 %v4334
        %4347 = vmatprep.subr.mxu0 0.0
        %4348 = vmatpush1.xpose.msra.mxu0 %v4337
        %4349 = vmatprep.subr.mxu0 0.0
        %4350 = vmatpush1.xpose.msra.mxu0 %v4340
        %4351 = vmatprep.subr.mxu0 0.0
        %4352 = vmatpush1.xpose.msra.mxu0 %v4343
        %4353 = vmatprep.subr.mxu0 0.0
        %4354 = vmatpush1.xpose.msra.mxu0 0.0
        %4355 = vmatprep.subr.mxu0 0.0
        %4356 = vmatpush1.xpose.msra.mxu0 0.0
        %4357 = vmatprep.subr.mxu0 0.0
        %4358 = vmatpush1.xpose.msra.mxu0 0.0
        %4359 = vmatprep.subr.mxu0 0.0
        %4360 = vmatpush1.xpose.msra.mxu0 0.0
        %4361 = vmatprep.subr.mxu0 0.0
        %4362 = vmatpush1.xpose.msra.mxu0 0.0
        %4363 = vmatprep.subr.mxu0 0.0
        %4364 = vmatpush1.xpose.msra.mxu0 0.0
        %4365 = vmatprep.subr.mxu0 0.0
        %4366 = vmatpush1.xpose.msra.mxu0 0.0
        %4367 = vmatprep.subr.mxu0 0.0
        %4368 = vmatpush1.xpose.msra.mxu0 0.0
        %4369 = vmatprep.subr.mxu0 0.0
        %4370 = vmatpush1.xpose.msra.mxu0 0.0
        %4371 = vmatprep.subr.mxu0 0.0
        %4372 = vmatpush1.xpose.msra.mxu0 0.0
        %4373 = vmatprep.subr.mxu0 0.0
        %4374 = vmatpush1.xpose.msra.mxu0 0.0
        %4375 = vmatprep.subr.mxu0 0.0
        %4376 = vmatpush1.xpose.msra.mxu0 0.0
        %4377 = vmatprep.subr.mxu0 0.0
        %4378 = vmatpush1.xpose.msra.mxu0 0.0
        %4379 = vmatprep.subr.mxu0 0.0
        %4380 = vmatpush1.xpose.msra.mxu0 0.0
        %4381 = vmatprep.subr.mxu0 0.0
        %4382 = vmatpush1.xpose.msra.mxu0 0.0
        %4383 = vmatprep.subr.mxu0 0.0
        %4384 = vmatpush1.xpose.msra.mxu0 0.0
        %4385 = vmatprep.subr.mxu0 0.0
        %4386 = vmatpush1.xpose.msra.mxu0 0.0
        %4387 = vmatprep.subr.mxu0 0.0
        %4388 = vmatpush1.xpose.msra.mxu0 0.0
        %4389 = vmatprep.subr.mxu0 0.0
        %4390 = vmatpush1.xpose.msra.mxu0 0.0
        %4391 = vmatprep.subr.mxu0 0.0
        %4392 = vmatpush1.xpose.msra.mxu0 0.0
        %4393 = vmatprep.subr.mxu0 0.0
        %4394 = vmatpush1.xpose.msra.mxu0 0.0
        %4395 = vmatprep.subr.mxu0 0.0
        %4396 = vmatpush1.xpose.msra.mxu0 0.0
        %4397 = vmatprep.subr.mxu0 0.0
        %4398 = vmatpush1.xpose.msra.mxu0 0.0
        %4399 = vmatprep.subr.mxu0 0.0
        %4400 = vmatpush1.xpose.msra.mxu0 0.0
        %4401 = vmatprep.subr.mxu0 0.0
        %4402 = vmatpush1.xpose.msra.mxu0 0.0
        %4403 = vmatprep.subr.mxu0 0.0
        %4404 = vmatpush1.xpose.msra.mxu0 0.0
        %4405 = vmatprep.subr.mxu0 0.0
        %4406 = vmatpush1.xpose.msra.mxu0 0.0
        %4407 = vmatprep.subr.mxu0 0.0
        %4408 = vmatpush1.xpose.msra.mxu0 0.0
        %4409 = vmatprep.mubr.f32.mxu0 0.0
        %4410 = vmatmul.mubr.f32.gmra.mrb[0].mxu0 %v4322
        %v4411 = vpop.f32.mrb[0].mxu0
        %v4412 = vadd.f32 0.0, %v4411
        %v4413 = vpop.f32.mrb[0].mxu0
        %4414 = vmatprep.mubr.f32.mxu0 0.0
        %4415 = vmatmul.mubr.f32.gmra.mrb[0].mxu0 %v4325
        %v4416 = vpop.f32.mrb[0].mxu0
        %v4417 = vadd.f32 0.0, %v4416
        %v4418 = vpop.f32.mrb[0].mxu0
        %4419 = vmatprep.mubr.f32.mxu0 0.0
        %4420 = vmatmul.mubr.f32.gmra.mrb[0].mxu0 %v4328
        %v4421 = vpop.f32.mrb[0].mxu0
        %v4422 = vadd.f32 0.0, %v4421
        %v4423 = vpop.f32.mrb[0].mxu0
        %4424 = vmatprep.mubr.f32.mxu0 0.0
        %4425 = vmatmul.mubr.f32.gmra.mrb[0].mxu0 %v4331
        %v4426 = vpop.f32.mrb[0].mxu0
        %v4427 = vadd.f32 0.0, %v4426
        %v4428 = vpop.f32.mrb[0].mxu0
        %4429 = vdwg.mxu0
        %v4431 = vsel %vm3993, %v1153, 0
        %v4434 = vsel %vm3993, %v1289, 0
        %v4437 = vsel %vm3993, %v1425, 0
        %v4440 = vsel %vm3993, %v1561, 0
        %v4443 = vsel %vm3993, %v2397, 0
        %v4446 = vsel %vm3993, %v2533, 0
        %v4449 = vsel %vm3993, %v2669, 0
        %v4452 = vsel %vm3993, %v2805, 0
        %4454 = vmatprep.subr.mxu0 0.0
        %4455 = vmatpush1.xpose.msra.mxu0 %v4443
        %4456 = vmatprep.subr.mxu0 0.0
        %4457 = vmatpush1.xpose.msra.mxu0 %v4446
        %4458 = vmatprep.subr.mxu0 0.0
        %4459 = vmatpush1.xpose.msra.mxu0 %v4449
        %4460 = vmatprep.subr.mxu0 0.0
        %4461 = vmatpush1.xpose.msra.mxu0 %v4452
        %4462 = vmatprep.subr.mxu0 0.0
        %4463 = vmatpush1.xpose.msra.mxu0 0.0
        %4464 = vmatprep.subr.mxu0 0.0
        %4465 = vmatpush1.xpose.msra.mxu0 0.0
        %4466 = vmatprep.subr.mxu0 0.0
        %4467 = vmatpush1.xpose.msra.mxu0 0.0
        %4468 = vmatprep.subr.mxu0 0.0
        %4469 = vmatpush1.xpose.msra.mxu0 0.0
        %4470 = vmatprep.subr.mxu0 0.0
        %4471 = vmatpush1.xpose.msra.mxu0 0.0
        %4472 = vmatprep.subr.mxu0 0.0
        %4473 = vmatpush1.xpose.msra.mxu0 0.0
        %4474 = vmatprep.subr.mxu0 0.0
        %4475 = vmatpush1.xpose.msra.mxu0 0.0
        %4476 = vmatprep.subr.mxu0 0.0
        %4477 = vmatpush1.xpose.msra.mxu0 0.0
        %4478 = vmatprep.subr.mxu0 0.0
        %4479 = vmatpush1.xpose.msra.mxu0 0.0
        %4480 = vmatprep.subr.mxu0 0.0
        %4481 = vmatpush1.xpose.msra.mxu0 0.0
        %4482 = vmatprep.subr.mxu0 0.0
        %4483 = vmatpush1.xpose.msra.mxu0 0.0
        %4484 = vmatprep.subr.mxu0 0.0
        %4485 = vmatpush1.xpose.msra.mxu0 0.0
        %4486 = vmatprep.subr.mxu0 0.0
        %4487 = vmatpush1.xpose.msra.mxu0 0.0
        %4488 = vmatprep.subr.mxu0 0.0
        %4489 = vmatpush1.xpose.msra.mxu0 0.0
        %4490 = vmatprep.subr.mxu0 0.0
        %4491 = vmatpush1.xpose.msra.mxu0 0.0
        %4492 = vmatprep.subr.mxu0 0.0
        %4493 = vmatpush1.xpose.msra.mxu0 0.0
        %4494 = vmatprep.subr.mxu0 0.0
        %4495 = vmatpush1.xpose.msra.mxu0 0.0
        %4496 = vmatprep.subr.mxu0 0.0
        %4497 = vmatpush1.xpose.msra.mxu0 0.0
        %4498 = vmatprep.subr.mxu0 0.0
        %4499 = vmatpush1.xpose.msra.mxu0 0.0
        %4500 = vmatprep.subr.mxu0 0.0
        %4501 = vmatpush1.xpose.msra.mxu0 0.0
        %4502 = vmatprep.subr.mxu0 0.0
        %4503 = vmatpush1.xpose.msra.mxu0 0.0
        %4504 = vmatprep.subr.mxu0 0.0
        %4505 = vmatpush1.xpose.msra.mxu0 0.0
        %4506 = vmatprep.subr.mxu0 0.0
        %4507 = vmatpush1.xpose.msra.mxu0 0.0
        %4508 = vmatprep.subr.mxu0 0.0
        %4509 = vmatpush1.xpose.msra.mxu0 0.0
        %4510 = vmatprep.subr.mxu0 0.0
        %4511 = vmatpush1.xpose.msra.mxu0 0.0
        %4512 = vmatprep.subr.mxu0 0.0
        %4513 = vmatpush1.xpose.msra.mxu0 0.0
        %4514 = vmatprep.subr.mxu0 0.0
        %4515 = vmatpush1.xpose.msra.mxu0 0.0
        %4516 = vmatprep.subr.mxu0 0.0
        %4517 = vmatpush1.xpose.msra.mxu0 0.0
        %4518 = vmatprep.mubr.f32.mxu0 0.0
        %4519 = vmatmul.mubr.f32.gmra.mrb[0].mxu0 %v4431
        %v4520 = vpop.f32.mrb[0].mxu0
        %v4521 = vadd.f32 0.0, %v4520
        %v4522 = vpop.f32.mrb[0].mxu0
        %4523 = vmatprep.mubr.f32.mxu0 0.0
        %4524 = vmatmul.mubr.f32.gmra.mrb[0].mxu0 %v4434
        %v4525 = vpop.f32.mrb[0].mxu0
        %v4526 = vadd.f32 0.0, %v4525
        %v4527 = vpop.f32.mrb[0].mxu0
        %4528 = vmatprep.mubr.f32.mxu0 0.0
        %4529 = vmatmul.mubr.f32.gmra.mrb[0].mxu0 %v4437
        %v4530 = vpop.f32.mrb[0].mxu0
        %v4531 = vadd.f32 0.0, %v4530
        %v4532 = vpop.f32.mrb[0].mxu0
        %4533 = vmatprep.mubr.f32.mxu0 0.0
        %4534 = vmatmul.mubr.f32.gmra.mrb[0].mxu0 %v4440
        %v4535 = vpop.f32.mrb[0].mxu0
        %v4536 = vadd.f32 0.0, %v4535
        %v4537 = vpop.f32.mrb[0].mxu0
        %4538 = vdwg.mxu0
        %v4540 = vsel %vm3993, %v1154, 0
        %v4543 = vsel %vm3993, %v1290, 0
        %v4546 = vsel %vm3993, %v1426, 0
        %v4549 = vsel %vm3993, %v1562, 0
        %v4552 = vsel %vm3993, %v2398, 0
        %v4555 = vsel %vm3993, %v2534, 0
        %v4558 = vsel %vm3993, %v2670, 0
        %v4561 = vsel %vm3993, %v2806, 0
        %4563 = vmatprep.subr.mxu0 0.0
        %4564 = vmatpush1.xpose.msra.mxu0 %v4552
        %4565 = vmatprep.subr.mxu0 0.0
        %4566 = vmatpush1.xpose.msra.mxu0 %v4555
        %4567 = vmatprep.subr.mxu0 0.0
        %4568 = vmatpush1.xpose.msra.mxu0 %v4558
        %4569 = vmatprep.subr.mxu0 0.0
        %4570 = vmatpush1.xpose.msra.mxu0 %v4561
        %4571 = vmatprep.subr.mxu0 0.0
        %4572 = vmatpush1.xpose.msra.mxu0 0.0
        %4573 = vmatprep.subr.mxu0 0.0
        %4574 = vmatpush1.xpose.msra.mxu0 0.0
        %4575 = vmatprep.subr.mxu0 0.0
        %4576 = vmatpush1.xpose.msra.mxu0 0.0
        %4577 = vmatprep.subr.mxu0 0.0
        %4578 = vmatpush1.xpose.msra.mxu0 0.0
        %4579 = vmatprep.subr.mxu0 0.0
        %4580 = vmatpush1.xpose.msra.mxu0 0.0
        %4581 = vmatprep.subr.mxu0 0.0
        %4582 = vmatpush1.xpose.msra.mxu0 0.0
        %4583 = vmatprep.subr.mxu0 0.0
        %4584 = vmatpush1.xpose.msra.mxu0 0.0
        %4585 = vmatprep.subr.mxu0 0.0
        %4586 = vmatpush1.xpose.msra.mxu0 0.0
        %4587 = vmatprep.subr.mxu0 0.0
        %4588 = vmatpush1.xpose.msra.mxu0 0.0
        %4589 = vmatprep.subr.mxu0 0.0
        %4590 = vmatpush1.xpose.msra.mxu0 0.0
        %4591 = vmatprep.subr.mxu0 0.0
        %4592 = vmatpush1.xpose.msra.mxu0 0.0
        %4593 = vmatprep.subr.mxu0 0.0
        %4594 = vmatpush1.xpose.msra.mxu0 0.0
        %4595 = vmatprep.subr.mxu0 0.0
        %4596 = vmatpush1.xpose.msra.mxu0 0.0
        %4597 = vmatprep.subr.mxu0 0.0
        %4598 = vmatpush1.xpose.msra.mxu0 0.0
        %4599 = vmatprep.subr.mxu0 0.0
        %4600 = vmatpush1.xpose.msra.mxu0 0.0
        %4601 = vmatprep.subr.mxu0 0.0
        %4602 = vmatpush1.xpose.msra.mxu0 0.0
        %4603 = vmatprep.subr.mxu0 0.0
        %4604 = vmatpush1.xpose.msra.mxu0 0.0
        %4605 = vmatprep.subr.mxu0 0.0
        %4606 = vmatpush1.xpose.msra.mxu0 0.0
        %4607 = vmatprep.subr.mxu0 0.0
        %4608 = vmatpush1.xpose.msra.mxu0 0.0
        %4609 = vmatprep.subr.mxu0 0.0
        %4610 = vmatpush1.xpose.msra.mxu0 0.0
        %4611 = vmatprep.subr.mxu0 0.0
        %4612 = vmatpush1.xpose.msra.mxu0 0.0
        %4613 = vmatprep.subr.mxu0 0.0
        %4614 = vmatpush1.xpose.msra.mxu0 0.0
        %4615 = vmatprep.subr.mxu0 0.0
        %4616 = vmatpush1.xpose.msra.mxu0 0.0
        %4617 = vmatprep.subr.mxu0 0.0
        %4618 = vmatpush1.xpose.msra.mxu0 0.0
        %4619 = vmatprep.subr.mxu0 0.0
        %4620 = vmatpush1.xpose.msra.mxu0 0.0
        %4621 = vmatprep.subr.mxu0 0.0
        %4622 = vmatpush1.xpose.msra.mxu0 0.0
        %4623 = vmatprep.subr.mxu0 0.0
        %4624 = vmatpush1.xpose.msra.mxu0 0.0
        %4625 = vmatprep.subr.mxu0 0.0
        %4626 = vmatpush1.xpose.msra.mxu0 0.0
        %4627 = vmatprep.mubr.f32.mxu0 0.0
        %4628 = vmatmul.mubr.f32.gmra.mrb[0].mxu0 %v4540
        %v4629 = vpop.f32.mrb[0].mxu0
        %v4630 = vadd.f32 0.0, %v4629
        %v4631 = vpop.f32.mrb[0].mxu0
        %4632 = vmatprep.mubr.f32.mxu0 0.0
        %4633 = vmatmul.mubr.f32.gmra.mrb[0].mxu0 %v4543
        %v4634 = vpop.f32.mrb[0].mxu0
        %v4635 = vadd.f32 0.0, %v4634
        %v4636 = vpop.f32.mrb[0].mxu0
        %4637 = vmatprep.mubr.f32.mxu0 0.0
        %4638 = vmatmul.mubr.f32.gmra.mrb[0].mxu0 %v4546
        %v4639 = vpop.f32.mrb[0].mxu0
        %v4640 = vadd.f32 0.0, %v4639
        %v4641 = vpop.f32.mrb[0].mxu0
        %4642 = vmatprep.mubr.f32.mxu0 0.0
        %4643 = vmatmul.mubr.f32.gmra.mrb[0].mxu0 %v4549
        %v4644 = vpop.f32.mrb[0].mxu0
        %v4645 = vadd.f32 0.0, %v4644
        %v4646 = vpop.f32.mrb[0].mxu0
        %4647 = vdwg.mxu0
        %v4649 = vsel %vm3993, %v1155, 0
        %v4652 = vsel %vm3993, %v1291, 0
        %v4655 = vsel %vm3993, %v1427, 0
        %v4658 = vsel %vm3993, %v1563, 0
        %v4661 = vsel %vm3993, %v2399, 0
        %v4664 = vsel %vm3993, %v2535, 0
        %v4667 = vsel %vm3993, %v2671, 0
        %v4670 = vsel %vm3993, %v2807, 0
        %4672 = vmatprep.subr.mxu0 0.0
        %4673 = vmatpush1.xpose.msra.mxu0 %v4661
        %4674 = vmatprep.subr.mxu0 0.0
        %4675 = vmatpush1.xpose.msra.mxu0 %v4664
        %4676 = vmatprep.subr.mxu0 0.0
        %4677 = vmatpush1.xpose.msra.mxu0 %v4667
        %4678 = vmatprep.subr.mxu0 0.0
        %4679 = vmatpush1.xpose.msra.mxu0 %v4670
        %4680 = vmatprep.subr.mxu0 0.0
        %4681 = vmatpush1.xpose.msra.mxu0 0.0
        %4682 = vmatprep.subr.mxu0 0.0
        %4683 = vmatpush1.xpose.msra.mxu0 0.0
        %4684 = vmatprep.subr.mxu0 0.0
        %4685 = vmatpush1.xpose.msra.mxu0 0.0
        %4686 = vmatprep.subr.mxu0 0.0
        %4687 = vmatpush1.xpose.msra.mxu0 0.0
        %4688 = vmatprep.subr.mxu0 0.0
        %4689 = vmatpush1.xpose.msra.mxu0 0.0
        %4690 = vmatprep.subr.mxu0 0.0
        %4691 = vmatpush1.xpose.msra.mxu0 0.0
        %4692 = vmatprep.subr.mxu0 0.0
        %4693 = vmatpush1.xpose.msra.mxu0 0.0
        %4694 = vmatprep.subr.mxu0 0.0
        %4695 = vmatpush1.xpose.msra.mxu0 0.0
        %4696 = vmatprep.subr.mxu0 0.0
        %4697 = vmatpush1.xpose.msra.mxu0 0.0
        %4698 = vmatprep.subr.mxu0 0.0
        %4699 = vmatpush1.xpose.msra.mxu0 0.0
        %4700 = vmatprep.subr.mxu0 0.0
        %4701 = vmatpush1.xpose.msra.mxu0 0.0
        %4702 = vmatprep.subr.mxu0 0.0
        %4703 = vmatpush1.xpose.msra.mxu0 0.0
        %4704 = vmatprep.subr.mxu0 0.0
        %4705 = vmatpush1.xpose.msra.mxu0 0.0
        %4706 = vmatprep.subr.mxu0 0.0
        %4707 = vmatpush1.xpose.msra.mxu0 0.0
        %4708 = vmatprep.subr.mxu0 0.0
        %4709 = vmatpush1.xpose.msra.mxu0 0.0
        %4710 = vmatprep.subr.mxu0 0.0
        %4711 = vmatpush1.xpose.msra.mxu0 0.0
        %4712 = vmatprep.subr.mxu0 0.0
        %4713 = vmatpush1.xpose.msra.mxu0 0.0
        %4714 = vmatprep.subr.mxu0 0.0
        %4715 = vmatpush1.xpose.msra.mxu0 0.0
        %4716 = vmatprep.subr.mxu0 0.0
        %4717 = vmatpush1.xpose.msra.mxu0 0.0
        %4718 = vmatprep.subr.mxu0 0.0
        %4719 = vmatpush1.xpose.msra.mxu0 0.0
        %4720 = vmatprep.subr.mxu0 0.0
        %4721 = vmatpush1.xpose.msra.mxu0 0.0
        %4722 = vmatprep.subr.mxu0 0.0
        %4723 = vmatpush1.xpose.msra.mxu0 0.0
        %4724 = vmatprep.subr.mxu0 0.0
        %4725 = vmatpush1.xpose.msra.mxu0 0.0
        %4726 = vmatprep.subr.mxu0 0.0
        %4727 = vmatpush1.xpose.msra.mxu0 0.0
        %4728 = vmatprep.subr.mxu0 0.0
        %4729 = vmatpush1.xpose.msra.mxu0 0.0
        %4730 = vmatprep.subr.mxu0 0.0
        %4731 = vmatpush1.xpose.msra.mxu0 0.0
        %4732 = vmatprep.subr.mxu0 0.0
        %4733 = vmatpush1.xpose.msra.mxu0 0.0
        %4734 = vmatprep.subr.mxu0 0.0
        %4735 = vmatpush1.xpose.msra.mxu0 0.0
        %4736 = vmatprep.mubr.f32.mxu0 0.0
        %4737 = vmatmul.mubr.f32.gmra.mrb[0].mxu0 %v4649
        %v4738 = vpop.f32.mrb[0].mxu0
        %v4739 = vadd.f32 0.0, %v4738
        %v4740 = vpop.f32.mrb[0].mxu0
        %4741 = vmatprep.mubr.f32.mxu0 0.0
        %4742 = vmatmul.mubr.f32.gmra.mrb[0].mxu0 %v4652
        %v4743 = vpop.f32.mrb[0].mxu0
        %v4744 = vadd.f32 0.0, %v4743
        %v4745 = vpop.f32.mrb[0].mxu0
        %4746 = vmatprep.mubr.f32.mxu0 0.0
        %4747 = vmatmul.mubr.f32.gmra.mrb[0].mxu0 %v4655
        %v4748 = vpop.f32.mrb[0].mxu0
        %v4749 = vadd.f32 0.0, %v4748
        %v4750 = vpop.f32.mrb[0].mxu0
        %4751 = vmatprep.mubr.f32.mxu0 0.0
        %4752 = vmatmul.mubr.f32.gmra.mrb[0].mxu0 %v4658
        %v4753 = vpop.f32.mrb[0].mxu0
        %v4754 = vadd.f32 0.0, %v4753
        %v4755 = vpop.f32.mrb[0].mxu0
        %4756 = vdwg.mxu0
        %v4758 = vsel %vm3993, %v1156, 0
        %v4761 = vsel %vm3993, %v1292, 0
        %v4764 = vsel %vm3993, %v1428, 0
        %v4767 = vsel %vm3993, %v1564, 0
        %v4770 = vsel %vm3993, %v2400, 0
        %v4773 = vsel %vm3993, %v2536, 0
        %v4776 = vsel %vm3993, %v2672, 0
        %v4779 = vsel %vm3993, %v2808, 0
        %4781 = vmatprep.subr.mxu0 0.0
        %4782 = vmatpush1.xpose.msra.mxu0 %v4770
        %4783 = vmatprep.subr.mxu0 0.0
        %4784 = vmatpush1.xpose.msra.mxu0 %v4773
        %4785 = vmatprep.subr.mxu0 0.0
        %4786 = vmatpush1.xpose.msra.mxu0 %v4776
        %4787 = vmatprep.subr.mxu0 0.0
        %4788 = vmatpush1.xpose.msra.mxu0 %v4779
        %4789 = vmatprep.subr.mxu0 0.0
        %4790 = vmatpush1.xpose.msra.mxu0 0.0
        %4791 = vmatprep.subr.mxu0 0.0
        %4792 = vmatpush1.xpose.msra.mxu0 0.0
        %4793 = vmatprep.subr.mxu0 0.0
        %4794 = vmatpush1.xpose.msra.mxu0 0.0
        %4795 = vmatprep.subr.mxu0 0.0
        %4796 = vmatpush1.xpose.msra.mxu0 0.0
        %4797 = vmatprep.subr.mxu0 0.0
        %4798 = vmatpush1.xpose.msra.mxu0 0.0
        %4799 = vmatprep.subr.mxu0 0.0
        %4800 = vmatpush1.xpose.msra.mxu0 0.0
        %4801 = vmatprep.subr.mxu0 0.0
        %4802 = vmatpush1.xpose.msra.mxu0 0.0
        %4803 = vmatprep.subr.mxu0 0.0
        %4804 = vmatpush1.xpose.msra.mxu0 0.0
        %4805 = vmatprep.subr.mxu0 0.0
        %4806 = vmatpush1.xpose.msra.mxu0 0.0
        %4807 = vmatprep.subr.mxu0 0.0
        %4808 = vmatpush1.xpose.msra.mxu0 0.0
        %4809 = vmatprep.subr.mxu0 0.0
        %4810 = vmatpush1.xpose.msra.mxu0 0.0
        %4811 = vmatprep.subr.mxu0 0.0
        %4812 = vmatpush1.xpose.msra.mxu0 0.0
        %4813 = vmatprep.subr.mxu0 0.0
        %4814 = vmatpush1.xpose.msra.mxu0 0.0
        %4815 = vmatprep.subr.mxu0 0.0
        %4816 = vmatpush1.xpose.msra.mxu0 0.0
        %4817 = vmatprep.subr.mxu0 0.0
        %4818 = vmatpush1.xpose.msra.mxu0 0.0
        %4819 = vmatprep.subr.mxu0 0.0
        %4820 = vmatpush1.xpose.msra.mxu0 0.0
        %4821 = vmatprep.subr.mxu0 0.0
        %4822 = vmatpush1.xpose.msra.mxu0 0.0
        %4823 = vmatprep.subr.mxu0 0.0
        %4824 = vmatpush1.xpose.msra.mxu0 0.0
        %4825 = vmatprep.subr.mxu0 0.0
        %4826 = vmatpush1.xpose.msra.mxu0 0.0
        %4827 = vmatprep.subr.mxu0 0.0
        %4828 = vmatpush1.xpose.msra.mxu0 0.0
        %4829 = vmatprep.subr.mxu0 0.0
        %4830 = vmatpush1.xpose.msra.mxu0 0.0
        %4831 = vmatprep.subr.mxu0 0.0
        %4832 = vmatpush1.xpose.msra.mxu0 0.0
        %4833 = vmatprep.subr.mxu0 0.0
        %4834 = vmatpush1.xpose.msra.mxu0 0.0
        %4835 = vmatprep.subr.mxu0 0.0
        %4836 = vmatpush1.xpose.msra.mxu0 0.0
        %4837 = vmatprep.subr.mxu0 0.0
        %4838 = vmatpush1.xpose.msra.mxu0 0.0
        %4839 = vmatprep.subr.mxu0 0.0
        %4840 = vmatpush1.xpose.msra.mxu0 0.0
        %4841 = vmatprep.subr.mxu0 0.0
        %4842 = vmatpush1.xpose.msra.mxu0 0.0
        %4843 = vmatprep.subr.mxu0 0.0
        %4844 = vmatpush1.xpose.msra.mxu0 0.0
        %4845 = vmatprep.mubr.f32.mxu0 0.0
        %4846 = vmatmul.mubr.f32.gmra.mrb[0].mxu0 %v4758
        %v4847 = vpop.f32.mrb[0].mxu0
        %v4848 = vadd.f32 0.0, %v4847
        %v4849 = vpop.f32.mrb[0].mxu0
        %4850 = vmatprep.mubr.f32.mxu0 0.0
        %4851 = vmatmul.mubr.f32.gmra.mrb[0].mxu0 %v4761
        %v4852 = vpop.f32.mrb[0].mxu0
        %v4853 = vadd.f32 0.0, %v4852
        %v4854 = vpop.f32.mrb[0].mxu0
        %4855 = vmatprep.mubr.f32.mxu0 0.0
        %4856 = vmatmul.mubr.f32.gmra.mrb[0].mxu0 %v4764
        %v4857 = vpop.f32.mrb[0].mxu0
        %v4858 = vadd.f32 0.0, %v4857
        %v4859 = vpop.f32.mrb[0].mxu0
        %4860 = vmatprep.mubr.f32.mxu0 0.0
        %4861 = vmatmul.mubr.f32.gmra.mrb[0].mxu0 %v4767
        %v4862 = vpop.f32.mrb[0].mxu0
        %v4863 = vadd.f32 0.0, %v4862
        %v4864 = vpop.f32.mrb[0].mxu0
        %4865 = vdwg.mxu0
        %v4866 = vsel %vm287, %v4085, -inf
        %4867 = vmax.xlane.f32.xlu0 %v4866
        %v4868 = vpop.xlane.xlu0 %4867
        %v4869 = vsel %vm287, %v4090, -inf
        %4870 = vmax.xlane.f32.xlu0 %v4869
        %v4871 = vpop.xlane.xlu0 %4870
        %v4872 = vsel %vm287, %v4095, -inf
        %4873 = vmax.xlane.f32.xlu0 %v4872
        %v4874 = vpop.xlane.xlu0 %4873
        %v4875 = vsel %vm287, %v4100, -inf
        %4876 = vmax.xlane.f32.xlu0 %v4875
        %v4877 = vpop.xlane.xlu0 %4876
        %v4878 = vsel %vm287, %v4194, -inf
        %4879 = vmax.xlane.f32.xlu0 %v4878
        %v4880 = vpop.xlane.xlu0 %4879
        %v4881 = vsel %vm287, %v4199, -inf
        %4882 = vmax.xlane.f32.xlu0 %v4881
        %v4883 = vpop.xlane.xlu0 %4882
        %v4884 = vsel %vm287, %v4204, -inf
        %4885 = vmax.xlane.f32.xlu0 %v4884
        %v4886 = vpop.xlane.xlu0 %4885
        %v4887 = vsel %vm287, %v4209, -inf
        %4888 = vmax.xlane.f32.xlu0 %v4887
        %v4889 = vpop.xlane.xlu0 %4888
        %v4890 = vsel %vm287, %v4303, -inf
        %4891 = vmax.xlane.f32.xlu0 %v4890
        %v4892 = vpop.xlane.xlu0 %4891
        %v4893 = vsel %vm287, %v4308, -inf
        %4894 = vmax.xlane.f32.xlu0 %v4893
        %v4895 = vpop.xlane.xlu0 %4894
        %v4896 = vsel %vm287, %v4313, -inf
        %4897 = vmax.xlane.f32.xlu0 %v4896
        %v4898 = vpop.xlane.xlu0 %4897
        %v4899 = vsel %vm287, %v4318, -inf
        %4900 = vmax.xlane.f32.xlu0 %v4899
        %v4901 = vpop.xlane.xlu0 %4900
        %v4902 = vsel %vm287, %v4412, -inf
        %4903 = vmax.xlane.f32.xlu0 %v4902
        %v4904 = vpop.xlane.xlu0 %4903
        %v4905 = vsel %vm287, %v4417, -inf
        %4906 = vmax.xlane.f32.xlu0 %v4905
        %v4907 = vpop.xlane.xlu0 %4906
        %v4908 = vsel %vm287, %v4422, -inf
        %4909 = vmax.xlane.f32.xlu0 %v4908
        %v4910 = vpop.xlane.xlu0 %4909
        %v4911 = vsel %vm287, %v4427, -inf
        %4912 = vmax.xlane.f32.xlu0 %v4911
        %v4913 = vpop.xlane.xlu0 %4912
        %v4914 = vsel %vm287, %v4521, -inf
        %4915 = vmax.xlane.f32.xlu0 %v4914
        %v4916 = vpop.xlane.xlu0 %4915
        %v4917 = vsel %vm287, %v4526, -inf
        %4918 = vmax.xlane.f32.xlu0 %v4917
        %v4919 = vpop.xlane.xlu0 %4918
        %v4920 = vsel %vm287, %v4531, -inf
        %4921 = vmax.xlane.f32.xlu0 %v4920
        %v4922 = vpop.xlane.xlu0 %4921
        %v4923 = vsel %vm287, %v4536, -inf
        %4924 = vmax.xlane.f32.xlu0 %v4923
        %v4925 = vpop.xlane.xlu0 %4924
        %v4926 = vsel %vm287, %v4630, -inf
        %4927 = vmax.xlane.f32.xlu0 %v4926
        %v4928 = vpop.xlane.xlu0 %4927
        %v4929 = vsel %vm287, %v4635, -inf
        %4930 = vmax.xlane.f32.xlu0 %v4929
        %v4931 = vpop.xlane.xlu0 %4930
        %v4932 = vsel %vm287, %v4640, -inf
        %4933 = vmax.xlane.f32.xlu0 %v4932
        %v4934 = vpop.xlane.xlu0 %4933
        %v4935 = vsel %vm287, %v4645, -inf
        %4936 = vmax.xlane.f32.xlu0 %v4935
        %v4937 = vpop.xlane.xlu0 %4936
        %v4938 = vsel %vm287, %v4739, -inf
        %4939 = vmax.xlane.f32.xlu0 %v4938
        %v4940 = vpop.xlane.xlu0 %4939
        %v4941 = vsel %vm287, %v4744, -inf
        %4942 = vmax.xlane.f32.xlu0 %v4941
        %v4943 = vpop.xlane.xlu0 %4942
        %v4944 = vsel %vm287, %v4749, -inf
        %4945 = vmax.xlane.f32.xlu0 %v4944
        %v4946 = vpop.xlane.xlu0 %4945
        %v4947 = vsel %vm287, %v4754, -inf
        %4948 = vmax.xlane.f32.xlu0 %v4947
        %v4949 = vpop.xlane.xlu0 %4948
        %v4950 = vsel %vm287, %v4848, -inf
        %4951 = vmax.xlane.f32.xlu0 %v4950
        %v4952 = vpop.xlane.xlu0 %4951
        %v4953 = vsel %vm287, %v4853, -inf
        %4954 = vmax.xlane.f32.xlu0 %v4953
        %v4955 = vpop.xlane.xlu0 %4954
        %v4956 = vsel %vm287, %v4858, -inf
        %4957 = vmax.xlane.f32.xlu0 %v4956
        %v4958 = vpop.xlane.xlu0 %4957
        %v4959 = vsel %vm287, %v4863, -inf
        %4960 = vmax.xlane.f32.xlu0 %v4959
        %v4961 = vpop.xlane.xlu0 %4960
        %v4962 = vsub.f32 %v4085, %v4868
        %v4963 = vsub.f32 %v4090, %v4871
        %v4964 = vsub.f32 %v4095, %v4874
        %v4965 = vsub.f32 %v4100, %v4877
        %v4966 = vsub.f32 %v4194, %v4880
        %v4967 = vsub.f32 %v4199, %v4883
        %v4968 = vsub.f32 %v4204, %v4886
        %v4969 = vsub.f32 %v4209, %v4889
        %v4970 = vsub.f32 %v4303, %v4892
        %v4971 = vsub.f32 %v4308, %v4895
        %v4972 = vsub.f32 %v4313, %v4898
        %v4973 = vsub.f32 %v4318, %v4901
        %v4974 = vsub.f32 %v4412, %v4904
        %v4975 = vsub.f32 %v4417, %v4907
        %v4976 = vsub.f32 %v4422, %v4910
        %v4977 = vsub.f32 %v4427, %v4913
        %v4978 = vsub.f32 %v4521, %v4916
        %v4979 = vsub.f32 %v4526, %v4919
        %v4980 = vsub.f32 %v4531, %v4922
        %v4981 = vsub.f32 %v4536, %v4925
        %v4982 = vsub.f32 %v4630, %v4928
        %v4983 = vsub.f32 %v4635, %v4931
        %v4984 = vsub.f32 %v4640, %v4934
        %v4985 = vsub.f32 %v4645, %v4937
        %v4986 = vsub.f32 %v4739, %v4940
        %v4987 = vsub.f32 %v4744, %v4943
        %v4988 = vsub.f32 %v4749, %v4946
        %v4989 = vsub.f32 %v4754, %v4949
        %v4990 = vsub.f32 %v4848, %v4952
        %v4991 = vsub.f32 %v4853, %v4955
        %v4992 = vsub.f32 %v4858, %v4958
        %v4993 = vsub.f32 %v4863, %v4961
        %v4994 = vmul.f32 %v4962, 1.442695
        %v4995 = vpow.pop %v4994
        %v4996 = vmul.f32 %v4963, 1.442695
        %v4997 = vpow.pop %v4996
        %v4998 = vmul.f32 %v4964, 1.442695
        %v4999 = vpow.pop %v4998
        %v5000 = vmul.f32 %v4965, 1.442695
        %v5001 = vpow.pop %v5000
        %v5002 = vmul.f32 %v4966, 1.442695
        %v5003 = vpow.pop %v5002
        %v5004 = vmul.f32 %v4967, 1.442695
        %v5005 = vpow.pop %v5004
        %v5006 = vmul.f32 %v4968, 1.442695
        %v5007 = vpow.pop %v5006
        %v5008 = vmul.f32 %v4969, 1.442695
        %v5009 = vpow.pop %v5008
        %v5010 = vmul.f32 %v4970, 1.442695
        %v5011 = vpow.pop %v5010
        %v5012 = vmul.f32 %v4971, 1.442695
        %v5013 = vpow.pop %v5012
        %v5014 = vmul.f32 %v4972, 1.442695
        %v5015 = vpow.pop %v5014
        %v5016 = vmul.f32 %v4973, 1.442695
        %v5017 = vpow.pop %v5016
        %v5018 = vmul.f32 %v4974, 1.442695
        %v5019 = vpow.pop %v5018
        %v5020 = vmul.f32 %v4975, 1.442695
        %v5021 = vpow.pop %v5020
        %v5022 = vmul.f32 %v4976, 1.442695
        %v5023 = vpow.pop %v5022
        %v5024 = vmul.f32 %v4977, 1.442695
        %v5025 = vpow.pop %v5024
        %v5026 = vmul.f32 %v4978, 1.442695
        %v5027 = vpow.pop %v5026
        %v5028 = vmul.f32 %v4979, 1.442695
        %v5029 = vpow.pop %v5028
        %v5030 = vmul.f32 %v4980, 1.442695
        %v5031 = vpow.pop %v5030
        %v5032 = vmul.f32 %v4981, 1.442695
        %v5033 = vpow.pop %v5032
        %v5034 = vmul.f32 %v4982, 1.442695
        %v5035 = vpow.pop %v5034
        %v5036 = vmul.f32 %v4983, 1.442695
        %v5037 = vpow.pop %v5036
        %v5038 = vmul.f32 %v4984, 1.442695
        %v5039 = vpow.pop %v5038
        %v5040 = vmul.f32 %v4985, 1.442695
        %v5041 = vpow.pop %v5040
        %v5042 = vmul.f32 %v4986, 1.442695
        %v5043 = vpow.pop %v5042
        %v5044 = vmul.f32 %v4987, 1.442695
        %v5045 = vpow.pop %v5044
        %v5046 = vmul.f32 %v4988, 1.442695
        %v5047 = vpow.pop %v5046
        %v5048 = vmul.f32 %v4989, 1.442695
        %v5049 = vpow.pop %v5048
        %v5050 = vmul.f32 %v4990, 1.442695
        %v5051 = vpow.pop %v5050
        %v5052 = vmul.f32 %v4991, 1.442695
        %v5053 = vpow.pop %v5052
        %v5054 = vmul.f32 %v4992, 1.442695
        %v5055 = vpow.pop %v5054
        %v5056 = vmul.f32 %v4993, 1.442695
        %v5057 = vpow.pop %v5056
        %v5058 = vsel %vm287, %v4995, 0.0
        %5059 = vadd.xlane.f32.xlu0 %v5058
        %v5060 = vpop.xlane.xlu0 %5059
        %v5061 = vsel %vm287, %v4997, 0.0
        %5062 = vadd.xlane.f32.xlu0 %v5061
        %v5063 = vpop.xlane.xlu0 %5062
        %v5064 = vsel %vm287, %v4999, 0.0
        %5065 = vadd.xlane.f32.xlu0 %v5064
        %v5066 = vpop.xlane.xlu0 %5065
        %v5067 = vsel %vm287, %v5001, 0.0
        %5068 = vadd.xlane.f32.xlu0 %v5067
        %v5069 = vpop.xlane.xlu0 %5068
        %v5070 = vsel %vm287, %v5003, 0.0
        %5071 = vadd.xlane.f32.xlu0 %v5070
        %v5072 = vpop.xlane.xlu0 %5071
        %v5073 = vsel %vm287, %v5005, 0.0
        %5074 = vadd.xlane.f32.xlu0 %v5073
        %v5075 = vpop.xlane.xlu0 %5074
        %v5076 = vsel %vm287, %v5007, 0.0
        %5077 = vadd.xlane.f32.xlu0 %v5076
        %v5078 = vpop.xlane.xlu0 %5077
        %v5079 = vsel %vm287, %v5009, 0.0
        %5080 = vadd.xlane.f32.xlu0 %v5079
        %v5081 = vpop.xlane.xlu0 %5080
        %v5082 = vsel %vm287, %v5011, 0.0
        %5083 = vadd.xlane.f32.xlu0 %v5082
        %v5084 = vpop.xlane.xlu0 %5083
        %v5085 = vsel %vm287, %v5013, 0.0
        %5086 = vadd.xlane.f32.xlu0 %v5085
        %v5087 = vpop.xlane.xlu0 %5086
        %v5088 = vsel %vm287, %v5015, 0.0
        %5089 = vadd.xlane.f32.xlu0 %v5088
        %v5090 = vpop.xlane.xlu0 %5089
        %v5091 = vsel %vm287, %v5017, 0.0
        %5092 = vadd.xlane.f32.xlu0 %v5091
        %v5093 = vpop.xlane.xlu0 %5092
        %v5094 = vsel %vm287, %v5019, 0.0
        %5095 = vadd.xlane.f32.xlu0 %v5094
        %v5096 = vpop.xlane.xlu0 %5095
        %v5097 = vsel %vm287, %v5021, 0.0
        %5098 = vadd.xlane.f32.xlu0 %v5097
        %v5099 = vpop.xlane.xlu0 %5098
        %v5100 = vsel %vm287, %v5023, 0.0
        %5101 = vadd.xlane.f32.xlu0 %v5100
        %v5102 = vpop.xlane.xlu0 %5101
        %v5103 = vsel %vm287, %v5025, 0.0
        %5104 = vadd.xlane.f32.xlu0 %v5103
        %v5105 = vpop.xlane.xlu0 %5104
        %v5106 = vsel %vm287, %v5027, 0.0
        %5107 = vadd.xlane.f32.xlu0 %v5106
        %v5108 = vpop.xlane.xlu0 %5107
        %v5109 = vsel %vm287, %v5029, 0.0
        %5110 = vadd.xlane.f32.xlu0 %v5109
        %v5111 = vpop.xlane.xlu0 %5110
        %v5112 = vsel %vm287, %v5031, 0.0
        %5113 = vadd.xlane.f32.xlu0 %v5112
        %v5114 = vpop.xlane.xlu0 %5113
        %v5115 = vsel %vm287, %v5033, 0.0
        %5116 = vadd.xlane.f32.xlu0 %v5115
        %v5117 = vpop.xlane.xlu0 %5116
        %v5118 = vsel %vm287, %v5035, 0.0
        %5119 = vadd.xlane.f32.xlu0 %v5118
        %v5120 = vpop.xlane.xlu0 %5119
        %v5121 = vsel %vm287, %v5037, 0.0
        %5122 = vadd.xlane.f32.xlu0 %v5121
        %v5123 = vpop.xlane.xlu0 %5122
        %v5124 = vsel %vm287, %v5039, 0.0
        %5125 = vadd.xlane.f32.xlu0 %v5124
        %v5126 = vpop.xlane.xlu0 %5125
        %v5127 = vsel %vm287, %v5041, 0.0
        %5128 = vadd.xlane.f32.xlu0 %v5127
        %v5129 = vpop.xlane.xlu0 %5128
        %v5130 = vsel %vm287, %v5043, 0.0
        %5131 = vadd.xlane.f32.xlu0 %v5130
        %v5132 = vpop.xlane.xlu0 %5131
        %v5133 = vsel %vm287, %v5045, 0.0
        %5134 = vadd.xlane.f32.xlu0 %v5133
        %v5135 = vpop.xlane.xlu0 %5134
        %v5136 = vsel %vm287, %v5047, 0.0
        %5137 = vadd.xlane.f32.xlu0 %v5136
        %v5138 = vpop.xlane.xlu0 %5137
        %v5139 = vsel %vm287, %v5049, 0.0
        %5140 = vadd.xlane.f32.xlu0 %v5139
        %v5141 = vpop.xlane.xlu0 %5140
        %v5142 = vsel %vm287, %v5051, 0.0
        %5143 = vadd.xlane.f32.xlu0 %v5142
        %v5144 = vpop.xlane.xlu0 %5143
        %v5145 = vsel %vm287, %v5053, 0.0
        %5146 = vadd.xlane.f32.xlu0 %v5145
        %v5147 = vpop.xlane.xlu0 %5146
        %v5148 = vsel %vm287, %v5055, 0.0
        %5149 = vadd.xlane.f32.xlu0 %v5148
        %v5150 = vpop.xlane.xlu0 %5149
        %v5151 = vsel %vm287, %v5057, 0.0
        %5152 = vadd.xlane.f32.xlu0 %v5151
        %v5153 = vpop.xlane.xlu0 %5152
        %v5154 = vrcp.pop %v5060
        %v5155 = vrcp.pop %v5063
        %v5156 = vrcp.pop %v5066
        %v5157 = vrcp.pop %v5069
        %v5158 = vrcp.pop %v5072
        %v5159 = vrcp.pop %v5075
        %v5160 = vrcp.pop %v5078
        %v5161 = vrcp.pop %v5081
        %v5162 = vrcp.pop %v5084
        %v5163 = vrcp.pop %v5087
        %v5164 = vrcp.pop %v5090
        %v5165 = vrcp.pop %v5093
        %v5166 = vrcp.pop %v5096
        %v5167 = vrcp.pop %v5099
        %v5168 = vrcp.pop %v5102
        %v5169 = vrcp.pop %v5105
        %v5170 = vrcp.pop %v5108
        %v5171 = vrcp.pop %v5111
        %v5172 = vrcp.pop %v5114
        %v5173 = vrcp.pop %v5117
        %v5174 = vrcp.pop %v5120
        %v5175 = vrcp.pop %v5123
        %v5176 = vrcp.pop %v5126
        %v5177 = vrcp.pop %v5129
        %v5178 = vrcp.pop %v5132
        %v5179 = vrcp.pop %v5135
        %v5180 = vrcp.pop %v5138
        %v5181 = vrcp.pop %v5141
        %v5182 = vrcp.pop %v5144
        %v5183 = vrcp.pop %v5147
        %v5184 = vrcp.pop %v5150
        %v5185 = vrcp.pop %v5153
        %v5186 = vmul.f32 %v4995, %v5154
        %v5187 = vmul.f32 %v4997, %v5155
        %v5188 = vmul.f32 %v4999, %v5156
        %v5189 = vmul.f32 %v5001, %v5157
        %v5190 = vmul.f32 %v5003, %v5158
        %v5191 = vmul.f32 %v5005, %v5159
        %v5192 = vmul.f32 %v5007, %v5160
        %v5193 = vmul.f32 %v5009, %v5161
        %v5194 = vmul.f32 %v5011, %v5162
        %v5195 = vmul.f32 %v5013, %v5163
        %v5196 = vmul.f32 %v5015, %v5164
        %v5197 = vmul.f32 %v5017, %v5165
        %v5198 = vmul.f32 %v5019, %v5166
        %v5199 = vmul.f32 %v5021, %v5167
        %v5200 = vmul.f32 %v5023, %v5168
        %v5201 = vmul.f32 %v5025, %v5169
        %v5202 = vmul.f32 %v5027, %v5170
        %v5203 = vmul.f32 %v5029, %v5171
        %v5204 = vmul.f32 %v5031, %v5172
        %v5205 = vmul.f32 %v5033, %v5173
        %v5206 = vmul.f32 %v5035, %v5174
        %v5207 = vmul.f32 %v5037, %v5175
        %v5208 = vmul.f32 %v5039, %v5176
        %v5209 = vmul.f32 %v5041, %v5177
        %v5210 = vmul.f32 %v5043, %v5178
        %v5211 = vmul.f32 %v5045, %v5179
        %v5212 = vmul.f32 %v5047, %v5180
        %v5213 = vmul.f32 %v5049, %v5181
        %v5214 = vmul.f32 %v5051, %v5182
        %v5215 = vmul.f32 %v5053, %v5183
        %v5216 = vmul.f32 %v5055, %v5184
        %v5217 = vmul.f32 %v5057, %v5185
        %v5219 = vsel %vm287, %v5186, 0
        %v5222 = vsel %vm287, %v5187, 0
        %v5225 = vsel %vm287, %v5188, 0
        %v5228 = vsel %vm287, %v5189, 0
        %5230 = vmatprep.subr.mxu0 0.0
        %5231 = vmatpush1.msra.mxu0 %v3577
        %5232 = vmatprep.subr.mxu0 0.0
        %5233 = vmatpush1.msra.mxu0 %v3713
        %5234 = vmatprep.subr.mxu0 0.0
        %5235 = vmatpush1.msra.mxu0 %v3849
        %5236 = vmatprep.subr.mxu0 0.0
        %5237 = vmatpush1.msra.mxu0 %v3985
        %5238 = vmatprep.subr.mxu0 0.0
        %5239 = vmatpush1.msra.mxu0 0.0
        %5240 = vmatprep.subr.mxu0 0.0
        %5241 = vmatpush1.msra.mxu0 0.0
        %5242 = vmatprep.subr.mxu0 0.0
        %5243 = vmatpush1.msra.mxu0 0.0
        %5244 = vmatprep.subr.mxu0 0.0
        %5245 = vmatpush1.msra.mxu0 0.0
        %5246 = vmatprep.subr.mxu0 0.0
        %5247 = vmatpush1.msra.mxu0 0.0
        %5248 = vmatprep.subr.mxu0 0.0
        %5249 = vmatpush1.msra.mxu0 0.0
        %5250 = vmatprep.subr.mxu0 0.0
        %5251 = vmatpush1.msra.mxu0 0.0
        %5252 = vmatprep.subr.mxu0 0.0
        %5253 = vmatpush1.msra.mxu0 0.0
        %5254 = vmatprep.subr.mxu0 0.0
        %5255 = vmatpush1.msra.mxu0 0.0
        %5256 = vmatprep.subr.mxu0 0.0
        %5257 = vmatpush1.msra.mxu0 0.0
        %5258 = vmatprep.subr.mxu0 0.0
        %5259 = vmatpush1.msra.mxu0 0.0
        %5260 = vmatprep.subr.mxu0 0.0
        %5261 = vmatpush1.msra.mxu0 0.0
        %5262 = vmatprep.subr.mxu0 0.0
        %5263 = vmatpush1.msra.mxu0 0.0
        %5264 = vmatprep.subr.mxu0 0.0
        %5265 = vmatpush1.msra.mxu0 0.0
        %5266 = vmatprep.subr.mxu0 0.0
        %5267 = vmatpush1.msra.mxu0 0.0
        %5268 = vmatprep.subr.mxu0 0.0
        %5269 = vmatpush1.msra.mxu0 0.0
        %5270 = vmatprep.subr.mxu0 0.0
        %5271 = vmatpush1.msra.mxu0 0.0
        %5272 = vmatprep.subr.mxu0 0.0
        %5273 = vmatpush1.msra.mxu0 0.0
        %5274 = vmatprep.subr.mxu0 0.0
        %5275 = vmatpush1.msra.mxu0 0.0
        %5276 = vmatprep.subr.mxu0 0.0
        %5277 = vmatpush1.msra.mxu0 0.0
        %5278 = vmatprep.subr.mxu0 0.0
        %5279 = vmatpush1.msra.mxu0 0.0
        %5280 = vmatprep.subr.mxu0 0.0
        %5281 = vmatpush1.msra.mxu0 0.0
        %5282 = vmatprep.subr.mxu0 0.0
        %5283 = vmatpush1.msra.mxu0 0.0
        %5284 = vmatprep.subr.mxu0 0.0
        %5285 = vmatpush1.msra.mxu0 0.0
        %5286 = vmatprep.subr.mxu0 0.0
        %5287 = vmatpush1.msra.mxu0 0.0
        %5288 = vmatprep.subr.mxu0 0.0
        %5289 = vmatpush1.msra.mxu0 0.0
        %5290 = vmatprep.subr.mxu0 0.0
        %5291 = vmatpush1.msra.mxu0 0.0
        %5292 = vmatprep.subr.mxu0 0.0
        %5293 = vmatpush1.msra.mxu0 0.0
        %5294 = vmatprep.mubr.f32.mxu0 0.0
        %5295 = vmatmul.mubr.f32.gmra.mrb[0].mxu0 %v5219
        %v5296 = vpop.f32.mrb[0].mxu0
        %v5297 = vadd.f32 0.0, %v5296
        %v5298 = vpop.f32.mrb[0].mxu0
        %5299 = vmatprep.mubr.f32.mxu0 0.0
        %5300 = vmatmul.mubr.f32.gmra.mrb[0].mxu0 %v5222
        %v5301 = vpop.f32.mrb[0].mxu0
        %v5302 = vadd.f32 0.0, %v5301
        %v5303 = vpop.f32.mrb[0].mxu0
        %5304 = vmatprep.mubr.f32.mxu0 0.0
        %5305 = vmatmul.mubr.f32.gmra.mrb[0].mxu0 %v5225
        %v5306 = vpop.f32.mrb[0].mxu0
        %v5307 = vadd.f32 0.0, %v5306
        %v5308 = vpop.f32.mrb[0].mxu0
        %5309 = vmatprep.mubr.f32.mxu0 0.0
        %5310 = vmatmul.mubr.f32.gmra.mrb[0].mxu0 %v5228
        %v5311 = vpop.f32.mrb[0].mxu0
        %v5312 = vadd.f32 0.0, %v5311
        %v5313 = vpop.f32.mrb[0].mxu0
        %5314 = vdwg.mxu0
        %v5316 = vsel %vm287, %v5190, 0
        %v5319 = vsel %vm287, %v5191, 0
        %v5322 = vsel %vm287, %v5192, 0
        %v5325 = vsel %vm287, %v5193, 0
        %5327 = vmatprep.subr.mxu0 0.0
        %5328 = vmatpush1.msra.mxu0 %v3578
        %5329 = vmatprep.subr.mxu0 0.0
        %5330 = vmatpush1.msra.mxu0 %v3714
        %5331 = vmatprep.subr.mxu0 0.0
        %5332 = vmatpush1.msra.mxu0 %v3850
        %5333 = vmatprep.subr.mxu0 0.0
        %5334 = vmatpush1.msra.mxu0 %v3986
        %5335 = vmatprep.subr.mxu0 0.0
        %5336 = vmatpush1.msra.mxu0 0.0
        %5337 = vmatprep.subr.mxu0 0.0
        %5338 = vmatpush1.msra.mxu0 0.0
        %5339 = vmatprep.subr.mxu0 0.0
        %5340 = vmatpush1.msra.mxu0 0.0
        %5341 = vmatprep.subr.mxu0 0.0
        %5342 = vmatpush1.msra.mxu0 0.0
        %5343 = vmatprep.subr.mxu0 0.0
        %5344 = vmatpush1.msra.mxu0 0.0
        %5345 = vmatprep.subr.mxu0 0.0
        %5346 = vmatpush1.msra.mxu0 0.0
        %5347 = vmatprep.subr.mxu0 0.0
        %5348 = vmatpush1.msra.mxu0 0.0
        %5349 = vmatprep.subr.mxu0 0.0
        %5350 = vmatpush1.msra.mxu0 0.0
        %5351 = vmatprep.subr.mxu0 0.0
        %5352 = vmatpush1.msra.mxu0 0.0
        %5353 = vmatprep.subr.mxu0 0.0
        %5354 = vmatpush1.msra.mxu0 0.0
        %5355 = vmatprep.subr.mxu0 0.0
        %5356 = vmatpush1.msra.mxu0 0.0
        %5357 = vmatprep.subr.mxu0 0.0
        %5358 = vmatpush1.msra.mxu0 0.0
        %5359 = vmatprep.subr.mxu0 0.0
        %5360 = vmatpush1.msra.mxu0 0.0
        %5361 = vmatprep.subr.mxu0 0.0
        %5362 = vmatpush1.msra.mxu0 0.0
        %5363 = vmatprep.subr.mxu0 0.0
        %5364 = vmatpush1.msra.mxu0 0.0
        %5365 = vmatprep.subr.mxu0 0.0
        %5366 = vmatpush1.msra.mxu0 0.0
        %5367 = vmatprep.subr.mxu0 0.0
        %5368 = vmatpush1.msra.mxu0 0.0
        %5369 = vmatprep.subr.mxu0 0.0
        %5370 = vmatpush1.msra.mxu0 0.0
        %5371 = vmatprep.subr.mxu0 0.0
        %5372 = vmatpush1.msra.mxu0 0.0
        %5373 = vmatprep.subr.mxu0 0.0
        %5374 = vmatpush1.msra.mxu0 0.0
        %5375 = vmatprep.subr.mxu0 0.0
        %5376 = vmatpush1.msra.mxu0 0.0
        %5377 = vmatprep.subr.mxu0 0.0
        %5378 = vmatpush1.msra.mxu0 0.0
        %5379 = vmatprep.subr.mxu0 0.0
        %5380 = vmatpush1.msra.mxu0 0.0
        %5381 = vmatprep.subr.mxu0 0.0
        %5382 = vmatpush1.msra.mxu0 0.0
        %5383 = vmatprep.subr.mxu0 0.0
        %5384 = vmatpush1.msra.mxu0 0.0
        %5385 = vmatprep.subr.mxu0 0.0
        %5386 = vmatpush1.msra.mxu0 0.0
        %5387 = vmatprep.subr.mxu0 0.0
        %5388 = vmatpush1.msra.mxu0 0.0
        %5389 = vmatprep.subr.mxu0 0.0
        %5390 = vmatpush1.msra.mxu0 0.0
        %5391 = vmatprep.mubr.f32.mxu0 0.0
        %5392 = vmatmul.mubr.f32.gmra.mrb[0].mxu0 %v5316
        %v5393 = vpop.f32.mrb[0].mxu0
        %v5394 = vadd.f32 0.0, %v5393
        %v5395 = vpop.f32.mrb[0].mxu0
        %5396 = vmatprep.mubr.f32.mxu0 0.0
        %5397 = vmatmul.mubr.f32.gmra.mrb[0].mxu0 %v5319
        %v5398 = vpop.f32.mrb[0].mxu0
        %v5399 = vadd.f32 0.0, %v5398
        %v5400 = vpop.f32.mrb[0].mxu0
        %5401 = vmatprep.mubr.f32.mxu0 0.0
        %5402 = vmatmul.mubr.f32.gmra.mrb[0].mxu0 %v5322
        %v5403 = vpop.f32.mrb[0].mxu0
        %v5404 = vadd.f32 0.0, %v5403
        %v5405 = vpop.f32.mrb[0].mxu0
        %5406 = vmatprep.mubr.f32.mxu0 0.0
        %5407 = vmatmul.mubr.f32.gmra.mrb[0].mxu0 %v5325
        %v5408 = vpop.f32.mrb[0].mxu0
        %v5409 = vadd.f32 0.0, %v5408
        %v5410 = vpop.f32.mrb[0].mxu0
        %5411 = vdwg.mxu0
        %v5413 = vsel %vm287, %v5194, 0
        %v5416 = vsel %vm287, %v5195, 0
        %v5419 = vsel %vm287, %v5196, 0
        %v5422 = vsel %vm287, %v5197, 0
        %5424 = vmatprep.subr.mxu0 0.0
        %5425 = vmatpush1.msra.mxu0 %v3579
        %5426 = vmatprep.subr.mxu0 0.0
        %5427 = vmatpush1.msra.mxu0 %v3715
        %5428 = vmatprep.subr.mxu0 0.0
        %5429 = vmatpush1.msra.mxu0 %v3851
        %5430 = vmatprep.subr.mxu0 0.0
        %5431 = vmatpush1.msra.mxu0 %v3987
        %5432 = vmatprep.subr.mxu0 0.0
        %5433 = vmatpush1.msra.mxu0 0.0
        %5434 = vmatprep.subr.mxu0 0.0
        %5435 = vmatpush1.msra.mxu0 0.0
        %5436 = vmatprep.subr.mxu0 0.0
        %5437 = vmatpush1.msra.mxu0 0.0
        %5438 = vmatprep.subr.mxu0 0.0
        %5439 = vmatpush1.msra.mxu0 0.0
        %5440 = vmatprep.subr.mxu0 0.0
        %5441 = vmatpush1.msra.mxu0 0.0
        %5442 = vmatprep.subr.mxu0 0.0
        %5443 = vmatpush1.msra.mxu0 0.0
        %5444 = vmatprep.subr.mxu0 0.0
        %5445 = vmatpush1.msra.mxu0 0.0
        %5446 = vmatprep.subr.mxu0 0.0
        %5447 = vmatpush1.msra.mxu0 0.0
        %5448 = vmatprep.subr.mxu0 0.0
        %5449 = vmatpush1.msra.mxu0 0.0
        %5450 = vmatprep.subr.mxu0 0.0
        %5451 = vmatpush1.msra.mxu0 0.0
        %5452 = vmatprep.subr.mxu0 0.0
        %5453 = vmatpush1.msra.mxu0 0.0
        %5454 = vmatprep.subr.mxu0 0.0
        %5455 = vmatpush1.msra.mxu0 0.0
        %5456 = vmatprep.subr.mxu0 0.0
        %5457 = vmatpush1.msra.mxu0 0.0
        %5458 = vmatprep.subr.mxu0 0.0
        %5459 = vmatpush1.msra.mxu0 0.0
        %5460 = vmatprep.subr.mxu0 0.0
        %5461 = vmatpush1.msra.mxu0 0.0
        %5462 = vmatprep.subr.mxu0 0.0
        %5463 = vmatpush1.msra.mxu0 0.0
        %5464 = vmatprep.subr.mxu0 0.0
        %5465 = vmatpush1.msra.mxu0 0.0
        %5466 = vmatprep.subr.mxu0 0.0
        %5467 = vmatpush1.msra.mxu0 0.0
        %5468 = vmatprep.subr.mxu0 0.0
        %5469 = vmatpush1.msra.mxu0 0.0
        %5470 = vmatprep.subr.mxu0 0.0
        %5471 = vmatpush1.msra.mxu0 0.0
        %5472 = vmatprep.subr.mxu0 0.0
        %5473 = vmatpush1.msra.mxu0 0.0
        %5474 = vmatprep.subr.mxu0 0.0
        %5475 = vmatpush1.msra.mxu0 0.0
        %5476 = vmatprep.subr.mxu0 0.0
        %5477 = vmatpush1.msra.mxu0 0.0
        %5478 = vmatprep.subr.mxu0 0.0
        %5479 = vmatpush1.msra.mxu0 0.0
        %5480 = vmatprep.subr.mxu0 0.0
        %5481 = vmatpush1.msra.mxu0 0.0
        %5482 = vmatprep.subr.mxu0 0.0
        %5483 = vmatpush1.msra.mxu0 0.0
        %5484 = vmatprep.subr.mxu0 0.0
        %5485 = vmatpush1.msra.mxu0 0.0
        %5486 = vmatprep.subr.mxu0 0.0
        %5487 = vmatpush1.msra.mxu0 0.0
        %5488 = vmatprep.mubr.f32.mxu0 0.0
        %5489 = vmatmul.mubr.f32.gmra.mrb[0].mxu0 %v5413
        %v5490 = vpop.f32.mrb[0].mxu0
        %v5491 = vadd.f32 0.0, %v5490
        %v5492 = vpop.f32.mrb[0].mxu0
        %5493 = vmatprep.mubr.f32.mxu0 0.0
        %5494 = vmatmul.mubr.f32.gmra.mrb[0].mxu0 %v5416
        %v5495 = vpop.f32.mrb[0].mxu0
        %v5496 = vadd.f32 0.0, %v5495
        %v5497 = vpop.f32.mrb[0].mxu0
        %5498 = vmatprep.mubr.f32.mxu0 0.0
        %5499 = vmatmul.mubr.f32.gmra.mrb[0].mxu0 %v5419
        %v5500 = vpop.f32.mrb[0].mxu0
        %v5501 = vadd.f32 0.0, %v5500
        %v5502 = vpop.f32.mrb[0].mxu0
        %5503 = vmatprep.mubr.f32.mxu0 0.0
        %5504 = vmatmul.mubr.f32.gmra.mrb[0].mxu0 %v5422
        %v5505 = vpop.f32.mrb[0].mxu0
        %v5506 = vadd.f32 0.0, %v5505
        %v5507 = vpop.f32.mrb[0].mxu0
        %5508 = vdwg.mxu0
        %v5510 = vsel %vm287, %v5198, 0
        %v5513 = vsel %vm287, %v5199, 0
        %v5516 = vsel %vm287, %v5200, 0
        %v5519 = vsel %vm287, %v5201, 0
        %5521 = vmatprep.subr.mxu0 0.0
        %5522 = vmatpush1.msra.mxu0 %v3580
        %5523 = vmatprep.subr.mxu0 0.0
        %5524 = vmatpush1.msra.mxu0 %v3716
        %5525 = vmatprep.subr.mxu0 0.0
        %5526 = vmatpush1.msra.mxu0 %v3852
        %5527 = vmatprep.subr.mxu0 0.0
        %5528 = vmatpush1.msra.mxu0 %v3988
        %5529 = vmatprep.subr.mxu0 0.0
        %5530 = vmatpush1.msra.mxu0 0.0
        %5531 = vmatprep.subr.mxu0 0.0
        %5532 = vmatpush1.msra.mxu0 0.0
        %5533 = vmatprep.subr.mxu0 0.0
        %5534 = vmatpush1.msra.mxu0 0.0
        %5535 = vmatprep.subr.mxu0 0.0
        %5536 = vmatpush1.msra.mxu0 0.0
        %5537 = vmatprep.subr.mxu0 0.0
        %5538 = vmatpush1.msra.mxu0 0.0
        %5539 = vmatprep.subr.mxu0 0.0
        %5540 = vmatpush1.msra.mxu0 0.0
        %5541 = vmatprep.subr.mxu0 0.0
        %5542 = vmatpush1.msra.mxu0 0.0
        %5543 = vmatprep.subr.mxu0 0.0
        %5544 = vmatpush1.msra.mxu0 0.0
        %5545 = vmatprep.subr.mxu0 0.0
        %5546 = vmatpush1.msra.mxu0 0.0
        %5547 = vmatprep.subr.mxu0 0.0
        %5548 = vmatpush1.msra.mxu0 0.0
        %5549 = vmatprep.subr.mxu0 0.0
        %5550 = vmatpush1.msra.mxu0 0.0
        %5551 = vmatprep.subr.mxu0 0.0
        %5552 = vmatpush1.msra.mxu0 0.0
        %5553 = vmatprep.subr.mxu0 0.0
        %5554 = vmatpush1.msra.mxu0 0.0
        %5555 = vmatprep.subr.mxu0 0.0
        %5556 = vmatpush1.msra.mxu0 0.0
        %5557 = vmatprep.subr.mxu0 0.0
        %5558 = vmatpush1.msra.mxu0 0.0
        %5559 = vmatprep.subr.mxu0 0.0
        %5560 = vmatpush1.msra.mxu0 0.0
        %5561 = vmatprep.subr.mxu0 0.0
        %5562 = vmatpush1.msra.mxu0 0.0
        %5563 = vmatprep.subr.mxu0 0.0
        %5564 = vmatpush1.msra.mxu0 0.0
        %5565 = vmatprep.subr.mxu0 0.0
        %5566 = vmatpush1.msra.mxu0 0.0
        %5567 = vmatprep.subr.mxu0 0.0
        %5568 = vmatpush1.msra.mxu0 0.0
        %5569 = vmatprep.subr.mxu0 0.0
        %5570 = vmatpush1.msra.mxu0 0.0
        %5571 = vmatprep.subr.mxu0 0.0
        %5572 = vmatpush1.msra.mxu0 0.0
        %5573 = vmatprep.subr.mxu0 0.0
        %5574 = vmatpush1.msra.mxu0 0.0
        %5575 = vmatprep.subr.mxu0 0.0
        %5576 = vmatpush1.msra.mxu0 0.0
        %5577 = vmatprep.subr.mxu0 0.0
        %5578 = vmatpush1.msra.mxu0 0.0
        %5579 = vmatprep.subr.mxu0 0.0
        %5580 = vmatpush1.msra.mxu0 0.0
        %5581 = vmatprep.subr.mxu0 0.0
        %5582 = vmatpush1.msra.mxu0 0.0
        %5583 = vmatprep.subr.mxu0 0.0
        %5584 = vmatpush1.msra.mxu0 0.0
        %5585 = vmatprep.mubr.f32.mxu0 0.0
        %5586 = vmatmul.mubr.f32.gmra.mrb[0].mxu0 %v5510
        %v5587 = vpop.f32.mrb[0].mxu0
        %v5588 = vadd.f32 0.0, %v5587
        %v5589 = vpop.f32.mrb[0].mxu0
        %5590 = vmatprep.mubr.f32.mxu0 0.0
        %5591 = vmatmul.mubr.f32.gmra.mrb[0].mxu0 %v5513
        %v5592 = vpop.f32.mrb[0].mxu0
        %v5593 = vadd.f32 0.0, %v5592
        %v5594 = vpop.f32.mrb[0].mxu0
        %5595 = vmatprep.mubr.f32.mxu0 0.0
        %5596 = vmatmul.mubr.f32.gmra.mrb[0].mxu0 %v5516
        %v5597 = vpop.f32.mrb[0].mxu0
        %v5598 = vadd.f32 0.0, %v5597
        %v5599 = vpop.f32.mrb[0].mxu0
        %5600 = vmatprep.mubr.f32.mxu0 0.0
        %5601 = vmatmul.mubr.f32.gmra.mrb[0].mxu0 %v5519
        %v5602 = vpop.f32.mrb[0].mxu0
        %v5603 = vadd.f32 0.0, %v5602
        %v5604 = vpop.f32.mrb[0].mxu0
        %5605 = vdwg.mxu0
        %v5607 = vsel %vm287, %v5202, 0
        %v5610 = vsel %vm287, %v5203, 0
        %v5613 = vsel %vm287, %v5204, 0
        %v5616 = vsel %vm287, %v5205, 0
        %5618 = vmatprep.subr.mxu0 0.0
        %5619 = vmatpush1.msra.mxu0 %v3581
        %5620 = vmatprep.subr.mxu0 0.0
        %5621 = vmatpush1.msra.mxu0 %v3717
        %5622 = vmatprep.subr.mxu0 0.0
        %5623 = vmatpush1.msra.mxu0 %v3853
        %5624 = vmatprep.subr.mxu0 0.0
        %5625 = vmatpush1.msra.mxu0 %v3989
        %5626 = vmatprep.subr.mxu0 0.0
        %5627 = vmatpush1.msra.mxu0 0.0
        %5628 = vmatprep.subr.mxu0 0.0
        %5629 = vmatpush1.msra.mxu0 0.0
        %5630 = vmatprep.subr.mxu0 0.0
        %5631 = vmatpush1.msra.mxu0 0.0
        %5632 = vmatprep.subr.mxu0 0.0
        %5633 = vmatpush1.msra.mxu0 0.0
        %5634 = vmatprep.subr.mxu0 0.0
        %5635 = vmatpush1.msra.mxu0 0.0
        %5636 = vmatprep.subr.mxu0 0.0
        %5637 = vmatpush1.msra.mxu0 0.0
        %5638 = vmatprep.subr.mxu0 0.0
        %5639 = vmatpush1.msra.mxu0 0.0
        %5640 = vmatprep.subr.mxu0 0.0
        %5641 = vmatpush1.msra.mxu0 0.0
        %5642 = vmatprep.subr.mxu0 0.0
        %5643 = vmatpush1.msra.mxu0 0.0
        %5644 = vmatprep.subr.mxu0 0.0
        %5645 = vmatpush1.msra.mxu0 0.0
        %5646 = vmatprep.subr.mxu0 0.0
        %5647 = vmatpush1.msra.mxu0 0.0
        %5648 = vmatprep.subr.mxu0 0.0
        %5649 = vmatpush1.msra.mxu0 0.0
        %5650 = vmatprep.subr.mxu0 0.0
        %5651 = vmatpush1.msra.mxu0 0.0
        %5652 = vmatprep.subr.mxu0 0.0
        %5653 = vmatpush1.msra.mxu0 0.0
        %5654 = vmatprep.subr.mxu0 0.0
        %5655 = vmatpush1.msra.mxu0 0.0
        %5656 = vmatprep.subr.mxu0 0.0
        %5657 = vmatpush1.msra.mxu0 0.0
        %5658 = vmatprep.subr.mxu0 0.0
        %5659 = vmatpush1.msra.mxu0 0.0
        %5660 = vmatprep.subr.mxu0 0.0
        %5661 = vmatpush1.msra.mxu0 0.0
        %5662 = vmatprep.subr.mxu0 0.0
        %5663 = vmatpush1.msra.mxu0 0.0
        %5664 = vmatprep.subr.mxu0 0.0
        %5665 = vmatpush1.msra.mxu0 0.0
        %5666 = vmatprep.subr.mxu0 0.0
        %5667 = vmatpush1.msra.mxu0 0.0
        %5668 = vmatprep.subr.mxu0 0.0
        %5669 = vmatpush1.msra.mxu0 0.0
        %5670 = vmatprep.subr.mxu0 0.0
        %5671 = vmatpush1.msra.mxu0 0.0
        %5672 = vmatprep.subr.mxu0 0.0
        %5673 = vmatpush1.msra.mxu0 0.0
        %5674 = vmatprep.subr.mxu0 0.0
        %5675 = vmatpush1.msra.mxu0 0.0
        %5676 = vmatprep.subr.mxu0 0.0
        %5677 = vmatpush1.msra.mxu0 0.0
        %5678 = vmatprep.subr.mxu0 0.0
        %5679 = vmatpush1.msra.mxu0 0.0
        %5680 = vmatprep.subr.mxu0 0.0
        %5681 = vmatpush1.msra.mxu0 0.0
        %5682 = vmatprep.mubr.f32.mxu0 0.0
        %5683 = vmatmul.mubr.f32.gmra.mrb[0].mxu0 %v5607
        %v5684 = vpop.f32.mrb[0].mxu0
        %v5685 = vadd.f32 0.0, %v5684
        %v5686 = vpop.f32.mrb[0].mxu0
        %5687 = vmatprep.mubr.f32.mxu0 0.0
        %5688 = vmatmul.mubr.f32.gmra.mrb[0].mxu0 %v5610
        %v5689 = vpop.f32.mrb[0].mxu0
        %v5690 = vadd.f32 0.0, %v5689
        %v5691 = vpop.f32.mrb[0].mxu0
        %5692 = vmatprep.mubr.f32.mxu0 0.0
        %5693 = vmatmul.mubr.f32.gmra.mrb[0].mxu0 %v5613
        %v5694 = vpop.f32.mrb[0].mxu0
        %v5695 = vadd.f32 0.0, %v5694
        %v5696 = vpop.f32.mrb[0].mxu0
        %5697 = vmatprep.mubr.f32.mxu0 0.0
        %5698 = vmatmul.mubr.f32.gmra.mrb[0].mxu0 %v5616
        %v5699 = vpop.f32.mrb[0].mxu0
        %v5700 = vadd.f32 0.0, %v5699
        %v5701 = vpop.f32.mrb[0].mxu0
        %5702 = vdwg.mxu0
        %v5704 = vsel %vm287, %v5206, 0
        %v5707 = vsel %vm287, %v5207, 0
        %v5710 = vsel %vm287, %v5208, 0
        %v5713 = vsel %vm287, %v5209, 0
        %5715 = vmatprep.subr.mxu0 0.0
        %5716 = vmatpush1.msra.mxu0 %v3582
        %5717 = vmatprep.subr.mxu0 0.0
        %5718 = vmatpush1.msra.mxu0 %v3718
        %5719 = vmatprep.subr.mxu0 0.0
        %5720 = vmatpush1.msra.mxu0 %v3854
        %5721 = vmatprep.subr.mxu0 0.0
        %5722 = vmatpush1.msra.mxu0 %v3990
        %5723 = vmatprep.subr.mxu0 0.0
        %5724 = vmatpush1.msra.mxu0 0.0
        %5725 = vmatprep.subr.mxu0 0.0
        %5726 = vmatpush1.msra.mxu0 0.0
        %5727 = vmatprep.subr.mxu0 0.0
        %5728 = vmatpush1.msra.mxu0 0.0
        %5729 = vmatprep.subr.mxu0 0.0
        %5730 = vmatpush1.msra.mxu0 0.0
        %5731 = vmatprep.subr.mxu0 0.0
        %5732 = vmatpush1.msra.mxu0 0.0
        %5733 = vmatprep.subr.mxu0 0.0
        %5734 = vmatpush1.msra.mxu0 0.0
        %5735 = vmatprep.subr.mxu0 0.0
        %5736 = vmatpush1.msra.mxu0 0.0
        %5737 = vmatprep.subr.mxu0 0.0
        %5738 = vmatpush1.msra.mxu0 0.0
        %5739 = vmatprep.subr.mxu0 0.0
        %5740 = vmatpush1.msra.mxu0 0.0
        %5741 = vmatprep.subr.mxu0 0.0
        %5742 = vmatpush1.msra.mxu0 0.0
        %5743 = vmatprep.subr.mxu0 0.0
        %5744 = vmatpush1.msra.mxu0 0.0
        %5745 = vmatprep.subr.mxu0 0.0
        %5746 = vmatpush1.msra.mxu0 0.0
        %5747 = vmatprep.subr.mxu0 0.0
        %5748 = vmatpush1.msra.mxu0 0.0
        %5749 = vmatprep.subr.mxu0 0.0
        %5750 = vmatpush1.msra.mxu0 0.0
        %5751 = vmatprep.subr.mxu0 0.0
        %5752 = vmatpush1.msra.mxu0 0.0
        %5753 = vmatprep.subr.mxu0 0.0
        %5754 = vmatpush1.msra.mxu0 0.0
        %5755 = vmatprep.subr.mxu0 0.0
        %5756 = vmatpush1.msra.mxu0 0.0
        %5757 = vmatprep.subr.mxu0 0.0
        %5758 = vmatpush1.msra.mxu0 0.0
        %5759 = vmatprep.subr.mxu0 0.0
        %5760 = vmatpush1.msra.mxu0 0.0
        %5761 = vmatprep.subr.mxu0 0.0
        %5762 = vmatpush1.msra.mxu0 0.0
        %5763 = vmatprep.subr.mxu0 0.0
        %5764 = vmatpush1.msra.mxu0 0.0
        %5765 = vmatprep.subr.mxu0 0.0
        %5766 = vmatpush1.msra.mxu0 0.0
        %5767 = vmatprep.subr.mxu0 0.0
        %5768 = vmatpush1.msra.mxu0 0.0
        %5769 = vmatprep.subr.mxu0 0.0
        %5770 = vmatpush1.msra.mxu0 0.0
        %5771 = vmatprep.subr.mxu0 0.0
        %5772 = vmatpush1.msra.mxu0 0.0
        %5773 = vmatprep.subr.mxu0 0.0
        %5774 = vmatpush1.msra.mxu0 0.0
        %5775 = vmatprep.subr.mxu0 0.0
        %5776 = vmatpush1.msra.mxu0 0.0
        %5777 = vmatprep.subr.mxu0 0.0
        %5778 = vmatpush1.msra.mxu0 0.0
        %5779 = vmatprep.mubr.f32.mxu0 0.0
        %5780 = vmatmul.mubr.f32.gmra.mrb[0].mxu0 %v5704
        %v5781 = vpop.f32.mrb[0].mxu0
        %v5782 = vadd.f32 0.0, %v5781
        %v5783 = vpop.f32.mrb[0].mxu0
        %5784 = vmatprep.mubr.f32.mxu0 0.0
        %5785 = vmatmul.mubr.f32.gmra.mrb[0].mxu0 %v5707
        %v5786 = vpop.f32.mrb[0].mxu0
        %v5787 = vadd.f32 0.0, %v5786
        %v5788 = vpop.f32.mrb[0].mxu0
        %5789 = vmatprep.mubr.f32.mxu0 0.0
        %5790 = vmatmul.mubr.f32.gmra.mrb[0].mxu0 %v5710
        %v5791 = vpop.f32.mrb[0].mxu0
        %v5792 = vadd.f32 0.0, %v5791
        %v5793 = vpop.f32.mrb[0].mxu0
        %5794 = vmatprep.mubr.f32.mxu0 0.0
        %5795 = vmatmul.mubr.f32.gmra.mrb[0].mxu0 %v5713
        %v5796 = vpop.f32.mrb[0].mxu0
        %v5797 = vadd.f32 0.0, %v5796
        %v5798 = vpop.f32.mrb[0].mxu0
        %5799 = vdwg.mxu0
        %v5801 = vsel %vm287, %v5210, 0
        %v5804 = vsel %vm287, %v5211, 0
        %v5807 = vsel %vm287, %v5212, 0
        %v5810 = vsel %vm287, %v5213, 0
        %5812 = vmatprep.subr.mxu0 0.0
        %5813 = vmatpush1.msra.mxu0 %v3583
        %5814 = vmatprep.subr.mxu0 0.0
        %5815 = vmatpush1.msra.mxu0 %v3719
        %5816 = vmatprep.subr.mxu0 0.0
        %5817 = vmatpush1.msra.mxu0 %v3855
        %5818 = vmatprep.subr.mxu0 0.0
        %5819 = vmatpush1.msra.mxu0 %v3991
        %5820 = vmatprep.subr.mxu0 0.0
        %5821 = vmatpush1.msra.mxu0 0.0
        %5822 = vmatprep.subr.mxu0 0.0
        %5823 = vmatpush1.msra.mxu0 0.0
        %5824 = vmatprep.subr.mxu0 0.0
        %5825 = vmatpush1.msra.mxu0 0.0
        %5826 = vmatprep.subr.mxu0 0.0
        %5827 = vmatpush1.msra.mxu0 0.0
        %5828 = vmatprep.subr.mxu0 0.0
        %5829 = vmatpush1.msra.mxu0 0.0
        %5830 = vmatprep.subr.mxu0 0.0
        %5831 = vmatpush1.msra.mxu0 0.0
        %5832 = vmatprep.subr.mxu0 0.0
        %5833 = vmatpush1.msra.mxu0 0.0
        %5834 = vmatprep.subr.mxu0 0.0
        %5835 = vmatpush1.msra.mxu0 0.0
        %5836 = vmatprep.subr.mxu0 0.0
        %5837 = vmatpush1.msra.mxu0 0.0
        %5838 = vmatprep.subr.mxu0 0.0
        %5839 = vmatpush1.msra.mxu0 0.0
        %5840 = vmatprep.subr.mxu0 0.0
        %5841 = vmatpush1.msra.mxu0 0.0
        %5842 = vmatprep.subr.mxu0 0.0
        %5843 = vmatpush1.msra.mxu0 0.0
        %5844 = vmatprep.subr.mxu0 0.0
        %5845 = vmatpush1.msra.mxu0 0.0
        %5846 = vmatprep.subr.mxu0 0.0
        %5847 = vmatpush1.msra.mxu0 0.0
        %5848 = vmatprep.subr.mxu0 0.0
        %5849 = vmatpush1.msra.mxu0 0.0
        %5850 = vmatprep.subr.mxu0 0.0
        %5851 = vmatpush1.msra.mxu0 0.0
        %5852 = vmatprep.subr.mxu0 0.0
        %5853 = vmatpush1.msra.mxu0 0.0
        %5854 = vmatprep.subr.mxu0 0.0
        %5855 = vmatpush1.msra.mxu0 0.0
        %5856 = vmatprep.subr.mxu0 0.0
        %5857 = vmatpush1.msra.mxu0 0.0
        %5858 = vmatprep.subr.mxu0 0.0
        %5859 = vmatpush1.msra.mxu0 0.0
        %5860 = vmatprep.subr.mxu0 0.0
        %5861 = vmatpush1.msra.mxu0 0.0
        %5862 = vmatprep.subr.mxu0 0.0
        %5863 = vmatpush1.msra.mxu0 0.0
        %5864 = vmatprep.subr.mxu0 0.0
        %5865 = vmatpush1.msra.mxu0 0.0
        %5866 = vmatprep.subr.mxu0 0.0
        %5867 = vmatpush1.msra.mxu0 0.0
        %5868 = vmatprep.subr.mxu0 0.0
        %5869 = vmatpush1.msra.mxu0 0.0
        %5870 = vmatprep.subr.mxu0 0.0
        %5871 = vmatpush1.msra.mxu0 0.0
        %5872 = vmatprep.subr.mxu0 0.0
        %5873 = vmatpush1.msra.mxu0 0.0
        %5874 = vmatprep.subr.mxu0 0.0
        %5875 = vmatpush1.msra.mxu0 0.0
        %5876 = vmatprep.mubr.f32.mxu0 0.0
        %5877 = vmatmul.mubr.f32.gmra.mrb[0].mxu0 %v5801
        %v5878 = vpop.f32.mrb[0].mxu0
        %v5879 = vadd.f32 0.0, %v5878
        %v5880 = vpop.f32.mrb[0].mxu0
        %5881 = vmatprep.mubr.f32.mxu0 0.0
        %5882 = vmatmul.mubr.f32.gmra.mrb[0].mxu0 %v5804
        %v5883 = vpop.f32.mrb[0].mxu0
        %v5884 = vadd.f32 0.0, %v5883
        %v5885 = vpop.f32.mrb[0].mxu0
        %5886 = vmatprep.mubr.f32.mxu0 0.0
        %5887 = vmatmul.mubr.f32.gmra.mrb[0].mxu0 %v5807
        %v5888 = vpop.f32.mrb[0].mxu0
        %v5889 = vadd.f32 0.0, %v5888
        %v5890 = vpop.f32.mrb[0].mxu0
        %5891 = vmatprep.mubr.f32.mxu0 0.0
        %5892 = vmatmul.mubr.f32.gmra.mrb[0].mxu0 %v5810
        %v5893 = vpop.f32.mrb[0].mxu0
        %v5894 = vadd.f32 0.0, %v5893
        %v5895 = vpop.f32.mrb[0].mxu0
        %5896 = vdwg.mxu0
        %v5898 = vsel %vm287, %v5214, 0
        %v5901 = vsel %vm287, %v5215, 0
        %v5904 = vsel %vm287, %v5216, 0
        %v5907 = vsel %vm287, %v5217, 0
        %5909 = vmatprep.subr.mxu0 0.0
        %5910 = vmatpush1.msra.mxu0 %v3584
        %5911 = vmatprep.subr.mxu0 0.0
        %5912 = vmatpush1.msra.mxu0 %v3720
        %5913 = vmatprep.subr.mxu0 0.0
        %5914 = vmatpush1.msra.mxu0 %v3856
        %5915 = vmatprep.subr.mxu0 0.0
        %5916 = vmatpush1.msra.mxu0 %v3992
        %5917 = vmatprep.subr.mxu0 0.0
        %5918 = vmatpush1.msra.mxu0 0.0
        %5919 = vmatprep.subr.mxu0 0.0
        %5920 = vmatpush1.msra.mxu0 0.0
        %5921 = vmatprep.subr.mxu0 0.0
        %5922 = vmatpush1.msra.mxu0 0.0
        %5923 = vmatprep.subr.mxu0 0.0
        %5924 = vmatpush1.msra.mxu0 0.0
        %5925 = vmatprep.subr.mxu0 0.0
        %5926 = vmatpush1.msra.mxu0 0.0
        %5927 = vmatprep.subr.mxu0 0.0
        %5928 = vmatpush1.msra.mxu0 0.0
        %5929 = vmatprep.subr.mxu0 0.0
        %5930 = vmatpush1.msra.mxu0 0.0
        %5931 = vmatprep.subr.mxu0 0.0
        %5932 = vmatpush1.msra.mxu0 0.0
        %5933 = vmatprep.subr.mxu0 0.0
        %5934 = vmatpush1.msra.mxu0 0.0
        %5935 = vmatprep.subr.mxu0 0.0
        %5936 = vmatpush1.msra.mxu0 0.0
        %5937 = vmatprep.subr.mxu0 0.0
        %5938 = vmatpush1.msra.mxu0 0.0
        %5939 = vmatprep.subr.mxu0 0.0
        %5940 = vmatpush1.msra.mxu0 0.0
        %5941 = vmatprep.subr.mxu0 0.0
        %5942 = vmatpush1.msra.mxu0 0.0
        %5943 = vmatprep.subr.mxu0 0.0
        %5944 = vmatpush1.msra.mxu0 0.0
        %5945 = vmatprep.subr.mxu0 0.0
        %5946 = vmatpush1.msra.mxu0 0.0
        %5947 = vmatprep.subr.mxu0 0.0
        %5948 = vmatpush1.msra.mxu0 0.0
        %5949 = vmatprep.subr.mxu0 0.0
        %5950 = vmatpush1.msra.mxu0 0.0
        %5951 = vmatprep.subr.mxu0 0.0
        %5952 = vmatpush1.msra.mxu0 0.0
        %5953 = vmatprep.subr.mxu0 0.0
        %5954 = vmatpush1.msra.mxu0 0.0
        %5955 = vmatprep.subr.mxu0 0.0
        %5956 = vmatpush1.msra.mxu0 0.0
        %5957 = vmatprep.subr.mxu0 0.0
        %5958 = vmatpush1.msra.mxu0 0.0
        %5959 = vmatprep.subr.mxu0 0.0
        %5960 = vmatpush1.msra.mxu0 0.0
        %5961 = vmatprep.subr.mxu0 0.0
        %5962 = vmatpush1.msra.mxu0 0.0
        %5963 = vmatprep.subr.mxu0 0.0
        %5964 = vmatpush1.msra.mxu0 0.0
        %5965 = vmatprep.subr.mxu0 0.0
        %5966 = vmatpush1.msra.mxu0 0.0
        %5967 = vmatprep.subr.mxu0 0.0
        %5968 = vmatpush1.msra.mxu0 0.0
        %5969 = vmatprep.subr.mxu0 0.0
        %5970 = vmatpush1.msra.mxu0 0.0
        %5971 = vmatprep.subr.mxu0 0.0
        %5972 = vmatpush1.msra.mxu0 0.0
        %5973 = vmatprep.mubr.f32.mxu0 0.0
        %5974 = vmatmul.mubr.f32.gmra.mrb[0].mxu0 %v5898
        %v5975 = vpop.f32.mrb[0].mxu0
        %v5976 = vadd.f32 0.0, %v5975
        %v5977 = vpop.f32.mrb[0].mxu0
        %5978 = vmatprep.mubr.f32.mxu0 0.0
        %5979 = vmatmul.mubr.f32.gmra.mrb[0].mxu0 %v5901
        %v5980 = vpop.f32.mrb[0].mxu0
        %v5981 = vadd.f32 0.0, %v5980
        %v5982 = vpop.f32.mrb[0].mxu0
        %5983 = vmatprep.mubr.f32.mxu0 0.0
        %5984 = vmatmul.mubr.f32.gmra.mrb[0].mxu0 %v5904
        %v5985 = vpop.f32.mrb[0].mxu0
        %v5986 = vadd.f32 0.0, %v5985
        %v5987 = vpop.f32.mrb[0].mxu0
        %5988 = vmatprep.mubr.f32.mxu0 0.0
        %5989 = vmatmul.mubr.f32.gmra.mrb[0].mxu0 %v5907
        %v5990 = vpop.f32.mrb[0].mxu0
        %v5991 = vadd.f32 0.0, %v5990
        %v5992 = vpop.f32.mrb[0].mxu0
        %5993 = vdwg.mxu0
        %v5994 = vcombine.low %v5297, %v5491
        %v5995 = vcombine.high %v5297, %v5491
        %v5997 = vunpack.c.l.s4 1983009808
        %v5998 = vunpack.c.0.s8 %v5997
        %v5999 = vlaneseq
        %v6000 = vshrl.u32 %v5999, 7
        %v6001 = vsub.s32 %v5998, %v6000
        %v6002 = vrot.slane %v5994, %v6001
        %v6004 = vunpack.c.l.s4 1983009808
        %v6005 = vunpack.c.0.s8 %v6004
        %v6006 = vlaneseq
        %v6007 = vshrl.u32 %v6006, 7
        %v6008 = vsub.s32 %v6005, %v6007
        %v6009 = vrot.slane %v5995, %v6008
        %v6010 = vcombine.low %v5394, %v5588
        %v6011 = vcombine.high %v5394, %v5588
        %v6013 = vunpack.c.l.s4 1983009808
        %v6014 = vunpack.c.0.s8 %v6013
        %v6015 = vlaneseq
        %v6016 = vshrl.u32 %v6015, 7
        %v6017 = vsub.s32 %v6014, %v6016
        %v6018 = vrot.slane %v6010, %v6017
        %v6020 = vunpack.c.l.s4 1983009808
        %v6021 = vunpack.c.0.s8 %v6020
        %v6022 = vlaneseq
        %v6023 = vshrl.u32 %v6022, 7
        %v6024 = vsub.s32 %v6021, %v6023
        %v6025 = vrot.slane %v6011, %v6024
        %v6026 = vcombine.low %v5685, %v5879
        %v6027 = vcombine.high %v5685, %v5879
        %v6029 = vunpack.c.l.s4 1983009808
        %v6030 = vunpack.c.0.s8 %v6029
        %v6031 = vlaneseq
        %v6032 = vshrl.u32 %v6031, 7
        %v6033 = vsub.s32 %v6030, %v6032
        %v6034 = vrot.slane %v6026, %v6033
        %v6036 = vunpack.c.l.s4 1983009808
        %v6037 = vunpack.c.0.s8 %v6036
        %v6038 = vlaneseq
        %v6039 = vshrl.u32 %v6038, 7
        %v6040 = vsub.s32 %v6037, %v6039
        %v6041 = vrot.slane %v6027, %v6040
        %v6042 = vcombine.low %v5782, %v5976
        %v6043 = vcombine.high %v5782, %v5976
        %v6045 = vunpack.c.l.s4 1983009808
        %v6046 = vunpack.c.0.s8 %v6045
        %v6047 = vlaneseq
        %v6048 = vshrl.u32 %v6047, 7
        %v6049 = vsub.s32 %v6046, %v6048
        %v6050 = vrot.slane %v6042, %v6049
        %v6052 = vunpack.c.l.s4 1983009808
        %v6053 = vunpack.c.0.s8 %v6052
        %v6054 = vlaneseq
        %v6055 = vshrl.u32 %v6054, 7
        %v6056 = vsub.s32 %v6053, %v6055
        %v6057 = vrot.slane %v6043, %v6056
        %v6058 = vcombine.low %v6002, %v6018
        %v6059 = vcombine.high %v6002, %v6018
        %v6061 = vunpack.c.l.s4 1934713408
        %v6062 = vunpack.c.0.s8 %v6061
        %v6063 = vlaneseq
        %v6064 = vshrl.u32 %v6063, 7
        %v6065 = vsub.s32 %v6062, %v6064
        %v6066 = vrot.slane %v6058, %v6065
        %v6068 = vunpack.c.l.s4 1934713408
        %v6069 = vunpack.c.0.s8 %v6068
        %v6070 = vlaneseq
        %v6071 = vshrl.u32 %v6070, 7
        %v6072 = vsub.s32 %v6069, %v6071
        %v6073 = vrot.slane %v6059, %v6072
        %v6074 = vcombine.low %v6009, %v6025
        %v6075 = vcombine.high %v6009, %v6025
        %v6077 = vunpack.c.l.s4 1934713408
        %v6078 = vunpack.c.0.s8 %v6077
        %v6079 = vlaneseq
        %v6080 = vshrl.u32 %v6079, 7
        %v6081 = vsub.s32 %v6078, %v6080
        %v6082 = vrot.slane %v6074, %v6081
        %v6084 = vunpack.c.l.s4 1934713408
        %v6085 = vunpack.c.0.s8 %v6084
        %v6086 = vlaneseq
        %v6087 = vshrl.u32 %v6086, 7
        %v6088 = vsub.s32 %v6085, %v6087
        %v6089 = vrot.slane %v6075, %v6088
        %v6090 = vcombine.low %v6034, %v6050
        %v6091 = vcombine.high %v6034, %v6050
        %v6093 = vunpack.c.l.s4 1934713408
        %v6094 = vunpack.c.0.s8 %v6093
        %v6095 = vlaneseq
        %v6096 = vshrl.u32 %v6095, 7
        %v6097 = vsub.s32 %v6094, %v6096
        %v6098 = vrot.slane %v6090, %v6097
        %v6100 = vunpack.c.l.s4 1934713408
        %v6101 = vunpack.c.0.s8 %v6100
        %v6102 = vlaneseq
        %v6103 = vshrl.u32 %v6102, 7
        %v6104 = vsub.s32 %v6101, %v6103
        %v6105 = vrot.slane %v6091, %v6104
        %v6106 = vcombine.low %v6041, %v6057
        %v6107 = vcombine.high %v6041, %v6057
        %v6109 = vunpack.c.l.s4 1934713408
        %v6110 = vunpack.c.0.s8 %v6109
        %v6111 = vlaneseq
        %v6112 = vshrl.u32 %v6111, 7
        %v6113 = vsub.s32 %v6110, %v6112
        %v6114 = vrot.slane %v6106, %v6113
        %v6116 = vunpack.c.l.s4 1934713408
        %v6117 = vunpack.c.0.s8 %v6116
        %v6118 = vlaneseq
        %v6119 = vshrl.u32 %v6118, 7
        %v6120 = vsub.s32 %v6117, %v6119
        %v6121 = vrot.slane %v6107, %v6120
        %v6122 = vcombine.low %v6066, %v6098
        %v6123 = vcombine.high %v6066, %v6098
        %v6124 = vcombine.low %v6073, %v6105
        %v6125 = vcombine.high %v6073, %v6105
        %v6126 = vcombine.low %v6082, %v6114
        %v6127 = vcombine.high %v6082, %v6114
        %v6128 = vcombine.low %v6089, %v6121
        %v6129 = vcombine.high %v6089, %v6121
        %v6130 = vcombine.low %v5302, %v5496
        %v6131 = vcombine.high %v5302, %v5496
        %v6133 = vunpack.c.l.s4 1983009808
        %v6134 = vunpack.c.0.s8 %v6133
        %v6135 = vlaneseq
        %v6136 = vshrl.u32 %v6135, 7
        %v6137 = vsub.s32 %v6134, %v6136
        %v6138 = vrot.slane %v6130, %v6137
        %v6140 = vunpack.c.l.s4 1983009808
        %v6141 = vunpack.c.0.s8 %v6140
        %v6142 = vlaneseq
        %v6143 = vshrl.u32 %v6142, 7
        %v6144 = vsub.s32 %v6141, %v6143
        %v6145 = vrot.slane %v6131, %v6144
        %v6146 = vcombine.low %v5399, %v5593
        %v6147 = vcombine.high %v5399, %v5593
        %v6149 = vunpack.c.l.s4 1983009808
        %v6150 = vunpack.c.0.s8 %v6149
        %v6151 = vlaneseq
        %v6152 = vshrl.u32 %v6151, 7
        %v6153 = vsub.s32 %v6150, %v6152
        %v6154 = vrot.slane %v6146, %v6153
        %v6156 = vunpack.c.l.s4 1983009808
        %v6157 = vunpack.c.0.s8 %v6156
        %v6158 = vlaneseq
        %v6159 = vshrl.u32 %v6158, 7
        %v6160 = vsub.s32 %v6157, %v6159
        %v6161 = vrot.slane %v6147, %v6160
        %v6162 = vcombine.low %v5690, %v5884
        %v6163 = vcombine.high %v5690, %v5884
        %v6165 = vunpack.c.l.s4 1983009808
        %v6166 = vunpack.c.0.s8 %v6165
        %v6167 = vlaneseq
        %v6168 = vshrl.u32 %v6167, 7
        %v6169 = vsub.s32 %v6166, %v6168
        %v6170 = vrot.slane %v6162, %v6169
        %v6172 = vunpack.c.l.s4 1983009808
        %v6173 = vunpack.c.0.s8 %v6172
        %v6174 = vlaneseq
        %v6175 = vshrl.u32 %v6174, 7
        %v6176 = vsub.s32 %v6173, %v6175
        %v6177 = vrot.slane %v6163, %v6176
        %v6178 = vcombine.low %v5787, %v5981
        %v6179 = vcombine.high %v5787, %v5981
        %v6181 = vunpack.c.l.s4 1983009808
        %v6182 = vunpack.c.0.s8 %v6181
        %v6183 = vlaneseq
        %v6184 = vshrl.u32 %v6183, 7
        %v6185 = vsub.s32 %v6182, %v6184
        %v6186 = vrot.slane %v6178, %v6185
        %v6188 = vunpack.c.l.s4 1983009808
        %v6189 = vunpack.c.0.s8 %v6188
        %v6190 = vlaneseq
        %v6191 = vshrl.u32 %v6190, 7
        %v6192 = vsub.s32 %v6189, %v6191
        %v6193 = vrot.slane %v6179, %v6192
        %v6194 = vcombine.low %v6138, %v6154
        %v6195 = vcombine.high %v6138, %v6154
        %v6197 = vunpack.c.l.s4 1934713408
        %v6198 = vunpack.c.0.s8 %v6197
        %v6199 = vlaneseq
        %v6200 = vshrl.u32 %v6199, 7
        %v6201 = vsub.s32 %v6198, %v6200
        %v6202 = vrot.slane %v6194, %v6201
        %v6204 = vunpack.c.l.s4 1934713408
        %v6205 = vunpack.c.0.s8 %v6204
        %v6206 = vlaneseq
        %v6207 = vshrl.u32 %v6206, 7
        %v6208 = vsub.s32 %v6205, %v6207
        %v6209 = vrot.slane %v6195, %v6208
        %v6210 = vcombine.low %v6145, %v6161
        %v6211 = vcombine.high %v6145, %v6161
        %v6213 = vunpack.c.l.s4 1934713408
        %v6214 = vunpack.c.0.s8 %v6213
        %v6215 = vlaneseq
        %v6216 = vshrl.u32 %v6215, 7
        %v6217 = vsub.s32 %v6214, %v6216
        %v6218 = vrot.slane %v6210, %v6217
        %v6220 = vunpack.c.l.s4 1934713408
        %v6221 = vunpack.c.0.s8 %v6220
        %v6222 = vlaneseq
        %v6223 = vshrl.u32 %v6222, 7
        %v6224 = vsub.s32 %v6221, %v6223
        %v6225 = vrot.slane %v6211, %v6224
        %v6226 = vcombine.low %v6170, %v6186
        %v6227 = vcombine.high %v6170, %v6186
        %v6229 = vunpack.c.l.s4 1934713408
        %v6230 = vunpack.c.0.s8 %v6229
        %v6231 = vlaneseq
        %v6232 = vshrl.u32 %v6231, 7
        %v6233 = vsub.s32 %v6230, %v6232
        %v6234 = vrot.slane %v6226, %v6233
        %v6236 = vunpack.c.l.s4 1934713408
        %v6237 = vunpack.c.0.s8 %v6236
        %v6238 = vlaneseq
        %v6239 = vshrl.u32 %v6238, 7
        %v6240 = vsub.s32 %v6237, %v6239
        %v6241 = vrot.slane %v6227, %v6240
        %v6242 = vcombine.low %v6177, %v6193
        %v6243 = vcombine.high %v6177, %v6193
        %v6245 = vunpack.c.l.s4 1934713408
        %v6246 = vunpack.c.0.s8 %v6245
        %v6247 = vlaneseq
        %v6248 = vshrl.u32 %v6247, 7
        %v6249 = vsub.s32 %v6246, %v6248
        %v6250 = vrot.slane %v6242, %v6249
        %v6252 = vunpack.c.l.s4 1934713408
        %v6253 = vunpack.c.0.s8 %v6252
        %v6254 = vlaneseq
        %v6255 = vshrl.u32 %v6254, 7
        %v6256 = vsub.s32 %v6253, %v6255
        %v6257 = vrot.slane %v6243, %v6256
        %v6258 = vcombine.low %v6202, %v6234
        %v6259 = vcombine.high %v6202, %v6234
        %v6260 = vcombine.low %v6209, %v6241
        %v6261 = vcombine.high %v6209, %v6241
        %v6262 = vcombine.low %v6218, %v6250
        %v6263 = vcombine.high %v6218, %v6250
        %v6264 = vcombine.low %v6225, %v6257
        %v6265 = vcombine.high %v6225, %v6257
        %v6266 = vcombine.low %v5307, %v5501
        %v6267 = vcombine.high %v5307, %v5501
        %v6269 = vunpack.c.l.s4 1983009808
        %v6270 = vunpack.c.0.s8 %v6269
        %v6271 = vlaneseq
        %v6272 = vshrl.u32 %v6271, 7
        %v6273 = vsub.s32 %v6270, %v6272
        %v6274 = vrot.slane %v6266, %v6273
        %v6276 = vunpack.c.l.s4 1983009808
        %v6277 = vunpack.c.0.s8 %v6276
        %v6278 = vlaneseq
        %v6279 = vshrl.u32 %v6278, 7
        %v6280 = vsub.s32 %v6277, %v6279
        %v6281 = vrot.slane %v6267, %v6280
        %v6282 = vcombine.low %v5404, %v5598
        %v6283 = vcombine.high %v5404, %v5598
        %v6285 = vunpack.c.l.s4 1983009808
        %v6286 = vunpack.c.0.s8 %v6285
        %v6287 = vlaneseq
        %v6288 = vshrl.u32 %v6287, 7
        %v6289 = vsub.s32 %v6286, %v6288
        %v6290 = vrot.slane %v6282, %v6289
        %v6292 = vunpack.c.l.s4 1983009808
        %v6293 = vunpack.c.0.s8 %v6292
        %v6294 = vlaneseq
        %v6295 = vshrl.u32 %v6294, 7
        %v6296 = vsub.s32 %v6293, %v6295
        %v6297 = vrot.slane %v6283, %v6296
        %v6298 = vcombine.low %v5695, %v5889
        %v6299 = vcombine.high %v5695, %v5889
        %v6301 = vunpack.c.l.s4 1983009808
        %v6302 = vunpack.c.0.s8 %v6301
        %v6303 = vlaneseq
        %v6304 = vshrl.u32 %v6303, 7
        %v6305 = vsub.s32 %v6302, %v6304
        %v6306 = vrot.slane %v6298, %v6305
        %v6308 = vunpack.c.l.s4 1983009808
        %v6309 = vunpack.c.0.s8 %v6308
        %v6310 = vlaneseq
        %v6311 = vshrl.u32 %v6310, 7
        %v6312 = vsub.s32 %v6309, %v6311
        %v6313 = vrot.slane %v6299, %v6312
        %v6314 = vcombine.low %v5792, %v5986
        %v6315 = vcombine.high %v5792, %v5986
        %v6317 = vunpack.c.l.s4 1983009808
        %v6318 = vunpack.c.0.s8 %v6317
        %v6319 = vlaneseq
        %v6320 = vshrl.u32 %v6319, 7
        %v6321 = vsub.s32 %v6318, %v6320
        %v6322 = vrot.slane %v6314, %v6321
        %v6324 = vunpack.c.l.s4 1983009808
        %v6325 = vunpack.c.0.s8 %v6324
        %v6326 = vlaneseq
        %v6327 = vshrl.u32 %v6326, 7
        %v6328 = vsub.s32 %v6325, %v6327
        %v6329 = vrot.slane %v6315, %v6328
        %v6330 = vcombine.low %v6274, %v6290
        %v6331 = vcombine.high %v6274, %v6290
        %v6333 = vunpack.c.l.s4 1934713408
        %v6334 = vunpack.c.0.s8 %v6333
        %v6335 = vlaneseq
        %v6336 = vshrl.u32 %v6335, 7
        %v6337 = vsub.s32 %v6334, %v6336
        %v6338 = vrot.slane %v6330, %v6337
        %v6340 = vunpack.c.l.s4 1934713408
        %v6341 = vunpack.c.0.s8 %v6340
        %v6342 = vlaneseq
        %v6343 = vshrl.u32 %v6342, 7
        %v6344 = vsub.s32 %v6341, %v6343
        %v6345 = vrot.slane %v6331, %v6344
        %v6346 = vcombine.low %v6281, %v6297
        %v6347 = vcombine.high %v6281, %v6297
        %v6349 = vunpack.c.l.s4 1934713408
        %v6350 = vunpack.c.0.s8 %v6349
        %v6351 = vlaneseq
        %v6352 = vshrl.u32 %v6351, 7
        %v6353 = vsub.s32 %v6350, %v6352
        %v6354 = vrot.slane %v6346, %v6353
        %v6356 = vunpack.c.l.s4 1934713408
        %v6357 = vunpack.c.0.s8 %v6356
        %v6358 = vlaneseq
        %v6359 = vshrl.u32 %v6358, 7
        %v6360 = vsub.s32 %v6357, %v6359
        %v6361 = vrot.slane %v6347, %v6360
        %v6362 = vcombine.low %v6306, %v6322
        %v6363 = vcombine.high %v6306, %v6322
        %v6365 = vunpack.c.l.s4 1934713408
        %v6366 = vunpack.c.0.s8 %v6365
        %v6367 = vlaneseq
        %v6368 = vshrl.u32 %v6367, 7
        %v6369 = vsub.s32 %v6366, %v6368
        %v6370 = vrot.slane %v6362, %v6369
        %v6372 = vunpack.c.l.s4 1934713408
        %v6373 = vunpack.c.0.s8 %v6372
        %v6374 = vlaneseq
        %v6375 = vshrl.u32 %v6374, 7
        %v6376 = vsub.s32 %v6373, %v6375
        %v6377 = vrot.slane %v6363, %v6376
        %v6378 = vcombine.low %v6313, %v6329
        %v6379 = vcombine.high %v6313, %v6329
        %v6381 = vunpack.c.l.s4 1934713408
        %v6382 = vunpack.c.0.s8 %v6381
        %v6383 = vlaneseq
        %v6384 = vshrl.u32 %v6383, 7
        %v6385 = vsub.s32 %v6382, %v6384
        %v6386 = vrot.slane %v6378, %v6385
        %v6388 = vunpack.c.l.s4 1934713408
        %v6389 = vunpack.c.0.s8 %v6388
        %v6390 = vlaneseq
        %v6391 = vshrl.u32 %v6390, 7
        %v6392 = vsub.s32 %v6389, %v6391
        %v6393 = vrot.slane %v6379, %v6392
        %v6394 = vcombine.low %v6338, %v6370
        %v6395 = vcombine.high %v6338, %v6370
        %v6396 = vcombine.low %v6345, %v6377
        %v6397 = vcombine.high %v6345, %v6377
        %v6398 = vcombine.low %v6354, %v6386
        %v6399 = vcombine.high %v6354, %v6386
        %v6400 = vcombine.low %v6361, %v6393
        %v6401 = vcombine.high %v6361, %v6393
        %v6402 = vcombine.low %v5312, %v5506
        %v6403 = vcombine.high %v5312, %v5506
        %v6405 = vunpack.c.l.s4 1983009808
        %v6406 = vunpack.c.0.s8 %v6405
        %v6407 = vlaneseq
        %v6408 = vshrl.u32 %v6407, 7
        %v6409 = vsub.s32 %v6406, %v6408
        %v6410 = vrot.slane %v6402, %v6409
        %v6412 = vunpack.c.l.s4 1983009808
        %v6413 = vunpack.c.0.s8 %v6412
        %v6414 = vlaneseq
        %v6415 = vshrl.u32 %v6414, 7
        %v6416 = vsub.s32 %v6413, %v6415
        %v6417 = vrot.slane %v6403, %v6416
        %v6418 = vcombine.low %v5409, %v5603
        %v6419 = vcombine.high %v5409, %v5603
        %v6421 = vunpack.c.l.s4 1983009808
        %v6422 = vunpack.c.0.s8 %v6421
        %v6423 = vlaneseq
        %v6424 = vshrl.u32 %v6423, 7
        %v6425 = vsub.s32 %v6422, %v6424
        %v6426 = vrot.slane %v6418, %v6425
        %v6428 = vunpack.c.l.s4 1983009808
        %v6429 = vunpack.c.0.s8 %v6428
        %v6430 = vlaneseq
        %v6431 = vshrl.u32 %v6430, 7
        %v6432 = vsub.s32 %v6429, %v6431
        %v6433 = vrot.slane %v6419, %v6432
        %v6434 = vcombine.low %v5700, %v5894
        %v6435 = vcombine.high %v5700, %v5894
        %v6437 = vunpack.c.l.s4 1983009808
        %v6438 = vunpack.c.0.s8 %v6437
        %v6439 = vlaneseq
        %v6440 = vshrl.u32 %v6439, 7
        %v6441 = vsub.s32 %v6438, %v6440
        %v6442 = vrot.slane %v6434, %v6441
        %v6444 = vunpack.c.l.s4 1983009808
        %v6445 = vunpack.c.0.s8 %v6444
        %v6446 = vlaneseq
        %v6447 = vshrl.u32 %v6446, 7
        %v6448 = vsub.s32 %v6445, %v6447
        %v6449 = vrot.slane %v6435, %v6448
        %v6450 = vcombine.low %v5797, %v5991
        %v6451 = vcombine.high %v5797, %v5991
        %v6453 = vunpack.c.l.s4 1983009808
        %v6454 = vunpack.c.0.s8 %v6453
        %v6455 = vlaneseq
        %v6456 = vshrl.u32 %v6455, 7
        %v6457 = vsub.s32 %v6454, %v6456
        %v6458 = vrot.slane %v6450, %v6457
        %v6460 = vunpack.c.l.s4 1983009808
        %v6461 = vunpack.c.0.s8 %v6460
        %v6462 = vlaneseq
        %v6463 = vshrl.u32 %v6462, 7
        %v6464 = vsub.s32 %v6461, %v6463
        %v6465 = vrot.slane %v6451, %v6464
        %v6466 = vcombine.low %v6410, %v6426
        %v6467 = vcombine.high %v6410, %v6426
        %v6469 = vunpack.c.l.s4 1934713408
        %v6470 = vunpack.c.0.s8 %v6469
        %v6471 = vlaneseq
        %v6472 = vshrl.u32 %v6471, 7
        %v6473 = vsub.s32 %v6470, %v6472
        %v6474 = vrot.slane %v6466, %v6473
        %v6476 = vunpack.c.l.s4 1934713408
        %v6477 = vunpack.c.0.s8 %v6476
        %v6478 = vlaneseq
        %v6479 = vshrl.u32 %v6478, 7
        %v6480 = vsub.s32 %v6477, %v6479
        %v6481 = vrot.slane %v6467, %v6480
        %v6482 = vcombine.low %v6417, %v6433
        %v6483 = vcombine.high %v6417, %v6433
        %v6485 = vunpack.c.l.s4 1934713408
        %v6486 = vunpack.c.0.s8 %v6485
        %v6487 = vlaneseq
        %v6488 = vshrl.u32 %v6487, 7
        %v6489 = vsub.s32 %v6486, %v6488
        %v6490 = vrot.slane %v6482, %v6489
        %v6492 = vunpack.c.l.s4 1934713408
        %v6493 = vunpack.c.0.s8 %v6492
        %v6494 = vlaneseq
        %v6495 = vshrl.u32 %v6494, 7
        %v6496 = vsub.s32 %v6493, %v6495
        %v6497 = vrot.slane %v6483, %v6496
        %v6498 = vcombine.low %v6442, %v6458
        %v6499 = vcombine.high %v6442, %v6458
        %v6501 = vunpack.c.l.s4 1934713408
        %v6502 = vunpack.c.0.s8 %v6501
        %v6503 = vlaneseq
        %v6504 = vshrl.u32 %v6503, 7
        %v6505 = vsub.s32 %v6502, %v6504
        %v6506 = vrot.slane %v6498, %v6505
        %v6508 = vunpack.c.l.s4 1934713408
        %v6509 = vunpack.c.0.s8 %v6508
        %v6510 = vlaneseq
        %v6511 = vshrl.u32 %v6510, 7
        %v6512 = vsub.s32 %v6509, %v6511
        %v6513 = vrot.slane %v6499, %v6512
        %v6514 = vcombine.low %v6449, %v6465
        %v6515 = vcombine.high %v6449, %v6465
        %v6517 = vunpack.c.l.s4 1934713408
        %v6518 = vunpack.c.0.s8 %v6517
        %v6519 = vlaneseq
        %v6520 = vshrl.u32 %v6519, 7
        %v6521 = vsub.s32 %v6518, %v6520
        %v6522 = vrot.slane %v6514, %v6521
        %v6524 = vunpack.c.l.s4 1934713408
        %v6525 = vunpack.c.0.s8 %v6524
        %v6526 = vlaneseq
        %v6527 = vshrl.u32 %v6526, 7
        %v6528 = vsub.s32 %v6525, %v6527
        %v6529 = vrot.slane %v6515, %v6528
        %v6530 = vcombine.low %v6474, %v6506
        %v6531 = vcombine.high %v6474, %v6506
        %v6532 = vcombine.low %v6481, %v6513
        %v6533 = vcombine.high %v6481, %v6513
        %v6534 = vcombine.low %v6490, %v6522
        %v6535 = vcombine.high %v6490, %v6522
        %v6536 = vcombine.low %v6497, %v6529
        %v6537 = vcombine.high %v6497, %v6529
        %v6538 = vcombine.low %v6122, %v6124
        %v6539 = vcombine.high %v6122, %v6124
        %v6541 = vunpack.c.l.s4 1983009808
        %v6542 = vunpack.c.0.s8 %v6541
        %v6543 = vlaneseq
        %v6544 = vshrl.u32 %v6543, 7
        %v6545 = vsub.s32 %v6542, %v6544
        %v6546 = vrot.slane %v6538, %v6545
        %v6548 = vunpack.c.l.s4 1983009808
        %v6549 = vunpack.c.0.s8 %v6548
        %v6550 = vlaneseq
        %v6551 = vshrl.u32 %v6550, 7
        %v6552 = vsub.s32 %v6549, %v6551
        %v6553 = vrot.slane %v6539, %v6552
        %v6554 = vcombine.low %v6123, %v6125
        %v6555 = vcombine.high %v6123, %v6125
        %v6557 = vunpack.c.l.s4 1983009808
        %v6558 = vunpack.c.0.s8 %v6557
        %v6559 = vlaneseq
        %v6560 = vshrl.u32 %v6559, 7
        %v6561 = vsub.s32 %v6558, %v6560
        %v6562 = vrot.slane %v6554, %v6561
        %v6564 = vunpack.c.l.s4 1983009808
        %v6565 = vunpack.c.0.s8 %v6564
        %v6566 = vlaneseq
        %v6567 = vshrl.u32 %v6566, 7
        %v6568 = vsub.s32 %v6565, %v6567
        %v6569 = vrot.slane %v6555, %v6568
        %v6570 = vcombine.low %v6126, %v6128
        %v6571 = vcombine.high %v6126, %v6128
        %v6573 = vunpack.c.l.s4 1983009808
        %v6574 = vunpack.c.0.s8 %v6573
        %v6575 = vlaneseq
        %v6576 = vshrl.u32 %v6575, 7
        %v6577 = vsub.s32 %v6574, %v6576
        %v6578 = vrot.slane %v6570, %v6577
        %v6580 = vunpack.c.l.s4 1983009808
        %v6581 = vunpack.c.0.s8 %v6580
        %v6582 = vlaneseq
        %v6583 = vshrl.u32 %v6582, 7
        %v6584 = vsub.s32 %v6581, %v6583
        %v6585 = vrot.slane %v6571, %v6584
        %v6586 = vcombine.low %v6127, %v6129
        %v6587 = vcombine.high %v6127, %v6129
        %v6589 = vunpack.c.l.s4 1983009808
        %v6590 = vunpack.c.0.s8 %v6589
        %v6591 = vlaneseq
        %v6592 = vshrl.u32 %v6591, 7
        %v6593 = vsub.s32 %v6590, %v6592
        %v6594 = vrot.slane %v6586, %v6593
        %v6596 = vunpack.c.l.s4 1983009808
        %v6597 = vunpack.c.0.s8 %v6596
        %v6598 = vlaneseq
        %v6599 = vshrl.u32 %v6598, 7
        %v6600 = vsub.s32 %v6597, %v6599
        %v6601 = vrot.slane %v6587, %v6600
        %v6602 = vcombine.low %v6546, %v6562
        %v6603 = vcombine.high %v6546, %v6562
        %v6605 = vunpack.c.l.s4 1934713408
        %v6606 = vunpack.c.0.s8 %v6605
        %v6607 = vlaneseq
        %v6608 = vshrl.u32 %v6607, 7
        %v6609 = vsub.s32 %v6606, %v6608
        %v6610 = vrot.slane %v6602, %v6609
        %v6612 = vunpack.c.l.s4 1934713408
        %v6613 = vunpack.c.0.s8 %v6612
        %v6614 = vlaneseq
        %v6615 = vshrl.u32 %v6614, 7
        %v6616 = vsub.s32 %v6613, %v6615
        %v6617 = vrot.slane %v6603, %v6616
        %v6618 = vcombine.low %v6553, %v6569
        %v6619 = vcombine.high %v6553, %v6569
        %v6621 = vunpack.c.l.s4 1934713408
        %v6622 = vunpack.c.0.s8 %v6621
        %v6623 = vlaneseq
        %v6624 = vshrl.u32 %v6623, 7
        %v6625 = vsub.s32 %v6622, %v6624
        %v6626 = vrot.slane %v6618, %v6625
        %v6628 = vunpack.c.l.s4 1934713408
        %v6629 = vunpack.c.0.s8 %v6628
        %v6630 = vlaneseq
        %v6631 = vshrl.u32 %v6630, 7
        %v6632 = vsub.s32 %v6629, %v6631
        %v6633 = vrot.slane %v6619, %v6632
        %v6634 = vcombine.low %v6578, %v6594
        %v6635 = vcombine.high %v6578, %v6594
        %v6637 = vunpack.c.l.s4 1934713408
        %v6638 = vunpack.c.0.s8 %v6637
        %v6639 = vlaneseq
        %v6640 = vshrl.u32 %v6639, 7
        %v6641 = vsub.s32 %v6638, %v6640
        %v6642 = vrot.slane %v6634, %v6641
        %v6644 = vunpack.c.l.s4 1934713408
        %v6645 = vunpack.c.0.s8 %v6644
        %v6646 = vlaneseq
        %v6647 = vshrl.u32 %v6646, 7
        %v6648 = vsub.s32 %v6645, %v6647
        %v6649 = vrot.slane %v6635, %v6648
        %v6650 = vcombine.low %v6585, %v6601
        %v6651 = vcombine.high %v6585, %v6601
        %v6653 = vunpack.c.l.s4 1934713408
        %v6654 = vunpack.c.0.s8 %v6653
        %v6655 = vlaneseq
        %v6656 = vshrl.u32 %v6655, 7
        %v6657 = vsub.s32 %v6654, %v6656
        %v6658 = vrot.slane %v6650, %v6657
        %v6660 = vunpack.c.l.s4 1934713408
        %v6661 = vunpack.c.0.s8 %v6660
        %v6662 = vlaneseq
        %v6663 = vshrl.u32 %v6662, 7
        %v6664 = vsub.s32 %v6661, %v6663
        %v6665 = vrot.slane %v6651, %v6664
        %v6666 = vcombine.low %v6610, %v6642
        %v6667 = vcombine.high %v6610, %v6642
        %v6668 = vcombine.low %v6617, %v6649
        %v6669 = vcombine.high %v6617, %v6649
        %v6670 = vcombine.low %v6626, %v6658
        %v6671 = vcombine.high %v6626, %v6658
        %v6672 = vcombine.low %v6633, %v6665
        %v6673 = vcombine.high %v6633, %v6665
        %v6674 = vcombine.low %v6258, %v6260
        %v6675 = vcombine.high %v6258, %v6260
        %v6677 = vunpack.c.l.s4 1983009808
        %v6678 = vunpack.c.0.s8 %v6677
        %v6679 = vlaneseq
        %v6680 = vshrl.u32 %v6679, 7
        %v6681 = vsub.s32 %v6678, %v6680
        %v6682 = vrot.slane %v6674, %v6681
        %v6684 = vunpack.c.l.s4 1983009808
        %v6685 = vunpack.c.0.s8 %v6684
        %v6686 = vlaneseq
        %v6687 = vshrl.u32 %v6686, 7
        %v6688 = vsub.s32 %v6685, %v6687
        %v6689 = vrot.slane %v6675, %v6688
        %v6690 = vcombine.low %v6259, %v6261
        %v6691 = vcombine.high %v6259, %v6261
        %v6693 = vunpack.c.l.s4 1983009808
        %v6694 = vunpack.c.0.s8 %v6693
        %v6695 = vlaneseq
        %v6696 = vshrl.u32 %v6695, 7
        %v6697 = vsub.s32 %v6694, %v6696
        %v6698 = vrot.slane %v6690, %v6697
        %v6700 = vunpack.c.l.s4 1983009808
        %v6701 = vunpack.c.0.s8 %v6700
        %v6702 = vlaneseq
        %v6703 = vshrl.u32 %v6702, 7
        %v6704 = vsub.s32 %v6701, %v6703
        %v6705 = vrot.slane %v6691, %v6704
        %v6706 = vcombine.low %v6262, %v6264
        %v6707 = vcombine.high %v6262, %v6264
        %v6709 = vunpack.c.l.s4 1983009808
        %v6710 = vunpack.c.0.s8 %v6709
        %v6711 = vlaneseq
        %v6712 = vshrl.u32 %v6711, 7
        %v6713 = vsub.s32 %v6710, %v6712
        %v6714 = vrot.slane %v6706, %v6713
        %v6716 = vunpack.c.l.s4 1983009808
        %v6717 = vunpack.c.0.s8 %v6716
        %v6718 = vlaneseq
        %v6719 = vshrl.u32 %v6718, 7
        %v6720 = vsub.s32 %v6717, %v6719
        %v6721 = vrot.slane %v6707, %v6720
        %v6722 = vcombine.low %v6263, %v6265
        %v6723 = vcombine.high %v6263, %v6265
        %v6725 = vunpack.c.l.s4 1983009808
        %v6726 = vunpack.c.0.s8 %v6725
        %v6727 = vlaneseq
        %v6728 = vshrl.u32 %v6727, 7
        %v6729 = vsub.s32 %v6726, %v6728
        %v6730 = vrot.slane %v6722, %v6729
        %v6732 = vunpack.c.l.s4 1983009808
        %v6733 = vunpack.c.0.s8 %v6732
        %v6734 = vlaneseq
        %v6735 = vshrl.u32 %v6734, 7
        %v6736 = vsub.s32 %v6733, %v6735
        %v6737 = vrot.slane %v6723, %v6736
        %v6738 = vcombine.low %v6682, %v6698
        %v6739 = vcombine.high %v6682, %v6698
        %v6741 = vunpack.c.l.s4 1934713408
        %v6742 = vunpack.c.0.s8 %v6741
        %v6743 = vlaneseq
        %v6744 = vshrl.u32 %v6743, 7
        %v6745 = vsub.s32 %v6742, %v6744
        %v6746 = vrot.slane %v6738, %v6745
        %v6748 = vunpack.c.l.s4 1934713408
        %v6749 = vunpack.c.0.s8 %v6748
        %v6750 = vlaneseq
        %v6751 = vshrl.u32 %v6750, 7
        %v6752 = vsub.s32 %v6749, %v6751
        %v6753 = vrot.slane %v6739, %v6752
        %v6754 = vcombine.low %v6689, %v6705
        %v6755 = vcombine.high %v6689, %v6705
        %v6757 = vunpack.c.l.s4 1934713408
        %v6758 = vunpack.c.0.s8 %v6757
        %v6759 = vlaneseq
        %v6760 = vshrl.u32 %v6759, 7
        %v6761 = vsub.s32 %v6758, %v6760
        %v6762 = vrot.slane %v6754, %v6761
        %v6764 = vunpack.c.l.s4 1934713408
        %v6765 = vunpack.c.0.s8 %v6764
        %v6766 = vlaneseq
        %v6767 = vshrl.u32 %v6766, 7
        %v6768 = vsub.s32 %v6765, %v6767
        %v6769 = vrot.slane %v6755, %v6768
        %v6770 = vcombine.low %v6714, %v6730
        %v6771 = vcombine.high %v6714, %v6730
        %v6773 = vunpack.c.l.s4 1934713408
        %v6774 = vunpack.c.0.s8 %v6773
        %v6775 = vlaneseq
        %v6776 = vshrl.u32 %v6775, 7
        %v6777 = vsub.s32 %v6774, %v6776
        %v6778 = vrot.slane %v6770, %v6777
        %v6780 = vunpack.c.l.s4 1934713408
        %v6781 = vunpack.c.0.s8 %v6780
        %v6782 = vlaneseq
        %v6783 = vshrl.u32 %v6782, 7
        %v6784 = vsub.s32 %v6781, %v6783
        %v6785 = vrot.slane %v6771, %v6784
        %v6786 = vcombine.low %v6721, %v6737
        %v6787 = vcombine.high %v6721, %v6737
        %v6789 = vunpack.c.l.s4 1934713408
        %v6790 = vunpack.c.0.s8 %v6789
        %v6791 = vlaneseq
        %v6792 = vshrl.u32 %v6791, 7
        %v6793 = vsub.s32 %v6790, %v6792
        %v6794 = vrot.slane %v6786, %v6793
        %v6796 = vunpack.c.l.s4 1934713408
        %v6797 = vunpack.c.0.s8 %v6796
        %v6798 = vlaneseq
        %v6799 = vshrl.u32 %v6798, 7
        %v6800 = vsub.s32 %v6797, %v6799
        %v6801 = vrot.slane %v6787, %v6800
        %v6802 = vcombine.low %v6746, %v6778
        %v6803 = vcombine.high %v6746, %v6778
        %v6804 = vcombine.low %v6753, %v6785
        %v6805 = vcombine.high %v6753, %v6785
        %v6806 = vcombine.low %v6762, %v6794
        %v6807 = vcombine.high %v6762, %v6794
        %v6808 = vcombine.low %v6769, %v6801
        %v6809 = vcombine.high %v6769, %v6801
        %v6810 = vcombine.low %v6394, %v6396
        %v6811 = vcombine.high %v6394, %v6396
        %v6813 = vunpack.c.l.s4 1983009808
        %v6814 = vunpack.c.0.s8 %v6813
        %v6815 = vlaneseq
        %v6816 = vshrl.u32 %v6815, 7
        %v6817 = vsub.s32 %v6814, %v6816
        %v6818 = vrot.slane %v6810, %v6817
        %v6820 = vunpack.c.l.s4 1983009808
        %v6821 = vunpack.c.0.s8 %v6820
        %v6822 = vlaneseq
        %v6823 = vshrl.u32 %v6822, 7
        %v6824 = vsub.s32 %v6821, %v6823
        %v6825 = vrot.slane %v6811, %v6824
        %v6826 = vcombine.low %v6395, %v6397
        %v6827 = vcombine.high %v6395, %v6397
        %v6829 = vunpack.c.l.s4 1983009808
        %v6830 = vunpack.c.0.s8 %v6829
        %v6831 = vlaneseq
        %v6832 = vshrl.u32 %v6831, 7
        %v6833 = vsub.s32 %v6830, %v6832
        %v6834 = vrot.slane %v6826, %v6833
        %v6836 = vunpack.c.l.s4 1983009808
        %v6837 = vunpack.c.0.s8 %v6836
        %v6838 = vlaneseq
        %v6839 = vshrl.u32 %v6838, 7
        %v6840 = vsub.s32 %v6837, %v6839
        %v6841 = vrot.slane %v6827, %v6840
        %v6842 = vcombine.low %v6398, %v6400
        %v6843 = vcombine.high %v6398, %v6400
        %v6845 = vunpack.c.l.s4 1983009808
        %v6846 = vunpack.c.0.s8 %v6845
        %v6847 = vlaneseq
        %v6848 = vshrl.u32 %v6847, 7
        %v6849 = vsub.s32 %v6846, %v6848
        %v6850 = vrot.slane %v6842, %v6849
        %v6852 = vunpack.c.l.s4 1983009808
        %v6853 = vunpack.c.0.s8 %v6852
        %v6854 = vlaneseq
        %v6855 = vshrl.u32 %v6854, 7
        %v6856 = vsub.s32 %v6853, %v6855
        %v6857 = vrot.slane %v6843, %v6856
        %v6858 = vcombine.low %v6399, %v6401
        %v6859 = vcombine.high %v6399, %v6401
        %v6861 = vunpack.c.l.s4 1983009808
        %v6862 = vunpack.c.0.s8 %v6861
        %v6863 = vlaneseq
        %v6864 = vshrl.u32 %v6863, 7
        %v6865 = vsub.s32 %v6862, %v6864
        %v6866 = vrot.slane %v6858, %v6865
        %v6868 = vunpack.c.l.s4 1983009808
        %v6869 = vunpack.c.0.s8 %v6868
        %v6870 = vlaneseq
        %v6871 = vshrl.u32 %v6870, 7
        %v6872 = vsub.s32 %v6869, %v6871
        %v6873 = vrot.slane %v6859, %v6872
        %v6874 = vcombine.low %v6818, %v6834
        %v6875 = vcombine.high %v6818, %v6834
        %v6877 = vunpack.c.l.s4 1934713408
        %v6878 = vunpack.c.0.s8 %v6877
        %v6879 = vlaneseq
        %v6880 = vshrl.u32 %v6879, 7
        %v6881 = vsub.s32 %v6878, %v6880
        %v6882 = vrot.slane %v6874, %v6881
        %v6884 = vunpack.c.l.s4 1934713408
        %v6885 = vunpack.c.0.s8 %v6884
        %v6886 = vlaneseq
        %v6887 = vshrl.u32 %v6886, 7
        %v6888 = vsub.s32 %v6885, %v6887
        %v6889 = vrot.slane %v6875, %v6888
        %v6890 = vcombine.low %v6825, %v6841
        %v6891 = vcombine.high %v6825, %v6841
        %v6893 = vunpack.c.l.s4 1934713408
        %v6894 = vunpack.c.0.s8 %v6893
        %v6895 = vlaneseq
        %v6896 = vshrl.u32 %v6895, 7
        %v6897 = vsub.s32 %v6894, %v6896
        %v6898 = vrot.slane %v6890, %v6897
        %v6900 = vunpack.c.l.s4 1934713408
        %v6901 = vunpack.c.0.s8 %v6900
        %v6902 = vlaneseq
        %v6903 = vshrl.u32 %v6902, 7
        %v6904 = vsub.s32 %v6901, %v6903
        %v6905 = vrot.slane %v6891, %v6904
        %v6906 = vcombine.low %v6850, %v6866
        %v6907 = vcombine.high %v6850, %v6866
        %v6909 = vunpack.c.l.s4 1934713408
        %v6910 = vunpack.c.0.s8 %v6909
        %v6911 = vlaneseq
        %v6912 = vshrl.u32 %v6911, 7
        %v6913 = vsub.s32 %v6910, %v6912
        %v6914 = vrot.slane %v6906, %v6913
        %v6916 = vunpack.c.l.s4 1934713408
        %v6917 = vunpack.c.0.s8 %v6916
        %v6918 = vlaneseq
        %v6919 = vshrl.u32 %v6918, 7
        %v6920 = vsub.s32 %v6917, %v6919
        %v6921 = vrot.slane %v6907, %v6920
        %v6922 = vcombine.low %v6857, %v6873
        %v6923 = vcombine.high %v6857, %v6873
        %v6925 = vunpack.c.l.s4 1934713408
        %v6926 = vunpack.c.0.s8 %v6925
        %v6927 = vlaneseq
        %v6928 = vshrl.u32 %v6927, 7
        %v6929 = vsub.s32 %v6926, %v6928
        %v6930 = vrot.slane %v6922, %v6929
        %v6932 = vunpack.c.l.s4 1934713408
        %v6933 = vunpack.c.0.s8 %v6932
        %v6934 = vlaneseq
        %v6935 = vshrl.u32 %v6934, 7
        %v6936 = vsub.s32 %v6933, %v6935
        %v6937 = vrot.slane %v6923, %v6936
        %v6938 = vcombine.low %v6882, %v6914
        %v6939 = vcombine.high %v6882, %v6914
        %v6940 = vcombine.low %v6889, %v6921
        %v6941 = vcombine.high %v6889, %v6921
        %v6942 = vcombine.low %v6898, %v6930
        %v6943 = vcombine.high %v6898, %v6930
        %v6944 = vcombine.low %v6905, %v6937
        %v6945 = vcombine.high %v6905, %v6937
        %v6946 = vcombine.low %v6530, %v6532
        %v6947 = vcombine.high %v6530, %v6532
        %v6949 = vunpack.c.l.s4 1983009808
        %v6950 = vunpack.c.0.s8 %v6949
        %v6951 = vlaneseq
        %v6952 = vshrl.u32 %v6951, 7
        %v6953 = vsub.s32 %v6950, %v6952
        %v6954 = vrot.slane %v6946, %v6953
        %v6956 = vunpack.c.l.s4 1983009808
        %v6957 = vunpack.c.0.s8 %v6956
        %v6958 = vlaneseq
        %v6959 = vshrl.u32 %v6958, 7
        %v6960 = vsub.s32 %v6957, %v6959
        %v6961 = vrot.slane %v6947, %v6960
        %v6962 = vcombine.low %v6531, %v6533
        %v6963 = vcombine.high %v6531, %v6533
        %v6965 = vunpack.c.l.s4 1983009808
        %v6966 = vunpack.c.0.s8 %v6965
        %v6967 = vlaneseq
        %v6968 = vshrl.u32 %v6967, 7
        %v6969 = vsub.s32 %v6966, %v6968
        %v6970 = vrot.slane %v6962, %v6969
        %v6972 = vunpack.c.l.s4 1983009808
        %v6973 = vunpack.c.0.s8 %v6972
        %v6974 = vlaneseq
        %v6975 = vshrl.u32 %v6974, 7
        %v6976 = vsub.s32 %v6973, %v6975
        %v6977 = vrot.slane %v6963, %v6976
        %v6978 = vcombine.low %v6534, %v6536
        %v6979 = vcombine.high %v6534, %v6536
        %v6981 = vunpack.c.l.s4 1983009808
        %v6982 = vunpack.c.0.s8 %v6981
        %v6983 = vlaneseq
        %v6984 = vshrl.u32 %v6983, 7
        %v6985 = vsub.s32 %v6982, %v6984
        %v6986 = vrot.slane %v6978, %v6985
        %v6988 = vunpack.c.l.s4 1983009808
        %v6989 = vunpack.c.0.s8 %v6988
        %v6990 = vlaneseq
        %v6991 = vshrl.u32 %v6990, 7
        %v6992 = vsub.s32 %v6989, %v6991
        %v6993 = vrot.slane %v6979, %v6992
        %v6994 = vcombine.low %v6535, %v6537
        %v6995 = vcombine.high %v6535, %v6537
        %v6997 = vunpack.c.l.s4 1983009808
        %v6998 = vunpack.c.0.s8 %v6997
        %v6999 = vlaneseq
        %v7000 = vshrl.u32 %v6999, 7
        %v7001 = vsub.s32 %v6998, %v7000
        %v7002 = vrot.slane %v6994, %v7001
        %v7004 = vunpack.c.l.s4 1983009808
        %v7005 = vunpack.c.0.s8 %v7004
        %v7006 = vlaneseq
        %v7007 = vshrl.u32 %v7006, 7
        %v7008 = vsub.s32 %v7005, %v7007
        %v7009 = vrot.slane %v6995, %v7008
        %v7010 = vcombine.low %v6954, %v6970
        %v7011 = vcombine.high %v6954, %v6970
        %v7013 = vunpack.c.l.s4 1934713408
        %v7014 = vunpack.c.0.s8 %v7013
        %v7015 = vlaneseq
        %v7016 = vshrl.u32 %v7015, 7
        %v7017 = vsub.s32 %v7014, %v7016
        %v7018 = vrot.slane %v7010, %v7017
        %v7020 = vunpack.c.l.s4 1934713408
        %v7021 = vunpack.c.0.s8 %v7020
        %v7022 = vlaneseq
        %v7023 = vshrl.u32 %v7022, 7
        %v7024 = vsub.s32 %v7021, %v7023
        %v7025 = vrot.slane %v7011, %v7024
        %v7026 = vcombine.low %v6961, %v6977
        %v7027 = vcombine.high %v6961, %v6977
        %v7029 = vunpack.c.l.s4 1934713408
        %v7030 = vunpack.c.0.s8 %v7029
        %v7031 = vlaneseq
        %v7032 = vshrl.u32 %v7031, 7
        %v7033 = vsub.s32 %v7030, %v7032
        %v7034 = vrot.slane %v7026, %v7033
        %v7036 = vunpack.c.l.s4 1934713408
        %v7037 = vunpack.c.0.s8 %v7036
        %v7038 = vlaneseq
        %v7039 = vshrl.u32 %v7038, 7
        %v7040 = vsub.s32 %v7037, %v7039
        %v7041 = vrot.slane %v7027, %v7040
        %v7042 = vcombine.low %v6986, %v7002
        %v7043 = vcombine.high %v6986, %v7002
        %v7045 = vunpack.c.l.s4 1934713408
        %v7046 = vunpack.c.0.s8 %v7045
        %v7047 = vlaneseq
        %v7048 = vshrl.u32 %v7047, 7
        %v7049 = vsub.s32 %v7046, %v7048
        %v7050 = vrot.slane %v7042, %v7049
        %v7052 = vunpack.c.l.s4 1934713408
        %v7053 = vunpack.c.0.s8 %v7052
        %v7054 = vlaneseq
        %v7055 = vshrl.u32 %v7054, 7
        %v7056 = vsub.s32 %v7053, %v7055
        %v7057 = vrot.slane %v7043, %v7056
        %v7058 = vcombine.low %v6993, %v7009
        %v7059 = vcombine.high %v6993, %v7009
        %v7061 = vunpack.c.l.s4 1934713408
        %v7062 = vunpack.c.0.s8 %v7061
        %v7063 = vlaneseq
        %v7064 = vshrl.u32 %v7063, 7
        %v7065 = vsub.s32 %v7062, %v7064
        %v7066 = vrot.slane %v7058, %v7065
        %v7068 = vunpack.c.l.s4 1934713408
        %v7069 = vunpack.c.0.s8 %v7068
        %v7070 = vlaneseq
        %v7071 = vshrl.u32 %v7070, 7
        %v7072 = vsub.s32 %v7069, %v7071
        %v7073 = vrot.slane %v7059, %v7072
        %v7074 = vcombine.low %v7018, %v7050
        %v7075 = vcombine.high %v7018, %v7050
        %v7076 = vcombine.low %v7025, %v7057
        %v7077 = vcombine.high %v7025, %v7057
        %v7078 = vcombine.low %v7034, %v7066
        %v7079 = vcombine.high %v7034, %v7066
        %v7080 = vcombine.low %v7041, %v7073
        %v7081 = vcombine.high %v7041, %v7073
        %7086 = vrot.lane.b32.xlu0 %v6667, 4
        %v7087 = vpop.permute.xlu0 %7086
        %7088 = vrot.lane.b32.xlu0 %v6803, 4
        %v7089 = vpop.permute.xlu0 %7088
        %7090 = vrot.lane.b32.xlu0 %v6939, 4
        %v7091 = vpop.permute.xlu0 %7090
        %7092 = vrot.lane.b32.xlu0 %v7075, 4
        %v7093 = vpop.permute.xlu0 %7092
        %7102 = vrot.lane.b32.xlu0 %v6668, 8
        %v7103 = vpop.permute.xlu0 %7102
        %7104 = vrot.lane.b32.xlu0 %v6804, 8
        %v7105 = vpop.permute.xlu0 %7104
        %7106 = vrot.lane.b32.xlu0 %v6940, 8
        %v7107 = vpop.permute.xlu0 %7106
        %7108 = vrot.lane.b32.xlu0 %v7076, 8
        %v7109 = vpop.permute.xlu0 %7108
        %7118 = vrot.lane.b32.xlu0 %v6669, 12
        %v7119 = vpop.permute.xlu0 %7118
        %7120 = vrot.lane.b32.xlu0 %v6805, 12
        %v7121 = vpop.permute.xlu0 %7120
        %7122 = vrot.lane.b32.xlu0 %v6941, 12
        %v7123 = vpop.permute.xlu0 %7122
        %7124 = vrot.lane.b32.xlu0 %v7077, 12
        %v7125 = vpop.permute.xlu0 %7124
        %7134 = vrot.lane.b32.xlu0 %v6670, 16
        %v7135 = vpop.permute.xlu0 %7134
        %7136 = vrot.lane.b32.xlu0 %v6806, 16
        %v7137 = vpop.permute.xlu0 %7136
        %7138 = vrot.lane.b32.xlu0 %v6942, 16
        %v7139 = vpop.permute.xlu0 %7138
        %7140 = vrot.lane.b32.xlu0 %v7078, 16
        %v7141 = vpop.permute.xlu0 %7140
        %7150 = vrot.lane.b32.xlu0 %v6671, 20
        %v7151 = vpop.permute.xlu0 %7150
        %7152 = vrot.lane.b32.xlu0 %v6807, 20
        %v7153 = vpop.permute.xlu0 %7152
        %7154 = vrot.lane.b32.xlu0 %v6943, 20
        %v7155 = vpop.permute.xlu0 %7154
        %7156 = vrot.lane.b32.xlu0 %v7079, 20
        %v7157 = vpop.permute.xlu0 %7156
        %7166 = vrot.lane.b32.xlu0 %v6672, 24
        %v7167 = vpop.permute.xlu0 %7166
        %7168 = vrot.lane.b32.xlu0 %v6808, 24
        %v7169 = vpop.permute.xlu0 %7168
        %7170 = vrot.lane.b32.xlu0 %v6944, 24
        %v7171 = vpop.permute.xlu0 %7170
        %7172 = vrot.lane.b32.xlu0 %v7080, 24
        %v7173 = vpop.permute.xlu0 %7172
        %7182 = vrot.lane.b32.xlu0 %v6673, 28
        %v7183 = vpop.permute.xlu0 %7182
        %7184 = vrot.lane.b32.xlu0 %v6809, 28
        %v7185 = vpop.permute.xlu0 %7184
        %7186 = vrot.lane.b32.xlu0 %v6945, 28
        %v7187 = vpop.permute.xlu0 %7186
        %7188 = vrot.lane.b32.xlu0 %v7081, 28
        %v7189 = vpop.permute.xlu0 %7188
        %v7194 = vsel %vm3993, %v6666, %v7087
        %v7195 = vsel %vm3993, %v6802, %v7089
        %v7196 = vsel %vm3993, %v6938, %v7091
        %v7197 = vsel %vm3993, %v7074, %v7093
        %vm7198 = vcmask 64512
        %v7199 = vsel %vm7198, %v7194, %v7103
        %v7200 = vsel %vm7198, %v7195, %v7105
        %v7201 = vsel %vm7198, %v7196, %v7107
        %v7202 = vsel %vm7198, %v7197, %v7109
        %vm7203 = vcmask 97280
        %v7204 = vsel %vm7203, %v7199, %v7119
        %v7205 = vsel %vm7203, %v7200, %v7121
        %v7206 = vsel %vm7203, %v7201, %v7123
        %v7207 = vsel %vm7203, %v7202, %v7125
        %vm7208 = vcmask 130048
        %v7209 = vsel %vm7208, %v7204, %v7135
        %v7210 = vsel %vm7208, %v7205, %v7137
        %v7211 = vsel %vm7208, %v7206, %v7139
        %v7212 = vsel %vm7208, %v7207, %v7141
        %vm7213 = vcmask 162816
        %v7214 = vsel %vm7213, %v7209, %v7151
        %v7215 = vsel %vm7213, %v7210, %v7153
        %v7216 = vsel %vm7213, %v7211, %v7155
        %v7217 = vsel %vm7213, %v7212, %v7157
        %vm7218 = vcmask 195584
        %v7219 = vsel %vm7218, %v7214, %v7167
        %v7220 = vsel %vm7218, %v7215, %v7169
        %v7221 = vsel %vm7218, %v7216, %v7171
        %v7222 = vsel %vm7218, %v7217, %v7173
        %vm7223 = vcmask 228352
        %v7224 = vsel %vm7223, %v7219, %v7183
        %v7225 = vsel %vm7223, %v7220, %v7185
        %v7226 = vsel %vm7223, %v7221, %v7187
        %v7227 = vsel %vm7223, %v7222, %v7189
        %v7228 = vld [vmem:[#allocation7] sm:$0xff]
        %v7229 = vld [vmem:[#allocation7 + $0x8] sm:$0xff]
        %v7230 = vld [vmem:[#allocation7 + $0x10] sm:$0xff]
        %v7231 = vld [vmem:[#allocation7 + $0x18] sm:$0xff]
        %v7232 = vld [vmem:[%s4] sm:$0x1]
        %v7234 = vlaneseq
        %v7235 = vshrl.u32 %v7234, 7
        %v7236 = vsub.s32 0, %v7235
        %v7237 = vrot.slane %v7232, %v7236
        %v7240 = vsel %vm287, %v7224, 0
        %v7243 = vsel %vm287, %v7225, 0
        %v7246 = vsel %vm287, %v7226, 0
        %v7249 = vsel %vm287, %v7227, 0
        %7251 = vmatprep.subr.mxu0 0.0
        %7252 = vmatpush1.msra.mxu0 %v7228
        %7253 = vmatprep.subr.mxu0 0.0
        %7254 = vmatpush1.msra.mxu0 %v7229
        %7255 = vmatprep.subr.mxu0 0.0
        %7256 = vmatpush1.msra.mxu0 %v7230
        %7257 = vmatprep.subr.mxu0 0.0
        %7258 = vmatpush1.msra.mxu0 %v7231
        %7259 = vmatprep.subr.mxu0 0.0
        %7260 = vmatpush1.msra.mxu0 0.0
        %7261 = vmatprep.subr.mxu0 0.0
        %7262 = vmatpush1.msra.mxu0 0.0
        %7263 = vmatprep.subr.mxu0 0.0
        %7264 = vmatpush1.msra.mxu0 0.0
        %7265 = vmatprep.subr.mxu0 0.0
        %7266 = vmatpush1.msra.mxu0 0.0
        %7267 = vmatprep.subr.mxu0 0.0
        %7268 = vmatpush1.msra.mxu0 0.0
        %7269 = vmatprep.subr.mxu0 0.0
        %7270 = vmatpush1.msra.mxu0 0.0
        %7271 = vmatprep.subr.mxu0 0.0
        %7272 = vmatpush1.msra.mxu0 0.0
        %7273 = vmatprep.subr.mxu0 0.0
        %7274 = vmatpush1.msra.mxu0 0.0
        %7275 = vmatprep.subr.mxu0 0.0
        %7276 = vmatpush1.msra.mxu0 0.0
        %7277 = vmatprep.subr.mxu0 0.0
        %7278 = vmatpush1.msra.mxu0 0.0
        %7279 = vmatprep.subr.mxu0 0.0
        %7280 = vmatpush1.msra.mxu0 0.0
        %7281 = vmatprep.subr.mxu0 0.0
        %7282 = vmatpush1.msra.mxu0 0.0
        %7283 = vmatprep.subr.mxu0 0.0
        %7284 = vmatpush1.msra.mxu0 0.0
        %7285 = vmatprep.subr.mxu0 0.0
        %7286 = vmatpush1.msra.mxu0 0.0
        %7287 = vmatprep.subr.mxu0 0.0
        %7288 = vmatpush1.msra.mxu0 0.0
        %7289 = vmatprep.subr.mxu0 0.0
        %7290 = vmatpush1.msra.mxu0 0.0
        %7291 = vmatprep.subr.mxu0 0.0
        %7292 = vmatpush1.msra.mxu0 0.0
        %7293 = vmatprep.subr.mxu0 0.0
        %7294 = vmatpush1.msra.mxu0 0.0
        %7295 = vmatprep.subr.mxu0 0.0
        %7296 = vmatpush1.msra.mxu0 0.0
        %7297 = vmatprep.subr.mxu0 0.0
        %7298 = vmatpush1.msra.mxu0 0.0
        %7299 = vmatprep.subr.mxu0 0.0
        %7300 = vmatpush1.msra.mxu0 0.0
        %7301 = vmatprep.subr.mxu0 0.0
        %7302 = vmatpush1.msra.mxu0 0.0
        %7303 = vmatprep.subr.mxu0 0.0
        %7304 = vmatpush1.msra.mxu0 0.0
        %7305 = vmatprep.subr.mxu0 0.0
        %7306 = vmatpush1.msra.mxu0 0.0
        %7307 = vmatprep.subr.mxu0 0.0
        %7308 = vmatpush1.msra.mxu0 0.0
        %7309 = vmatprep.subr.mxu0 0.0
        %7310 = vmatpush1.msra.mxu0 0.0
        %7311 = vmatprep.subr.mxu0 0.0
        %7312 = vmatpush1.msra.mxu0 0.0
        %7313 = vmatprep.subr.mxu0 0.0
        %7314 = vmatpush1.msra.mxu0 0.0
        %7315 = vmatprep.mubr.f32.mxu0 0.0
        %7316 = vmatmul.mubr.f32.gmra.mrb[0].mxu0 %v7240
        %v7317 = vpop.f32.mrb[0].mxu0
        %v7318 = vadd.f32 %v7237, %v7317
        %v7319 = vpop.f32.mrb[0].mxu0
        %7320 = vmatprep.mubr.f32.mxu0 0.0
        %7321 = vmatmul.mubr.f32.gmra.mrb[0].mxu0 %v7243
        %v7322 = vpop.f32.mrb[0].mxu0
        %v7323 = vadd.f32 %v7237, %v7322
        %v7324 = vpop.f32.mrb[0].mxu0
        %7325 = vmatprep.mubr.f32.mxu0 0.0
        %7326 = vmatmul.mubr.f32.gmra.mrb[0].mxu0 %v7246
        %v7327 = vpop.f32.mrb[0].mxu0
        %v7328 = vadd.f32 %v7237, %v7327
        %v7329 = vpop.f32.mrb[0].mxu0
        %7330 = vmatprep.mubr.f32.mxu0 0.0
        %7331 = vmatmul.mubr.f32.gmra.mrb[0].mxu0 %v7249
        %v7332 = vpop.f32.mrb[0].mxu0
        %v7333 = vadd.f32 %v7237, %v7332
        %v7334 = vpop.f32.mrb[0].mxu0
        %7335 = vdwg.mxu0
        %7336 = vst.msk [vmem:[%s271] sm:$0xff] %vm287, %v7318
        %7337 = vst.msk [vmem:[%s271 + $0x8] sm:$0xff] %vm287, %v7323
        %7338 = vst.msk [vmem:[%s271 + $0x10] sm:$0xff] %vm287, %v7328
        %7339 = vst.msk [vmem:[%s271 + $0x18] sm:$0xff] %vm287, %v7333
        %s7340 = sand.u32 %s141, 1
        %s7341 = scalar_lea.sflag [#allocation4], %s7340
        %s7342 = sand.u32 %s141, 1
        %s7343 = smul.addr %s7342, 32
        %s7344 = scalar_lea.vmem [#allocation8], %s7343
        // Predicated region
        $region53: #{tpu_custom_call.1} parent=39 // pred_check
          %p7345 = pneg %p151
        $region54: #{tpu_custom_call.1} parent=39 // pred_check_branch
          %7347 = sbr.rel (%p7345) target = $region56
        $region55: #{tpu_custom_call.1} parent=39 // pred_region
          %s7349 = ssub.s32 512, 512
          %7350 = vsyncadd %s7341, %s7349
          %s7351 = smul.addr %s23, 4
          %s7352 = smul.addr %s7351, 128
          %s7353 = scalar_lea.hbm %s5, %s7352
          %s7354 = sshll.u32 %s7344, 4
          %s7355 = int_to_ptr.vmem [resolvable:$true] %s7354
          %7360 = dma.vmem_to_hbm [thread:$0]  %s7355, 512, %s7353, %s7341, 128, 128, 8
        $region56: #{tpu_custom_call.1} parent=39 // pred_fallthru
          _
      $region40: #{tpu_custom_call.1} parent=5 // pred_fallthru
        _
      %p7361 = scmp.le.s32.totalorder 2, %s18
      // Predicated region
      $region57: #{tpu_custom_call.1} parent=5 // pred_check
        %p7362 = pneg %p7361
      $region58: #{tpu_custom_call.1} parent=5 // pred_check_branch
        %7364 = sbr.rel (%p7362) target = $region60
      $region59: #{tpu_custom_call.1} parent=5 // pred_region
        %s7365 = ssub.s32 %s18, 2
        // Predicated region
        $region61: #{tpu_custom_call.1} parent=59 // pred_check
          %p7366 = pneg %p157
        $region62: #{tpu_custom_call.1} parent=59 // pred_check_branch
          %7368 = sbr.rel (%p7366) target = $region64
        $region63: #{tpu_custom_call.1} parent=59 // pred_region
          %s7369 = sand.u32 %s142, 1
          %s7370 = scalar_lea.sflag [#allocation4], %s7369
          %s7371 = sand.u32 %s142, 1
          %s7372 = smul.addr %s7371, 32
          %s7373 = scalar_lea.vmem [#allocation8], %s7372
          %7374 = dma.done %s7370, 512
        $region64: #{tpu_custom_call.1} parent=59 // pred_fallthru
          _
      $region60: #{tpu_custom_call.1} parent=5 // pred_fallthru
        _
    $region6: #{tpu_custom_call.1} parent=1 // loop_footer
      %s22 = sadd.s32 1, %s18
    $region7: #{tpu_custom_call.1} parent=1 // loop_footer_branch
      %17 = sbr.rel target = $region3
    $region8: #{tpu_custom_call.1} parent=1 // loop_exit
      _
    %7375 = vsyncpa [#allocation3], 1
    %s7376 = scalar_lea.sflag [#allocation3], 1
    %7377 = vsyncpa %s7376, 1
    %7378 = vsyncpa [#allocation6], 1
    %7379 = vsyncpa [#allocation4], 1
    %s7380 = scalar_lea.sflag [#allocation4], 1
    %7381 = vsyncpa %s7380, 1

</llo_original>
